<compile_context>
chip_gen: v7x
topology: tpu7x:2x2x1
jax: 0.10.0
libtpu: 0.0.40
codegen_flags: <defaults>
</compile_context>

<pallas_src>
import functools

import jax
import jax.numpy as jnp
from jax import lax
from jax.experimental import pallas as pl
from jax.experimental.pallas import tpu as pltpu

KSIZE = 5
PAD = 2
BN_EPS = 1e-5
C = 32                      # planes (fixed to 32 by ResNet1d)
GROUP = 4                   # L positions packed per 128-lane row
LANES = GROUP * C           # 128
WIN = GROUP + KSIZE - 1     # 8 input positions feed one packed output row
KC = WIN * C                # 256 contraction depth (MXU-native)


# ----------------------------------------------------------------------------
# In-kernel helpers
# ----------------------------------------------------------------------------
def _conv_packed(xg_bf16, w_ref):
    """k=5 / stride=1 / 'same' conv on a packed tile as one 256-deep matmul.

    xg_bf16: (bt, G, 128) bf16 where row g packs positions 4g..4g+3
             (channel-minor).  w_ref: (256, 128) bf16 banded block-Toeplitz.
    Returns (bt*G, 128) f32 (bf16 MXU operands, f32 accumulation).
    """
    bt, g, _ = xg_bf16.shape
    z = jnp.zeros((bt, 1, LANES), jnp.bfloat16)
    prev = jnp.concatenate([z, xg_bf16[:, :g - 1, :]], axis=1)   # group g-1
    nxt = jnp.concatenate([xg_bf16[:, 1:, :], z], axis=1)        # group g+1
    # patch row g = positions 4g-2 .. 4g+5
    #             = [last 2 slots of g-1 | all 4 slots of g | first 2 of g+1]
    pat = jnp.concatenate(
        [prev[:, :, LANES - PAD * C:], xg_bf16, nxt[:, :, :PAD * C]], axis=-1)
    return jnp.dot(pat.reshape(bt * g, KC), w_ref[...],
                   preferred_element_type=jnp.float32)


def _write_partial_stats(stats_ref, y2d):
    """Per-tile (sum, sum-of-squares) over rows -> stats block (1, 2, 128)."""
    ssum = jnp.sum(y2d, axis=0, keepdims=True)                   # (1, 128)
    ssq = jnp.sum(y2d * y2d, axis=0, keepdims=True)              # (1, 128)
    stats_ref[0] = jnp.concatenate([ssum, ssq], axis=0)          # (2, 128)


# ----------------------------------------------------------------------------
# Kernels
# ----------------------------------------------------------------------------
def _conv1_stats_kernel(x_ref, w_ref, y_ref, stats_ref):
    bt, g, _ = x_ref.shape
    y = _conv_packed(x_ref[...].astype(jnp.bfloat16), w_ref)     # (bt*G,128) f32
    y_ref[...] = y.reshape(bt, g, LANES).astype(jnp.bfloat16)
    _write_partial_stats(stats_ref, y)


def _bn_relu_conv2_stats_kernel(y1_ref, s_ref, t_ref, w_ref, y2_ref, stats_ref):
    bt, g, _ = y1_ref.shape
    s = s_ref[...].reshape(1, 1, LANES)
    t = t_ref[...].reshape(1, 1, LANES)
    h = jnp.maximum(y1_ref[...].astype(jnp.float32) * s + t, 0.0)  # f32 BN+relu
    y2 = _conv_packed(h.astype(jnp.bfloat16), w_ref)               # bf16 patches
    y2_ref[...] = y2.reshape(bt, g, LANES).astype(jnp.bfloat16)
    _write_partial_stats(stats_ref, y2)


def _bn_add_relu_kernel(y2_ref, x_ref, s_ref, t_ref, o_ref):
    s = s_ref[...].reshape(1, 1, LANES)
    t = t_ref[...].reshape(1, 1, LANES)
    o_ref[...] = jnp.maximum(
        y2_ref[...].astype(jnp.float32) * s + t + x_ref[...], 0.0)


# ----------------------------------------------------------------------------
# pallas_call wrappers (one per stage)
# ----------------------------------------------------------------------------
def _cparams():
    # 32 MiB scoped VMEM is safe on v5e/v6e/v7x; per-step footprint is only a
    # few MiB at the auto-chosen tile sizes.  Batch tiles shard across v7x's
    # two TensorCores via "parallel".
    return pltpu.CompilerParams(
        dimension_semantics=("parallel",),
        vmem_limit_bytes=32 * 1024 * 1024)


def _conv1_pass(xg, w, bt):
    N, G, _ = xg.shape
    T = N // bt
    return pl.pallas_call(
        _conv1_stats_kernel,
        grid=(T,),
        in_specs=[pl.BlockSpec((bt, G, LANES), lambda i: (i, 0, 0)),
                  pl.BlockSpec((KC, LANES), lambda i: (0, 0))],
        out_specs=(pl.BlockSpec((bt, G, LANES), lambda i: (i, 0, 0)),
                   pl.BlockSpec((1, 2, LANES), lambda i: (i, 0, 0))),
        out_shape=(jax.ShapeDtypeStruct((N, G, LANES), jnp.bfloat16),
                   jax.ShapeDtypeStruct((T, 2, LANES), jnp.float32)),
        compiler_params=_cparams(),
        cost_estimate=pl.CostEstimate(
            flops=2 * N * G * KC * LANES, transcendentals=0,
            bytes_accessed=4 * xg.size + 2 * w.size
                           + 2 * N * G * LANES + 4 * T * 2 * LANES),
    )(xg, w)


def _bn_relu_conv2_pass(y1, s, t, w, bt):
    N, G, _ = y1.shape
    T = N // bt
    return pl.pallas_call(
        _bn_relu_conv2_stats_kernel,
        grid=(T,),
        in_specs=[pl.BlockSpec((bt, G, LANES), lambda i: (i, 0, 0)),
                  pl.BlockSpec((1, LANES), lambda i: (0, 0)),
                  pl.BlockSpec((1, LANES), lambda i: (0, 0)),
                  pl.BlockSpec((KC, LANES), lambda i: (0, 0))],
        out_specs=(pl.BlockSpec((bt, G, LANES), lambda i: (i, 0, 0)),
                   pl.BlockSpec((1, 2, LANES), lambda i: (i, 0, 0))),
        out_shape=(jax.ShapeDtypeStruct((N, G, LANES), jnp.bfloat16),
                   jax.ShapeDtypeStruct((T, 2, LANES), jnp.float32)),
        compiler_params=_cparams(),
        cost_estimate=pl.CostEstimate(
            flops=2 * N * G * KC * LANES + 4 * N * G * LANES, transcendentals=0,
            bytes_accessed=2 * y1.size + 2 * w.size + 8 * LANES
                           + 2 * N * G * LANES + 4 * T * 2 * LANES),
    )(y1, s, t, w)


def _bn_add_relu_pass(y2, xg, s, t, bt):
    N, G, _ = y2.shape
    T = N // bt
    return pl.pallas_call(
        _bn_add_relu_kernel,
        grid=(T,),
        in_specs=[pl.BlockSpec((bt, G, LANES), lambda i: (i, 0, 0)),
                  pl.BlockSpec((bt, G, LANES), lambda i: (i, 0, 0)),
                  pl.BlockSpec((1, LANES), lambda i: (0, 0)),
                  pl.BlockSpec((1, LANES), lambda i: (0, 0))],
        out_specs=pl.BlockSpec((bt, G, LANES), lambda i: (i, 0, 0)),
        out_shape=jax.ShapeDtypeStruct((N, G, LANES), jnp.float32),
        compiler_params=_cparams(),
        cost_estimate=pl.CostEstimate(
            flops=4 * N * G * LANES, transcendentals=0,
            bytes_accessed=2 * y2.size + 4 * xg.size
                           + 4 * N * G * LANES + 8 * LANES),
    )(y2, xg, s, t)


# ----------------------------------------------------------------------------
# Wrapper-side helpers
# ----------------------------------------------------------------------------
def _pack_weight(w):
    """(Cout, Cin, K) conv weight -> (256, 128) bf16 banded block-Toeplitz.

    Block (p, j) (p = input position 4g-2+p in the 8-wide window, j = packed
    output position 4g+j) is W_k^T with k = p - j, zero outside 0 <= k < 5.
    """
    cout, cin, _ = w.shape
    rows = []
    for p in range(WIN):
        blks = []
        for j in range(GROUP):
            k = p - j
            if 0 <= k < KSIZE:
                blks.append(jnp.transpose(w[:, :, k]))           # (Cin, Cout)
            else:
                blks.append(jnp.zeros((cin, cout), w.dtype))
        rows.append(jnp.concatenate(blks, axis=1))               # (Cin, 128)
    return jnp.concatenate(rows, axis=0).astype(jnp.bfloat16)    # (256, 128)


def _bn_affine(partial_stats, count, gamma, beta):
    """Fold training-mode BN (global batch stats) into a 128-lane scale/shift."""
    s = jnp.sum(partial_stats, axis=0)                           # (2, 128)
    s = s.reshape(2, GROUP, C).sum(axis=1)                       # (2, C)
    mean = s[0] / count
    var = jnp.maximum(s[1] / count - mean * mean, 0.0)           # biased var
    scale = gamma.astype(jnp.float32) * lax.rsqrt(var + BN_EPS)
    shift = beta.astype(jnp.float32) - mean * scale
    # replicate per-channel affine over the 4 packed position slots
    return (jnp.tile(scale, GROUP).reshape(1, LANES),
            jnp.tile(shift, GROUP).reshape(1, LANES))


def _auto_batch_tile(N, G):
    """Target M = bt*G >= 512 (<=2048) rows/tile; keep >=2 parallel blocks."""
    bt = max(1, min(N, max(1, 2048 // max(G, 1))))
    while N % bt:
        bt -= 1
    if N // bt < 2 and N >= 2:                # keep both v7x TensorCores busy
        bt2 = N // 2
        while N % bt2:
            bt2 -= 1
        bt = bt2
    # TODO(synk): for N < 2, add an L/group grid axis (1-group halo) so v7x's
    # second TensorCore still gets work.
    return bt


def _block_packed(xg, p, bt):
    """Residual block on the packed (N, L/4, 128) channels-last layout."""
    N, G, _ = xg.shape
    count = N * G * GROUP                                        # = N * L
    w1 = _pack_weight(p["w1"])
    w2 = _pack_weight(p["w2"])
    # conv biases b1/b2 are NOT used: training-mode BN's mean subtraction
    # cancels a per-channel constant exactly, so they are neither DMA'd nor added.
    y1, st1 = _conv1_pass(xg, w1, bt)                            # conv1 + stats
    s1, t1 = _bn_affine(st1, count, p["g1"], p["be1"])           # global bn1
    y2, st2 = _bn_relu_conv2_pass(y1, s1, t1, w2, bt)            # bn1+relu+conv2
    s2, t2 = _bn_affine(st2, count, p["g2"], p["be2"])           # global bn2
    return _bn_add_relu_pass(y2, xg, s2, t2, bt)                 # bn2+res+relu


# ----------------------------------------------------------------------------
# Public entry point (PyTorch NCL interface)
# ----------------------------------------------------------------------------
@functools.partial(jax.jit, static_argnames=("batch_tile",))
def basic_block(x_ncl, p, *, batch_tile=None):
    """x_ncl: (N, C, L) float32 (PyTorch NCL). Returns (N, C, L) float32."""
    N, c, L = x_ncl.shape
    assert c == C and p["w1"].shape[0] == C, "block requires inplanes==planes==32"
    assert L % GROUP == 0, "L must be a multiple of 4"
    G = L // GROUP
    if batch_tile is None:
        batch_tile = _auto_batch_tile(N, G)
    assert N % batch_tile == 0
    # NCL -> packed channels-last (N, L/4, 128).  When chaining blocks inside a
    # full ResNet1d, keep activations packed and call _block_packed directly to
    # avoid these per-block layout round trips.
    xg = jnp.transpose(x_ncl, (0, 2, 1)).astype(jnp.float32).reshape(N, G, LANES)
    out = _block_packed(xg, p, batch_tile)
    return jnp.transpose(out.reshape(N, L, C), (0, 2, 1))


# ----------------------------------------------------------------------------
# Pure-JAX reference (PyTorch semantics, training-mode BN, f32 HIGHEST convs)
# ----------------------------------------------------------------------------
def basic_block_ref(x, p):
    dn = ("NCH", "OIH", "NCH")

    def conv(y, w, b):
        return lax.conv_general_dilated(
            y, w, window_strides=(1,), padding=[(PAD, PAD)],
            dimension_numbers=dn, precision=lax.Precision.HIGHEST) + b[None, :, None]

    def bn(y, g, be):
        mu = jnp.mean(y, axis=(0, 2), keepdims=True)
        var = jnp.mean((y - mu) ** 2, axis=(0, 2), keepdims=True)
        return (y - mu) * lax.rsqrt(var + BN_EPS) * g[None, :, None] + be[None, :, None]

    h = jax.nn.relu(bn(conv(x, p["w1"], p["b1"]), p["g1"], p["be1"]))
    out = bn(conv(h, p["w2"], p["b2"]), p["g2"], p["be2"])
    return jax.nn.relu(out + x)


if __name__ == "__main__":
    N, L = 16, 256               # planes fixed at 32 by ResNet1d
    key = jax.random.PRNGKey(0)
    ks = jax.random.split(key, 9)
    x = jax.random.normal(ks[0], (N, C, L), jnp.float32)
    params = dict(
        w1=0.1 * jax.random.normal(ks[1], (C, C, KSIZE), jnp.float32),
        b1=0.1 * jax.random.normal(ks[2], (C,), jnp.float32),
        g1=1.0 + 0.1 * jax.random.normal(ks[3], (C,), jnp.float32),
        be1=0.1 * jax.random.normal(ks[4], (C,), jnp.float32),
        w2=0.1 * jax.random.normal(ks[5], (C, C, KSIZE), jnp.float32),
        b2=0.1 * jax.random.normal(ks[6], (C,), jnp.float32),
        g2=1.0 + 0.1 * jax.random.normal(ks[7], (C,), jnp.float32),
        be2=0.1 * jax.random.normal(ks[8], (C,), jnp.float32),
    )

    out = jax.block_until_ready(basic_block(x, params))
    ref = jax.block_until_ready(basic_block_ref(x, params))

    assert out.shape == (N, C, L), out.shape
    max_err = float(jnp.max(jnp.abs(out - ref)))
    # Kernel uses bf16 MXU operands and bf16 inter-stage activations (f32
    # accumulation / BN math); reference is f32 HIGHEST — compare at bf16 level.
    assert jnp.allclose(out, ref, atol=1e-1, rtol=1e-1), f"max abs err {max_err}"
    print("KERNEL_OK")
</pallas_src>

<mosaic_0001>
module attributes {stable_mosaic.version = 11 : i64} {
  func.func @_conv1_stats_kernel(%arg0: i32, %arg1: memref<8x64x128xf32, #tpu.memory_space<vmem>>, %arg2: memref<256x128xbf16, #tpu.memory_space<vmem>>, %arg3: memref<8x64x128xbf16, #tpu.memory_space<vmem>>, %arg4: memref<1x2x128xf32, #tpu.memory_space<vmem>>) attributes {dimension_semantics = [#tpu.dimension_semantics<parallel>], iteration_bounds = array<i64: 2>, scalar_prefetch = 0 : i64, scratch_operands = 0 : i64, tpu.core_type = #tpu.core_type<tc>, window_params = [{transform_indices = @transform_0, window_bounds = array<i64: 8, 64, 128>}, {pipeline_mode = #tpu.pipeline_mode<synchronous>, transform_indices = @transform_1, window_bounds = array<i64: 256, 128>}, {transform_indices = @transform_2, window_bounds = array<i64: 8, 64, 128>}, {transform_indices = @transform_3, window_bounds = array<i64: 1, 2, 128>}]} {
    %c0 = arith.constant 0 : index
    %c0_0 = arith.constant 0 : index
    %c0_1 = arith.constant 0 : index
    %0 = vector.load %arg1[%c0, %c0_0, %c0_1] : memref<8x64x128xf32, #tpu.memory_space<vmem>>, vector<8x64x128xf32>
    %1 = arith.truncf %0 : vector<8x64x128xf32> to vector<8x64x128xbf16>
    %cst = arith.constant 0.000000e+00 : bf16
    %2 = vector.broadcast %cst : bf16 to vector<8x1x128xbf16>
    %3 = vector.extract_strided_slice %1 {offsets = [0, 0, 0], sizes = [8, 63, 128], strides = [1, 1, 1]} : vector<8x64x128xbf16> to vector<8x63x128xbf16>
    %4 = tpu.concatenate %2, %3 in 1 : vector<8x1x128xbf16>, vector<8x63x128xbf16> -> vector<8x64x128xbf16>
    %5 = vector.extract_strided_slice %1 {offsets = [0, 1, 0], sizes = [8, 63, 128], strides = [1, 1, 1]} : vector<8x64x128xbf16> to vector<8x63x128xbf16>
    %6 = tpu.concatenate %5, %2 in 1 : vector<8x63x128xbf16>, vector<8x1x128xbf16> -> vector<8x64x128xbf16>
    %7 = vector.extract_strided_slice %4 {offsets = [0, 0, 64], sizes = [8, 64, 64], strides = [1, 1, 1]} : vector<8x64x128xbf16> to vector<8x64x64xbf16>
    %8 = vector.extract_strided_slice %6 {offsets = [0, 0, 0], sizes = [8, 64, 64], strides = [1, 1, 1]} : vector<8x64x128xbf16> to vector<8x64x64xbf16>
    %9 = tpu.concatenate %7, %1, %8 in 2 : vector<8x64x64xbf16>, vector<8x64x128xbf16>, vector<8x64x64xbf16> -> vector<8x64x256xbf16>
    %10 = vector.shape_cast %9 : vector<8x64x256xbf16> to vector<512x256xbf16>
    %c0_2 = arith.constant 0 : index
    %c0_3 = arith.constant 0 : index
    %11 = vector.load %arg2[%c0_2, %c0_3] : memref<256x128xbf16, #tpu.memory_space<vmem>>, vector<256x128xbf16>
    %cst_4 = arith.constant dense<0.000000e+00> : vector<512x128xf32>
    %12 = tpu.matmul %10, %11, %cst_4 {dimension_numbers = #tpu.dot_dimension_numbers<[1], [0], [0], [1], [0, 0, 1, 1], [], []>} : vector<512x256xbf16>, vector<256x128xbf16>, vector<512x128xf32> -> vector<512x128xf32>
    %13 = vector.shape_cast %12 : vector<512x128xf32> to vector<8x64x128xf32>
    %14 = arith.truncf %13 : vector<8x64x128xf32> to vector<8x64x128xbf16>
    %c0_5 = arith.constant 0 : index
    %c0_6 = arith.constant 0 : index
    %c0_7 = arith.constant 0 : index
    %15 = vector.load %arg3[%c0_5, %c0_6, %c0_7] : memref<8x64x128xbf16, #tpu.memory_space<vmem>>, vector<8x64x128xbf16>
    tpu.vector_store %arg3[%c0_5, %c0_6, %c0_7], %14 {strides = array<i32>} : memref<8x64x128xbf16, #tpu.memory_space<vmem>>, vector<8x64x128xbf16>,
    %cst_8 = arith.constant dense<0.000000e+00> : vector<128xf32>
    %16 = vector.multi_reduction <add>, %12, %cst_8 [0] : vector<512x128xf32> to vector<128xf32>
    %17 = vector.shape_cast %16 : vector<128xf32> to vector<1x128xf32>
    %18 = arith.mulf %12, %12 : vector<512x128xf32>
    %cst_9 = arith.constant dense<0.000000e+00> : vector<128xf32>
    %19 = vector.multi_reduction <add>, %18, %cst_9 [0] : vector<512x128xf32> to vector<128xf32>
    %20 = vector.shape_cast %19 : vector<128xf32> to vector<1x128xf32>
    %21 = tpu.concatenate %17, %20 in 0 : vector<1x128xf32>, vector<1x128xf32> -> vector<2x128xf32>
    %c0_10 = arith.constant 0 : index
    %c0_11 = arith.constant 0 : index
    %c0_12 = arith.constant 0 : index
    %22 = vector.load %arg4[%c0_10, %c0_11, %c0_12] : memref<1x2x128xf32, #tpu.memory_space<vmem>>, vector<1x2x128xf32>
    %23 = vector.shape_cast %22 : vector<1x2x128xf32> to vector<2x128xf32>
    %24 = vector.shape_cast %21 : vector<2x128xf32> to vector<1x2x128xf32>
    tpu.vector_store %arg4[%c0_10, %c0_11, %c0_12], %24 {strides = array<i32>} : memref<1x2x128xf32, #tpu.memory_space<vmem>>, vector<1x2x128xf32>,
    return
  }
  func.func @transform_0(%arg0: i32) -> (i32, i32, i32) {
    %c0_i32 = arith.constant 0 : i32
    %c0_i32_0 = arith.constant 0 : i32
    %c0_i32_1 = arith.constant 0 : i32
    return %arg0, %c0_i32, %c0_i32_0 : i32, i32, i32
  }
  func.func @transform_1(%arg0: i32) -> (i32, i32) {
    %c0_i32 = arith.constant 0 : i32
    %c0_i32_0 = arith.constant 0 : i32
    %c0_i32_1 = arith.constant 0 : i32
    return %c0_i32, %c0_i32_0 : i32, i32
  }
  func.func @transform_2(%arg0: i32) -> (i32, i32, i32) {
    %c0_i32 = arith.constant 0 : i32
    %c0_i32_0 = arith.constant 0 : i32
    %c0_i32_1 = arith.constant 0 : i32
    return %arg0, %c0_i32, %c0_i32_0 : i32, i32, i32
  }
  func.func @transform_3(%arg0: i32) -> (i32, i32, i32) {
    %c0_i32 = arith.constant 0 : i32
    %c0_i32_0 = arith.constant 0 : i32
    %c0_i32_1 = arith.constant 0 : i32
    return %arg0, %c0_i32, %c0_i32_0 : i32, i32, i32
  }
}

module attributes {stable_mosaic.version = 11 : i64} {
  func.func @_bn_add_relu_kernel(%arg0: i32, %arg1: memref<8x64x128xbf16, #tpu.memory_space<vmem>>, %arg2: memref<8x64x128xf32, #tpu.memory_space<vmem>>, %arg3: memref<1x128xf32, #tpu.memory_space<vmem>>, %arg4: memref<1x128xf32, #tpu.memory_space<vmem>>, %arg5: memref<8x64x128xf32, #tpu.memory_space<vmem>>) attributes {dimension_semantics = [#tpu.dimension_semantics<parallel>], iteration_bounds = array<i64: 2>, scalar_prefetch = 0 : i64, scratch_operands = 0 : i64, tpu.core_type = #tpu.core_type<tc>, window_params = [{transform_indices = @transform_0, window_bounds = array<i64: 8, 64, 128>}, {transform_indices = @transform_1, window_bounds = array<i64: 8, 64, 128>}, {pipeline_mode = #tpu.pipeline_mode<synchronous>, transform_indices = @transform_2, window_bounds = array<i64: 1, 128>}, {pipeline_mode = #tpu.pipeline_mode<synchronous>, transform_indices = @transform_3, window_bounds = array<i64: 1, 128>}, {transform_indices = @transform_4, window_bounds = array<i64: 8, 64, 128>}]} {
    %c0 = arith.constant 0 : index
    %c0_0 = arith.constant 0 : index
    %0 = vector.load %arg3[%c0, %c0_0] : memref<1x128xf32, #tpu.memory_space<vmem>>, vector<1x128xf32>
    %1 = vector.shape_cast %0 : vector<1x128xf32> to vector<1x1x128xf32>
    %c0_1 = arith.constant 0 : index
    %c0_2 = arith.constant 0 : index
    %2 = vector.load %arg4[%c0_1, %c0_2] : memref<1x128xf32, #tpu.memory_space<vmem>>, vector<1x128xf32>
    %3 = vector.shape_cast %2 : vector<1x128xf32> to vector<1x1x128xf32>
    %c0_3 = arith.constant 0 : index
    %c0_4 = arith.constant 0 : index
    %c0_5 = arith.constant 0 : index
    %4 = vector.load %arg1[%c0_3, %c0_4, %c0_5] : memref<8x64x128xbf16, #tpu.memory_space<vmem>>, vector<8x64x128xbf16>
    %5 = arith.extf %4 : vector<8x64x128xbf16> to vector<8x64x128xf32>
    %6 = vector.broadcast %1 : vector<1x1x128xf32> to vector<8x64x128xf32>
    %7 = arith.mulf %5, %6 : vector<8x64x128xf32>
    %8 = vector.broadcast %3 : vector<1x1x128xf32> to vector<8x64x128xf32>
    %9 = arith.addf %7, %8 : vector<8x64x128xf32>
    %c0_6 = arith.constant 0 : index
    %c0_7 = arith.constant 0 : index
    %c0_8 = arith.constant 0 : index
    %10 = vector.load %arg2[%c0_6, %c0_7, %c0_8] : memref<8x64x128xf32, #tpu.memory_space<vmem>>, vector<8x64x128xf32>
    %11 = arith.addf %9, %10 : vector<8x64x128xf32>
    %cst = arith.constant 0.000000e+00 : f32
    %12 = vector.broadcast %cst : f32 to vector<8x64x128xf32>
    %13 = arith.maximumf %11, %12 : vector<8x64x128xf32>
    %c0_9 = arith.constant 0 : index
    %c0_10 = arith.constant 0 : index
    %c0_11 = arith.constant 0 : index
    %14 = vector.load %arg5[%c0_9, %c0_10, %c0_11] : memref<8x64x128xf32, #tpu.memory_space<vmem>>, vector<8x64x128xf32>
    tpu.vector_store %arg5[%c0_9, %c0_10, %c0_11], %13 {strides = array<i32>} : memref<8x64x128xf32, #tpu.memory_space<vmem>>, vector<8x64x128xf32>,
    return
  }
  func.func @transform_0(%arg0: i32) -> (i32, i32, i32) {
    %c0_i32 = arith.constant 0 : i32
    %c0_i32_0 = arith.constant 0 : i32
    %c0_i32_1 = arith.constant 0 : i32
    return %arg0, %c0_i32, %c0_i32_0 : i32, i32, i32
  }
  func.func @transform_1(%arg0: i32) -> (i32, i32, i32) {
    %c0_i32 = arith.constant 0 : i32
    %c0_i32_0 = arith.constant 0 : i32
    %c0_i32_1 = arith.constant 0 : i32
    return %arg0, %c0_i32, %c0_i32_0 : i32, i32, i32
  }
  func.func @transform_2(%arg0: i32) -> (i32, i32) {
    %c0_i32 = arith.constant 0 : i32
    %c0_i32_0 = arith.constant 0 : i32
    %c0_i32_1 = arith.constant 0 : i32
    return %c0_i32, %c0_i32_0 : i32, i32
  }
  func.func @transform_3(%arg0: i32) -> (i32, i32) {
    %c0_i32 = arith.constant 0 : i32
    %c0_i32_0 = arith.constant 0 : i32
    %c0_i32_1 = arith.constant 0 : i32
    return %c0_i32, %c0_i32_0 : i32, i32
  }
  func.func @transform_4(%arg0: i32) -> (i32, i32, i32) {
    %c0_i32 = arith.constant 0 : i32
    %c0_i32_0 = arith.constant 0 : i32
    %c0_i32_1 = arith.constant 0 : i32
    return %arg0, %c0_i32, %c0_i32_0 : i32, i32, i32
  }
}

module attributes {stable_mosaic.version = 11 : i64} {
  func.func @_bn_relu_conv2_stats_kernel(%arg0: i32, %arg1: memref<8x64x128xbf16, #tpu.memory_space<vmem>>, %arg2: memref<1x128xf32, #tpu.memory_space<vmem>>, %arg3: memref<1x128xf32, #tpu.memory_space<vmem>>, %arg4: memref<256x128xbf16, #tpu.memory_space<vmem>>, %arg5: memref<8x64x128xbf16, #tpu.memory_space<vmem>>, %arg6: memref<1x2x128xf32, #tpu.memory_space<vmem>>) attributes {dimension_semantics = [#tpu.dimension_semantics<parallel>], iteration_bounds = array<i64: 2>, scalar_prefetch = 0 : i64, scratch_operands = 0 : i64, tpu.core_type = #tpu.core_type<tc>, window_params = [{transform_indices = @transform_0, window_bounds = array<i64: 8, 64, 128>}, {pipeline_mode = #tpu.pipeline_mode<synchronous>, transform_indices = @transform_1, window_bounds = array<i64: 1, 128>}, {pipeline_mode = #tpu.pipeline_mode<synchronous>, transform_indices = @transform_2, window_bounds = array<i64: 1, 128>}, {pipeline_mode = #tpu.pipeline_mode<synchronous>, transform_indices = @transform_3, window_bounds = array<i64: 256, 128>}, {transform_indices = @transform_4, window_bounds = array<i64: 8, 64, 128>}, {transform_indices = @transform_5, window_bounds = array<i64: 1, 2, 128>}]} {
    %c0 = arith.constant 0 : index
    %c0_0 = arith.constant 0 : index
    %0 = vector.load %arg2[%c0, %c0_0] : memref<1x128xf32, #tpu.memory_space<vmem>>, vector<1x128xf32>
    %1 = vector.shape_cast %0 : vector<1x128xf32> to vector<1x1x128xf32>
    %c0_1 = arith.constant 0 : index
    %c0_2 = arith.constant 0 : index
    %2 = vector.load %arg3[%c0_1, %c0_2] : memref<1x128xf32, #tpu.memory_space<vmem>>, vector<1x128xf32>
    %3 = vector.shape_cast %2 : vector<1x128xf32> to vector<1x1x128xf32>
    %c0_3 = arith.constant 0 : index
    %c0_4 = arith.constant 0 : index
    %c0_5 = arith.constant 0 : index
    %4 = vector.load %arg1[%c0_3, %c0_4, %c0_5] : memref<8x64x128xbf16, #tpu.memory_space<vmem>>, vector<8x64x128xbf16>
    %5 = arith.extf %4 : vector<8x64x128xbf16> to vector<8x64x128xf32>
    %6 = vector.broadcast %1 : vector<1x1x128xf32> to vector<8x64x128xf32>
    %7 = arith.mulf %5, %6 : vector<8x64x128xf32>
    %8 = vector.broadcast %3 : vector<1x1x128xf32> to vector<8x64x128xf32>
    %9 = arith.addf %7, %8 : vector<8x64x128xf32>
    %cst = arith.constant 0.000000e+00 : f32
    %10 = vector.broadcast %cst : f32 to vector<8x64x128xf32>
    %11 = arith.maximumf %9, %10 : vector<8x64x128xf32>
    %12 = arith.truncf %11 : vector<8x64x128xf32> to vector<8x64x128xbf16>
    %cst_6 = arith.constant 0.000000e+00 : bf16
    %13 = vector.broadcast %cst_6 : bf16 to vector<8x1x128xbf16>
    %14 = vector.extract_strided_slice %12 {offsets = [0, 0, 0], sizes = [8, 63, 128], strides = [1, 1, 1]} : vector<8x64x128xbf16> to vector<8x63x128xbf16>
    %15 = tpu.concatenate %13, %14 in 1 : vector<8x1x128xbf16>, vector<8x63x128xbf16> -> vector<8x64x128xbf16>
    %16 = vector.extract_strided_slice %12 {offsets = [0, 1, 0], sizes = [8, 63, 128], strides = [1, 1, 1]} : vector<8x64x128xbf16> to vector<8x63x128xbf16>
    %17 = tpu.concatenate %16, %13 in 1 : vector<8x63x128xbf16>, vector<8x1x128xbf16> -> vector<8x64x128xbf16>
    %18 = vector.extract_strided_slice %15 {offsets = [0, 0, 64], sizes = [8, 64, 64], strides = [1, 1, 1]} : vector<8x64x128xbf16> to vector<8x64x64xbf16>
    %19 = vector.extract_strided_slice %17 {offsets = [0, 0, 0], sizes = [8, 64, 64], strides = [1, 1, 1]} : vector<8x64x128xbf16> to vector<8x64x64xbf16>
    %20 = tpu.concatenate %18, %12, %19 in 2 : vector<8x64x64xbf16>, vector<8x64x128xbf16>, vector<8x64x64xbf16> -> vector<8x64x256xbf16>
    %21 = vector.shape_cast %20 : vector<8x64x256xbf16> to vector<512x256xbf16>
    %c0_7 = arith.constant 0 : index
    %c0_8 = arith.constant 0 : index
    %22 = vector.load %arg4[%c0_7, %c0_8] : memref<256x128xbf16, #tpu.memory_space<vmem>>, vector<256x128xbf16>
    %cst_9 = arith.constant dense<0.000000e+00> : vector<512x128xf32>
    %23 = tpu.matmul %21, %22, %cst_9 {dimension_numbers = #tpu.dot_dimension_numbers<[1], [0], [0], [1], [0, 0, 1, 1], [], []>} : vector<512x256xbf16>, vector<256x128xbf16>, vector<512x128xf32> -> vector<512x128xf32>
    %24 = vector.shape_cast %23 : vector<512x128xf32> to vector<8x64x128xf32>
    %25 = arith.truncf %24 : vector<8x64x128xf32> to vector<8x64x128xbf16>
    %c0_10 = arith.constant 0 : index
    %c0_11 = arith.constant 0 : index
    %c0_12 = arith.constant 0 : index
    %26 = vector.load %arg5[%c0_10, %c0_11, %c0_12] : memref<8x64x128xbf16, #tpu.memory_space<vmem>>, vector<8x64x128xbf16>
    tpu.vector_store %arg5[%c0_10, %c0_11, %c0_12], %25 {strides = array<i32>} : memref<8x64x128xbf16, #tpu.memory_space<vmem>>, vector<8x64x128xbf16>,
    %cst_13 = arith.constant dense<0.000000e+00> : vector<128xf32>
    %27 = vector.multi_reduction <add>, %23, %cst_13 [0] : vector<512x128xf32> to vector<128xf32>
    %28 = vector.shape_cast %27 : vector<128xf32> to vector<1x128xf32>
    %29 = arith.mulf %23, %23 : vector<512x128xf32>
    %cst_14 = arith.constant dense<0.000000e+00> : vector<128xf32>
    %30 = vector.multi_reduction <add>, %29, %cst_14 [0] : vector<512x128xf32> to vector<128xf32>
    %31 = vector.shape_cast %30 : vector<128xf32> to vector<1x128xf32>
    %32 = tpu.concatenate %28, %31 in 0 : vector<1x128xf32>, vector<1x128xf32> -> vector<2x128xf32>
    %c0_15 = arith.constant 0 : index
    %c0_16 = arith.constant 0 : index
    %c0_17 = arith.constant 0 : index
    %33 = vector.load %arg6[%c0_15, %c0_16, %c0_17] : memref<1x2x128xf32, #tpu.memory_space<vmem>>, vector<1x2x128xf32>
    %34 = vector.shape_cast %33 : vector<1x2x128xf32> to vector<2x128xf32>
    %35 = vector.shape_cast %32 : vector<2x128xf32> to vector<1x2x128xf32>
    tpu.vector_store %arg6[%c0_15, %c0_16, %c0_17], %35 {strides = array<i32>} : memref<1x2x128xf32, #tpu.memory_space<vmem>>, vector<1x2x128xf32>,
    return
  }
  func.func @transform_0(%arg0: i32) -> (i32, i32, i32) {
    %c0_i32 = arith.constant 0 : i32
    %c0_i32_0 = arith.constant 0 : i32
    %c0_i32_1 = arith.constant 0 : i32
    return %arg0, %c0_i32, %c0_i32_0 : i32, i32, i32
  }
  func.func @transform_1(%arg0: i32) -> (i32, i32) {
    %c0_i32 = arith.constant 0 : i32
    %c0_i32_0 = arith.constant 0 : i32
    %c0_i32_1 = arith.constant 0 : i32
    return %c0_i32, %c0_i32_0 : i32, i32
  }
  func.func @transform_2(%arg0: i32) -> (i32, i32) {
    %c0_i32 = arith.constant 0 : i32
    %c0_i32_0 = arith.constant 0 : i32
    %c0_i32_1 = arith.constant 0 : i32
    return %c0_i32, %c0_i32_0 : i32, i32
  }
  func.func @transform_3(%arg0: i32) -> (i32, i32) {
    %c0_i32 = arith.constant 0 : i32
    %c0_i32_0 = arith.constant 0 : i32
    %c0_i32_1 = arith.constant 0 : i32
    return %c0_i32, %c0_i32_0 : i32, i32
  }
  func.func @transform_4(%arg0: i32) -> (i32, i32, i32) {
    %c0_i32 = arith.constant 0 : i32
    %c0_i32_0 = arith.constant 0 : i32
    %c0_i32_1 = arith.constant 0 : i32
    return %arg0, %c0_i32, %c0_i32_0 : i32, i32, i32
  }
  func.func @transform_5(%arg0: i32) -> (i32, i32, i32) {
    %c0_i32 = arith.constant 0 : i32
    %c0_i32_0 = arith.constant 0 : i32
    %c0_i32_1 = arith.constant 0 : i32
    return %arg0, %c0_i32, %c0_i32_0 : i32, i32, i32
  }
}

</mosaic_0001>

<llo_original>
// kernel: tile.23
$region0: #{tile.23}
  #allocation0 [shape = 's32[1]{0}', space=sflag, size = 0x4, scoped, tag = 'scoped memory for tile.23']
  %s0 = inlined_call_operand.vmem [shape: f32[32], index: 0, kind: input, shape index: {}]
  %s1 = inlined_call_operand.vmem [shape: f32[4,32], index: 1, kind: output, shape index: {}]
  // Predicated region
  $region2: #{tile.23} parent=0 // pred_check
    _
  $region3: #{tile.23} parent=0 // pred_check_branch
    %3 = sbr.rel (0) target = $region5
  $region4: #{tile.23} parent=0 // pred_region
    _
  $region5: #{tile.23} parent=0 // pred_fallthru
    _
  %v4 = vld [vmem:[%s0] ss:$0 sm:$0xff]
  %5 = vst [vmem:[%s1] sm:$0xf] %v4

// kernel: tile.24
$region0: #{tile.24}
  %s0 = inlined_call_operand.vmem [shape: f32[4,32], index: 0, kind: input, shape index: {}]
  %s1 = inlined_call_operand.vmem [shape: f32[1,128], index: 1, kind: output, shape index: {}]
  $region1: #{tile.24} parent=0
    #allocation0 [shape = 'u8[4096]{0}', space=vmem, size = 0x1000, scoped, tag = 'scoped mem for output reshape']
    #allocation1 [shape = 'u8[4096]{0}', space=vmem, size = 0x1000, scoped, tag = 'scoped mem for input reshape']
    %s3 = sshllo.u32 0, 4
    %v4 = vld [vmem:[%s0] sm:%s3]
    %5 = vst [vmem:[#allocation1] sm:%s3] %v4
    %v6 = vld [vmem:[#allocation1] sm:$0x1]
    %vm7 = vcmask 261120
    %8 = vst.msk [vmem:[#allocation0] sm:$0x1] %vm7, %v6
    %s9 = scalar_lea.vmem [#allocation1], 3
    %v10 = vld [vmem:[%s9] sm:$0x1]
    %11 = vrot.lane.b32.xlu0 %v10, 96
    %v12 = vpop.permute.xlu0 %11
    %vm13 = vcmask 1048320
    %14 = vst.msk [vmem:[#allocation0] sm:$0x1] %vm13, %v12
    %s15 = scalar_lea.vmem [#allocation1], 2
    %v16 = vld [vmem:[%s15] sm:$0x1]
    %17 = vrot.lane.b32.xlu0 %v16, 64
    %v18 = vpop.permute.xlu0 %17
    %vm19 = vcmask 785920
    %20 = vst.msk [vmem:[#allocation0] sm:$0x1] %vm19, %v18
    %s21 = scalar_lea.vmem [#allocation1], 1
    %v22 = vld [vmem:[%s21] sm:$0x1]
    %23 = vrot.lane.b32.xlu0 %v22, 32
    %v24 = vpop.permute.xlu0 %23
    %vm25 = vcmask 523520
    %26 = vst.msk [vmem:[#allocation0] sm:$0x1] %vm25, %v24
    %s28 = sshllo.u32 0, 1
    %v30 = vld [vmem:[#allocation0] sm:%s28]
    %s31 = sshllo.u32 0, 1
    %32 = vst [vmem:[%s1] sm:%s31] %v30

// kernel: basic_block.5
$region0: #{basic_block.5}
  #allocation0 [shape = 'u32[]', space=smem, size = 0x4, offset = 0x4, fixed_abs, tag = 'smem constant byte address 0x4 - core index']
  #allocation1 [shape = 'u32[144,128]{1,0:T(1,128)}', space=vmem, size = 0x12000, scoped, tag = 'internal scratch']
  %s0 = inlined_call_operand.vmem [shape: bf16[16,64,128], index: 0, kind: input, shape index: {}]
  %s1 = inlined_call_operand.vmem [shape: f32[16,64,128], index: 1, kind: input, shape index: {}]
  %s2 = inlined_call_operand.vmem [shape: f32[1,128], index: 2, kind: input, shape index: {}]
  %s3 = inlined_call_operand.vmem [shape: f32[1,128], index: 3, kind: input, shape index: {}]
  %s4 = inlined_call_operand.vmem [shape: f32[16,64,128], index: 4, kind: output, shape index: {}]
  %s5 = sld [smem:[#allocation0]]
  $region49: #{basic_block.5} parent=0
    _
  %s7 = ssub.s32 1, %s5
  %s8 = scalar_select 0, %s7, %s5
  loop: start=0, step=1, limit=4
  $region2: #{basic_block.5} parent=0 // loop_pre_header
    _
  $region3: #{basic_block.5} parent=0 // loop_header
    %s10 = sphi 0, %s14
    %p11 = scmp.ge.s32.totalorder %s10, 4
    %s20 = sphi 0, %s22
    %s23 = sphi 0, %s20
    %s24 = sphi 0, %s23
    %s40 = sphi 0, %s24
    %s46 = sphi 0, %s48
    %s49 = sphi 0, %s46
    %s50 = sphi 0, %s49
    %s66 = sphi 0, %s50
    %s70 = sphi 0, %s70
    %s72 = sphi 0, %s70
    %s73 = sphi 0, %s72
    %s87 = sphi 0, %s73
    %s91 = sphi 0, %s91
    %s93 = sphi 0, %s91
    %s94 = sphi 0, %s93
    %s108 = sphi 0, %s94
    %s114 = sphi 0, %s116
    %s117 = sphi 0, %s114
    %s118 = sphi 0, %s117
    %s134 = sphi 0, %s118
  $region4: #{basic_block.5} parent=0 // loop_header_branch
    %13 = sbr.rel (%p11) target = $region8
  $region5: #{basic_block.5} parent=0 // loop_body
    %s15 = ssub.s32 %s10, 1
    %s16 = ssub.s32 %s10, 2
    %s17 = sadd.s32 %s10, 1
    %s18 = ssub.s32 %s10, %s17
    %p19 = scmp.eq.s32.totalorder %s18, 0
    %s21 = sadd.s32 %s20, 1
    %s22 = scalar_select %p19, %s20, %s21
    %p25 = pneg %p19
    %p26 = scmp.eq.s32.totalorder %s10, 1
    %p27 = por %p25, %p26
    %p28 = scmp.ne.s32.totalorder %s20, %s23
    %p29 = scmp.eq.s32.totalorder %s10, 0
    %p30 = por %p28, %p29
    %p31 = scmp.ne.s32.totalorder %s20, %s23
    %p32 = scmp.eq.s32.totalorder %s15, 1
    %p33 = por %p31, %p32
    %p34 = scmp.ne.s32.totalorder %s23, %s24
    %p35 = scmp.eq.s32.totalorder %s15, 0
    %p36 = por %p34, %p35
    %p37 = scmp.ne.s32.totalorder %s23, %s24
    %p38 = scmp.eq.s32.totalorder %s16, 1
    %p39 = por %p37, %p38
    %p41 = scmp.ne.s32.totalorder %s24, %s40
    %p42 = scmp.eq.s32.totalorder %s16, 0
    %p43 = por %p41, %p42
    %s44 = ssub.s32 %s10, %s17
    %p45 = scmp.eq.s32.totalorder %s44, 0
    %s47 = sadd.s32 %s46, 1
    %s48 = scalar_select %p45, %s46, %s47
    %p51 = pneg %p45
    %p52 = scmp.eq.s32.totalorder %s10, 1
    %p53 = por %p51, %p52
    %p54 = scmp.ne.s32.totalorder %s46, %s49
    %p55 = scmp.eq.s32.totalorder %s10, 0
    %p56 = por %p54, %p55
    %p57 = scmp.ne.s32.totalorder %s46, %s49
    %p58 = scmp.eq.s32.totalorder %s15, 1
    %p59 = por %p57, %p58
    %p60 = scmp.ne.s32.totalorder %s49, %s50
    %p61 = scmp.eq.s32.totalorder %s15, 0
    %p62 = por %p60, %p61
    %p63 = scmp.ne.s32.totalorder %s49, %s50
    %p64 = scmp.eq.s32.totalorder %s16, 1
    %p65 = por %p63, %p64
    %p67 = scmp.ne.s32.totalorder %s50, %s66
    %p68 = scmp.eq.s32.totalorder %s16, 0
    %p69 = por %p67, %p68
    %s71 = sadd.s32 %s70, 1
    %p74 = scmp.eq.s32.totalorder %s10, 1
    %p75 = scmp.ne.s32.totalorder %s70, %s72
    %p76 = scmp.eq.s32.totalorder %s10, 0
    %p77 = por %p75, %p76
    %p78 = scmp.ne.s32.totalorder %s70, %s72
    %p79 = scmp.eq.s32.totalorder %s15, 1
    %p80 = por %p78, %p79
    %p81 = scmp.ne.s32.totalorder %s72, %s73
    %p82 = scmp.eq.s32.totalorder %s15, 0
    %p83 = por %p81, %p82
    %p84 = scmp.ne.s32.totalorder %s72, %s73
    %p85 = scmp.eq.s32.totalorder %s16, 1
    %p86 = por %p84, %p85
    %p88 = scmp.ne.s32.totalorder %s73, %s87
    %p89 = scmp.eq.s32.totalorder %s16, 0
    %p90 = por %p88, %p89
    %s92 = sadd.s32 %s91, 1
    %p95 = scmp.eq.s32.totalorder %s10, 1
    %p96 = scmp.ne.s32.totalorder %s91, %s93
    %p97 = scmp.eq.s32.totalorder %s10, 0
    %p98 = por %p96, %p97
    %p99 = scmp.ne.s32.totalorder %s91, %s93
    %p100 = scmp.eq.s32.totalorder %s15, 1
    %p101 = por %p99, %p100
    %p102 = scmp.ne.s32.totalorder %s93, %s94
    %p103 = scmp.eq.s32.totalorder %s15, 0
    %p104 = por %p102, %p103
    %p105 = scmp.ne.s32.totalorder %s93, %s94
    %p106 = scmp.eq.s32.totalorder %s16, 1
    %p107 = por %p105, %p106
    %p109 = scmp.ne.s32.totalorder %s94, %s108
    %p110 = scmp.eq.s32.totalorder %s16, 0
    %p111 = por %p109, %p110
    %s112 = ssub.s32 %s10, %s17
    %p113 = scmp.eq.s32.totalorder %s112, 0
    %s115 = sadd.s32 %s114, 1
    %s116 = scalar_select %p113, %s114, %s115
    %p119 = pneg %p113
    %p120 = scmp.eq.s32.totalorder %s10, 1
    %p121 = por %p119, %p120
    %p122 = scmp.ne.s32.totalorder %s114, %s117
    %p123 = scmp.eq.s32.totalorder %s10, 0
    %p124 = por %p122, %p123
    %p125 = scmp.ne.s32.totalorder %s114, %s117
    %p126 = scmp.eq.s32.totalorder %s15, 1
    %p127 = por %p125, %p126
    %p128 = scmp.ne.s32.totalorder %s117, %s118
    %p129 = scmp.eq.s32.totalorder %s15, 0
    %p130 = por %p128, %p129
    %p131 = scmp.ne.s32.totalorder %s117, %s118
    %p132 = scmp.eq.s32.totalorder %s16, 1
    %p133 = por %p131, %p132
    %p135 = scmp.ne.s32.totalorder %s118, %s134
    %p136 = scmp.eq.s32.totalorder %s16, 0
    %p137 = por %p135, %p136
    %p138 = scmp.le.s32.totalorder 1, %s10
    %p139 = scmp.lt.s32.totalorder %s10, 3
    %p140 = pnand %p138, %p139
    %p141 = pneg %p140
    // Predicated region
    $region9: #{basic_block.5} parent=5 // pred_check
      _
    $region10: #{basic_block.5} parent=5 // pred_check_branch
      %143 = sbr.rel (%p140) target = $region12
    $region11: #{basic_block.5} parent=5 // pred_region
      %s144 = ssub.s32 %s10, 1
      // Predicated region
      $region13: #{basic_block.5} parent=11 // pred_check
        %p145 = pneg %p83
      $region14: #{basic_block.5} parent=11 // pred_check_branch
        %147 = sbr.rel (%p145) target = $region16
      $region15: #{basic_block.5} parent=11 // pred_region
        _
      $region16: #{basic_block.5} parent=11 // pred_fallthru
        _
      // Predicated region
      $region17: #{basic_block.5} parent=11 // pred_check
        %p148 = pneg %p104
      $region18: #{basic_block.5} parent=11 // pred_check_branch
        %150 = sbr.rel (%p148) target = $region20
      $region19: #{basic_block.5} parent=11 // pred_region
        _
      $region20: #{basic_block.5} parent=11 // pred_fallthru
        _
    $region12: #{basic_block.5} parent=5 // pred_fallthru
      _
    %p151 = scmp.lt.s32.totalorder %s10, 2
    // Predicated region
    $region21: #{basic_block.5} parent=5 // pred_check
      %p152 = pneg %p151
    $region22: #{basic_block.5} parent=5 // pred_check_branch
      %154 = sbr.rel (%p152) target = $region24
    $region23: #{basic_block.5} parent=5 // pred_region
      // Predicated region
      $region25: #{basic_block.5} parent=23 // pred_check
        %p155 = pneg %p30
      $region26: #{basic_block.5} parent=23 // pred_check_branch
        %157 = sbr.rel (%p155) target = $region28
      $region27: #{basic_block.5} parent=23 // pred_region
        %s158 = smul.u32 8, %s10
        %p159 = scmp.lt.s32.totalorder %s158, 15
        %s160 = scalar_select %p159, %s158, 15
        %s161 = smul.addr %s160, 8
        %s162 = smul.addr %s161, 4
        %s163 = scalar_lea.vmem %s0, %s162
        %s164 = smul.u32 8, %s10
      $region28: #{basic_block.5} parent=23 // pred_fallthru
        _
      // Predicated region
      $region29: #{basic_block.5} parent=23 // pred_check
        %p165 = pneg %p56
      $region30: #{basic_block.5} parent=23 // pred_check_branch
        %167 = sbr.rel (%p165) target = $region32
      $region31: #{basic_block.5} parent=23 // pred_region
        %s168 = smul.u32 8, %s10
        %p169 = scmp.lt.s32.totalorder %s168, 15
        %s170 = scalar_select %p169, %s168, 15
        %s171 = smul.addr %s170, 8
        %s172 = smul.addr %s171, 8
        %s173 = scalar_lea.vmem %s1, %s172
        %s174 = smul.u32 8, %s10
      $region32: #{basic_block.5} parent=23 // pred_fallthru
        _
    $region24: #{basic_block.5} parent=5 // pred_fallthru
      _
    %p175 = scmp.le.s32.totalorder 1, %s10
    %p176 = scmp.lt.s32.totalorder %s10, 3
    %p177 = pnand %p175, %p176
    %p178 = pneg %p177
    // Predicated region
    $region33: #{basic_block.5} parent=5 // pred_check
      _
    $region34: #{basic_block.5} parent=5 // pred_check_branch
      %180 = sbr.rel (%p177) target = $region36
    $region35: #{basic_block.5} parent=5 // pred_region
      %s181 = ssub.s32 %s10, 1
      %s182 = smul.u32 8, %s15
      %p183 = scmp.lt.s32.totalorder %s182, 15
      %s184 = scalar_select %p183, %s182, 15
      %s185 = smul.addr %s184, 8
      %s186 = smul.addr %s185, 4
      %s187 = scalar_lea.vmem %s0, %s186
      %p188 = pneg %p36
      %p189 = pneg %p33
      %s190 = smul.u32 8, %s15
      %p191 = scmp.lt.s32.totalorder %s190, 15
      %s192 = scalar_select %p191, %s190, 15
      %s193 = smul.addr %s192, 8
      %s194 = smul.addr %s193, 8
      %s195 = scalar_lea.vmem %s1, %s194
      %p196 = pneg %p62
      %p197 = pneg %p59
      %p198 = pneg %p83
      %p199 = pneg %p80
      %p200 = pneg %p104
      %p201 = pneg %p101
      %p202 = pneg %p130
      %p203 = pneg %p127
      %s204 = smul.u32 8, %s15
      %p205 = scmp.lt.s32.totalorder %s204, 15
      %s206 = scalar_select %p205, %s204, 15
      %s207 = smul.addr %s206, 8
      %s208 = smul.addr %s207, 8
      %s209 = scalar_lea.vmem %s4, %s208
      %s210 = smul.u32 8, %s15
      %p211 = scmp.lt.s32.totalorder %s210, 15
      %s212 = scalar_select %p211, %s210, 15
      %s213 = smul.addr %s212, 8
      %s214 = smul.addr %s213, 4
      %s215 = scalar_lea.vmem %s0, %s214
      %s216 = smul.u32 8, %s15
      %s217 = smul.u32 8, %s15
      %p218 = scmp.lt.s32.totalorder %s217, 15
      %s219 = scalar_select %p218, %s217, 15
      %s220 = smul.addr %s219, 8
      %s221 = smul.addr %s220, 8
      %s222 = scalar_lea.vmem %s1, %s221
      %s223 = smul.u32 8, %s15
      %s224 = smul.u32 8, %s15
      %p225 = scmp.lt.s32.totalorder %s224, 15
      %s226 = scalar_select %p225, %s224, 15
      %s227 = smul.addr %s226, 8
      %s228 = smul.addr %s227, 8
      %s229 = scalar_lea.vmem %s4, %s228
      %s230 = smul.u32 8, %s15
      %v231 = vld [vmem:[%s2] sm:$0x1]
      %v232 = vld [vmem:[%s3] sm:$0x1]
      %v233 = vld [vmem:[%s215] sm:$0xf]
      %v234 = vld [vmem:[%s215 + $0x4] sm:$0xf]
      %v235 = vld [vmem:[%s215 + $0x8] sm:$0xf]
      %v236 = vld [vmem:[%s215 + $0xc] sm:$0xf]
      %v237 = vld [vmem:[%s215 + $0x10] sm:$0xf]
      %v238 = vld [vmem:[%s215 + $0x14] sm:$0xf]
      %v239 = vld [vmem:[%s215 + $0x18] sm:$0xf]
      %v240 = vld [vmem:[%s215 + $0x1c] sm:$0xf]
      %v241 = vld [vmem:[%s215 + $0x20] sm:$0xf]
      %v242 = vld [vmem:[%s215 + $0x24] sm:$0xf]
      %v243 = vld [vmem:[%s215 + $0x28] sm:$0xf]
      %v244 = vld [vmem:[%s215 + $0x2c] sm:$0xf]
      %v245 = vld [vmem:[%s215 + $0x30] sm:$0xf]
      %v246 = vld [vmem:[%s215 + $0x34] sm:$0xf]
      %v247 = vld [vmem:[%s215 + $0x38] sm:$0xf]
      %v248 = vld [vmem:[%s215 + $0x3c] sm:$0xf]
      %v249 = vld [vmem:[%s215 + $0x40] sm:$0xf]
      %v250 = vld [vmem:[%s215 + $0x44] sm:$0xf]
      %v251 = vld [vmem:[%s215 + $0x48] sm:$0xf]
      %v252 = vld [vmem:[%s215 + $0x4c] sm:$0xf]
      %v253 = vld [vmem:[%s215 + $0x50] sm:$0xf]
      %v254 = vld [vmem:[%s215 + $0x54] sm:$0xf]
      %v255 = vld [vmem:[%s215 + $0x58] sm:$0xf]
      %v256 = vld [vmem:[%s215 + $0x5c] sm:$0xf]
      %v257 = vld [vmem:[%s215 + $0x60] sm:$0xf]
      %v258 = vld [vmem:[%s215 + $0x64] sm:$0xf]
      %v259 = vld [vmem:[%s215 + $0x68] sm:$0xf]
      %v260 = vld [vmem:[%s215 + $0x6c] sm:$0xf]
      %v261 = vld [vmem:[%s215 + $0x70] sm:$0xf]
      %v262 = vld [vmem:[%s215 + $0x74] sm:$0xf]
      %v263 = vld [vmem:[%s215 + $0x78] sm:$0xf]
      %v264 = vld [vmem:[%s215 + $0x7c] sm:$0xf]
      %v265 = vld [vmem:[%s215 + $0x80] sm:$0xf]
      %v266 = vld [vmem:[%s215 + $0x84] sm:$0xf]
      %v267 = vld [vmem:[%s215 + $0x88] sm:$0xf]
      %v268 = vld [vmem:[%s215 + $0x8c] sm:$0xf]
      %v269 = vld [vmem:[%s215 + $0x90] sm:$0xf]
      %v270 = vld [vmem:[%s215 + $0x94] sm:$0xf]
      %v271 = vld [vmem:[%s215 + $0x98] sm:$0xf]
      %v272 = vld [vmem:[%s215 + $0x9c] sm:$0xf]
      %v273 = vld [vmem:[%s215 + $0xa0] sm:$0xf]
      %v274 = vld [vmem:[%s215 + $0xa4] sm:$0xf]
      %v275 = vld [vmem:[%s215 + $0xa8] sm:$0xf]
      %v276 = vld [vmem:[%s215 + $0xac] sm:$0xf]
      %v277 = vld [vmem:[%s215 + $0xb0] sm:$0xf]
      %v278 = vld [vmem:[%s215 + $0xb4] sm:$0xf]
      %v279 = vld [vmem:[%s215 + $0xb8] sm:$0xf]
      %v280 = vld [vmem:[%s215 + $0xbc] sm:$0xf]
      %v281 = vld [vmem:[%s215 + $0xc0] sm:$0xf]
      %v282 = vld [vmem:[%s215 + $0xc4] sm:$0xf]
      %v283 = vld [vmem:[%s215 + $0xc8] sm:$0xf]
      %v284 = vld [vmem:[%s215 + $0xcc] sm:$0xf]
      %v285 = vld [vmem:[%s215 + $0xd0] sm:$0xf]
      %v286 = vld [vmem:[%s215 + $0xd4] sm:$0xf]
      %v287 = vld [vmem:[%s215 + $0xd8] sm:$0xf]
      %v288 = vld [vmem:[%s215 + $0xdc] sm:$0xf]
      %v289 = vld [vmem:[%s215 + $0xe0] sm:$0xf]
      %v290 = vld [vmem:[%s215 + $0xe4] sm:$0xf]
      %v291 = vld [vmem:[%s215 + $0xe8] sm:$0xf]
      %v292 = vld [vmem:[%s215 + $0xec] sm:$0xf]
      %v293 = vld [vmem:[%s215 + $0xf0] sm:$0xf]
      %v294 = vld [vmem:[%s215 + $0xf4] sm:$0xf]
      %v295 = vld [vmem:[%s215 + $0xf8] sm:$0xf]
      %v296 = vld [vmem:[%s215 + $0xfc] sm:$0xf]
      %v297 = vunpack.c.l.bf16 %v233
      %v298 = vunpack.c.l.bf16 %v234
      %v299 = vunpack.c.l.bf16 %v235
      %v300 = vunpack.c.l.bf16 %v236
      %v301 = vunpack.c.l.bf16 %v237
      %v302 = vunpack.c.l.bf16 %v238
      %v303 = vunpack.c.l.bf16 %v239
      %v304 = vunpack.c.l.bf16 %v240
      %v305 = vunpack.c.l.bf16 %v241
      %v306 = vunpack.c.l.bf16 %v242
      %v307 = vunpack.c.l.bf16 %v243
      %v308 = vunpack.c.l.bf16 %v244
      %v309 = vunpack.c.l.bf16 %v245
      %v310 = vunpack.c.l.bf16 %v246
      %v311 = vunpack.c.l.bf16 %v247
      %v312 = vunpack.c.l.bf16 %v248
      %v313 = vunpack.c.l.bf16 %v249
      %v314 = vunpack.c.l.bf16 %v250
      %v315 = vunpack.c.l.bf16 %v251
      %v316 = vunpack.c.l.bf16 %v252
      %v317 = vunpack.c.l.bf16 %v253
      %v318 = vunpack.c.l.bf16 %v254
      %v319 = vunpack.c.l.bf16 %v255
      %v320 = vunpack.c.l.bf16 %v256
      %v321 = vunpack.c.l.bf16 %v257
      %v322 = vunpack.c.l.bf16 %v258
      %v323 = vunpack.c.l.bf16 %v259
      %v324 = vunpack.c.l.bf16 %v260
      %v325 = vunpack.c.l.bf16 %v261
      %v326 = vunpack.c.l.bf16 %v262
      %v327 = vunpack.c.l.bf16 %v263
      %v328 = vunpack.c.l.bf16 %v264
      %v329 = vunpack.c.l.bf16 %v265
      %v330 = vunpack.c.l.bf16 %v266
      %v331 = vunpack.c.l.bf16 %v267
      %v332 = vunpack.c.l.bf16 %v268
      %v333 = vunpack.c.l.bf16 %v269
      %v334 = vunpack.c.l.bf16 %v270
      %v335 = vunpack.c.l.bf16 %v271
      %v336 = vunpack.c.l.bf16 %v272
      %v337 = vunpack.c.l.bf16 %v273
      %v338 = vunpack.c.l.bf16 %v274
      %v339 = vunpack.c.l.bf16 %v275
      %v340 = vunpack.c.l.bf16 %v276
      %v341 = vunpack.c.l.bf16 %v277
      %v342 = vunpack.c.l.bf16 %v278
      %v343 = vunpack.c.l.bf16 %v279
      %v344 = vunpack.c.l.bf16 %v280
      %v345 = vunpack.c.l.bf16 %v281
      %v346 = vunpack.c.l.bf16 %v282
      %v347 = vunpack.c.l.bf16 %v283
      %v348 = vunpack.c.l.bf16 %v284
      %v349 = vunpack.c.l.bf16 %v285
      %v350 = vunpack.c.l.bf16 %v286
      %v351 = vunpack.c.l.bf16 %v287
      %v352 = vunpack.c.l.bf16 %v288
      %v353 = vunpack.c.l.bf16 %v289
      %v354 = vunpack.c.l.bf16 %v290
      %v355 = vunpack.c.l.bf16 %v291
      %v356 = vunpack.c.l.bf16 %v292
      %v357 = vunpack.c.l.bf16 %v293
      %v358 = vunpack.c.l.bf16 %v294
      %v359 = vunpack.c.l.bf16 %v295
      %v360 = vunpack.c.l.bf16 %v296
      %v362 = vlaneseq
      %v363 = vshrl.u32 %v362, 7
      %v364 = vsub.s32 0, %v363
      %v365 = vrot.slane %v231, %v364
      %v367 = vmul.f32 %v297, %v365
      %v368 = vmul.f32 %v298, %v365
      %v369 = vmul.f32 %v299, %v365
      %v370 = vmul.f32 %v300, %v365
      %v371 = vmul.f32 %v301, %v365
      %v372 = vmul.f32 %v302, %v365
      %v373 = vmul.f32 %v303, %v365
      %v374 = vmul.f32 %v304, %v365
      %v375 = vmul.f32 %v305, %v365
      %v376 = vmul.f32 %v306, %v365
      %v377 = vmul.f32 %v307, %v365
      %v378 = vmul.f32 %v308, %v365
      %v379 = vmul.f32 %v309, %v365
      %v380 = vmul.f32 %v310, %v365
      %v381 = vmul.f32 %v311, %v365
      %v382 = vmul.f32 %v312, %v365
      %v383 = vmul.f32 %v313, %v365
      %v384 = vmul.f32 %v314, %v365
      %v385 = vmul.f32 %v315, %v365
      %v386 = vmul.f32 %v316, %v365
      %v387 = vmul.f32 %v317, %v365
      %v388 = vmul.f32 %v318, %v365
      %v389 = vmul.f32 %v319, %v365
      %v390 = vmul.f32 %v320, %v365
      %v391 = vmul.f32 %v321, %v365
      %v392 = vmul.f32 %v322, %v365
      %v393 = vmul.f32 %v323, %v365
      %v394 = vmul.f32 %v324, %v365
      %v395 = vmul.f32 %v325, %v365
      %v396 = vmul.f32 %v326, %v365
      %v397 = vmul.f32 %v327, %v365
      %v398 = vmul.f32 %v328, %v365
      %v399 = vmul.f32 %v329, %v365
      %v400 = vmul.f32 %v330, %v365
      %v401 = vmul.f32 %v331, %v365
      %v402 = vmul.f32 %v332, %v365
      %v403 = vmul.f32 %v333, %v365
      %v404 = vmul.f32 %v334, %v365
      %v405 = vmul.f32 %v335, %v365
      %v406 = vmul.f32 %v336, %v365
      %v407 = vmul.f32 %v337, %v365
      %v408 = vmul.f32 %v338, %v365
      %v409 = vmul.f32 %v339, %v365
      %v410 = vmul.f32 %v340, %v365
      %v411 = vmul.f32 %v341, %v365
      %v412 = vmul.f32 %v342, %v365
      %v413 = vmul.f32 %v343, %v365
      %v414 = vmul.f32 %v344, %v365
      %v415 = vmul.f32 %v345, %v365
      %v416 = vmul.f32 %v346, %v365
      %v417 = vmul.f32 %v347, %v365
      %v418 = vmul.f32 %v348, %v365
      %v419 = vmul.f32 %v349, %v365
      %v420 = vmul.f32 %v350, %v365
      %v421 = vmul.f32 %v351, %v365
      %v422 = vmul.f32 %v352, %v365
      %v423 = vmul.f32 %v353, %v365
      %v424 = vmul.f32 %v354, %v365
      %v425 = vmul.f32 %v355, %v365
      %v426 = vmul.f32 %v356, %v365
      %v427 = vmul.f32 %v357, %v365
      %v428 = vmul.f32 %v358, %v365
      %v429 = vmul.f32 %v359, %v365
      %v430 = vmul.f32 %v360, %v365
      %v432 = vlaneseq
      %v433 = vshrl.u32 %v432, 7
      %v434 = vsub.s32 0, %v433
      %v435 = vrot.slane %v232, %v434
      %v437 = vadd.f32 %v367, %v435
      %v438 = vadd.f32 %v368, %v435
      %v439 = vadd.f32 %v369, %v435
      %v440 = vadd.f32 %v370, %v435
      %v441 = vadd.f32 %v371, %v435
      %v442 = vadd.f32 %v372, %v435
      %v443 = vadd.f32 %v373, %v435
      %v444 = vadd.f32 %v374, %v435
      %v445 = vadd.f32 %v375, %v435
      %v446 = vadd.f32 %v376, %v435
      %v447 = vadd.f32 %v377, %v435
      %v448 = vadd.f32 %v378, %v435
      %v449 = vadd.f32 %v379, %v435
      %v450 = vadd.f32 %v380, %v435
      %v451 = vadd.f32 %v381, %v435
      %v452 = vadd.f32 %v382, %v435
      %v453 = vadd.f32 %v383, %v435
      %v454 = vadd.f32 %v384, %v435
      %v455 = vadd.f32 %v385, %v435
      %v456 = vadd.f32 %v386, %v435
      %v457 = vadd.f32 %v387, %v435
      %v458 = vadd.f32 %v388, %v435
      %v459 = vadd.f32 %v389, %v435
      %v460 = vadd.f32 %v390, %v435
      %v461 = vadd.f32 %v391, %v435
      %v462 = vadd.f32 %v392, %v435
      %v463 = vadd.f32 %v393, %v435
      %v464 = vadd.f32 %v394, %v435
      %v465 = vadd.f32 %v395, %v435
      %v466 = vadd.f32 %v396, %v435
      %v467 = vadd.f32 %v397, %v435
      %v468 = vadd.f32 %v398, %v435
      %v469 = vadd.f32 %v399, %v435
      %v470 = vadd.f32 %v400, %v435
      %v471 = vadd.f32 %v401, %v435
      %v472 = vadd.f32 %v402, %v435
      %v473 = vadd.f32 %v403, %v435
      %v474 = vadd.f32 %v404, %v435
      %v475 = vadd.f32 %v405, %v435
      %v476 = vadd.f32 %v406, %v435
      %v477 = vadd.f32 %v407, %v435
      %v478 = vadd.f32 %v408, %v435
      %v479 = vadd.f32 %v409, %v435
      %v480 = vadd.f32 %v410, %v435
      %v481 = vadd.f32 %v411, %v435
      %v482 = vadd.f32 %v412, %v435
      %v483 = vadd.f32 %v413, %v435
      %v484 = vadd.f32 %v414, %v435
      %v485 = vadd.f32 %v415, %v435
      %v486 = vadd.f32 %v416, %v435
      %v487 = vadd.f32 %v417, %v435
      %v488 = vadd.f32 %v418, %v435
      %v489 = vadd.f32 %v419, %v435
      %v490 = vadd.f32 %v420, %v435
      %v491 = vadd.f32 %v421, %v435
      %v492 = vadd.f32 %v422, %v435
      %v493 = vadd.f32 %v423, %v435
      %v494 = vadd.f32 %v424, %v435
      %v495 = vadd.f32 %v425, %v435
      %v496 = vadd.f32 %v426, %v435
      %v497 = vadd.f32 %v427, %v435
      %v498 = vadd.f32 %v428, %v435
      %v499 = vadd.f32 %v429, %v435
      %v500 = vadd.f32 %v430, %v435
      %v501 = vld [vmem:[%s222] sm:$0xff]
      %v502 = vld [vmem:[%s222 + $0x8] sm:$0xff]
      %v503 = vld [vmem:[%s222 + $0x10] sm:$0xff]
      %v504 = vld [vmem:[%s222 + $0x18] sm:$0xff]
      %v505 = vld [vmem:[%s222 + $0x20] sm:$0xff]
      %v506 = vld [vmem:[%s222 + $0x28] sm:$0xff]
      %v507 = vld [vmem:[%s222 + $0x30] sm:$0xff]
      %v508 = vld [vmem:[%s222 + $0x38] sm:$0xff]
      %v509 = vld [vmem:[%s222 + $0x40] sm:$0xff]
      %v510 = vld [vmem:[%s222 + $0x48] sm:$0xff]
      %v511 = vld [vmem:[%s222 + $0x50] sm:$0xff]
      %v512 = vld [vmem:[%s222 + $0x58] sm:$0xff]
      %v513 = vld [vmem:[%s222 + $0x60] sm:$0xff]
      %v514 = vld [vmem:[%s222 + $0x68] sm:$0xff]
      %v515 = vld [vmem:[%s222 + $0x70] sm:$0xff]
      %v516 = vld [vmem:[%s222 + $0x78] sm:$0xff]
      %v517 = vld [vmem:[%s222 + $0x80] sm:$0xff]
      %v518 = vld [vmem:[%s222 + $0x88] sm:$0xff]
      %v519 = vld [vmem:[%s222 + $0x90] sm:$0xff]
      %v520 = vld [vmem:[%s222 + $0x98] sm:$0xff]
      %v521 = vld [vmem:[%s222 + $0xa0] sm:$0xff]
      %v522 = vld [vmem:[%s222 + $0xa8] sm:$0xff]
      %v523 = vld [vmem:[%s222 + $0xb0] sm:$0xff]
      %v524 = vld [vmem:[%s222 + $0xb8] sm:$0xff]
      %v525 = vld [vmem:[%s222 + $0xc0] sm:$0xff]
      %v526 = vld [vmem:[%s222 + $0xc8] sm:$0xff]
      %v527 = vld [vmem:[%s222 + $0xd0] sm:$0xff]
      %v528 = vld [vmem:[%s222 + $0xd8] sm:$0xff]
      %v529 = vld [vmem:[%s222 + $0xe0] sm:$0xff]
      %v530 = vld [vmem:[%s222 + $0xe8] sm:$0xff]
      %v531 = vld [vmem:[%s222 + $0xf0] sm:$0xff]
      %v532 = vld [vmem:[%s222 + $0xf8] sm:$0xff]
      %v533 = vld [vmem:[%s222 + $0x100] sm:$0xff]
      %v534 = vld [vmem:[%s222 + $0x108] sm:$0xff]
      %v535 = vld [vmem:[%s222 + $0x110] sm:$0xff]
      %v536 = vld [vmem:[%s222 + $0x118] sm:$0xff]
      %v537 = vld [vmem:[%s222 + $0x120] sm:$0xff]
      %v538 = vld [vmem:[%s222 + $0x128] sm:$0xff]
      %v539 = vld [vmem:[%s222 + $0x130] sm:$0xff]
      %v540 = vld [vmem:[%s222 + $0x138] sm:$0xff]
      %v541 = vld [vmem:[%s222 + $0x140] sm:$0xff]
      %v542 = vld [vmem:[%s222 + $0x148] sm:$0xff]
      %v543 = vld [vmem:[%s222 + $0x150] sm:$0xff]
      %v544 = vld [vmem:[%s222 + $0x158] sm:$0xff]
      %v545 = vld [vmem:[%s222 + $0x160] sm:$0xff]
      %v546 = vld [vmem:[%s222 + $0x168] sm:$0xff]
      %v547 = vld [vmem:[%s222 + $0x170] sm:$0xff]
      %v548 = vld [vmem:[%s222 + $0x178] sm:$0xff]
      %v549 = vld [vmem:[%s222 + $0x180] sm:$0xff]
      %v550 = vld [vmem:[%s222 + $0x188] sm:$0xff]
      %v551 = vld [vmem:[%s222 + $0x190] sm:$0xff]
      %v552 = vld [vmem:[%s222 + $0x198] sm:$0xff]
      %v553 = vld [vmem:[%s222 + $0x1a0] sm:$0xff]
      %v554 = vld [vmem:[%s222 + $0x1a8] sm:$0xff]
      %v555 = vld [vmem:[%s222 + $0x1b0] sm:$0xff]
      %v556 = vld [vmem:[%s222 + $0x1b8] sm:$0xff]
      %v557 = vld [vmem:[%s222 + $0x1c0] sm:$0xff]
      %v558 = vld [vmem:[%s222 + $0x1c8] sm:$0xff]
      %v559 = vld [vmem:[%s222 + $0x1d0] sm:$0xff]
      %v560 = vld [vmem:[%s222 + $0x1d8] sm:$0xff]
      %v561 = vld [vmem:[%s222 + $0x1e0] sm:$0xff]
      %v562 = vld [vmem:[%s222 + $0x1e8] sm:$0xff]
      %v563 = vld [vmem:[%s222 + $0x1f0] sm:$0xff]
      %v564 = vld [vmem:[%s222 + $0x1f8] sm:$0xff]
      %v565 = vadd.f32 %v437, %v501
      %v566 = vadd.f32 %v438, %v502
      %v567 = vadd.f32 %v439, %v503
      %v568 = vadd.f32 %v440, %v504
      %v569 = vadd.f32 %v441, %v505
      %v570 = vadd.f32 %v442, %v506
      %v571 = vadd.f32 %v443, %v507
      %v572 = vadd.f32 %v444, %v508
      %v573 = vadd.f32 %v445, %v509
      %v574 = vadd.f32 %v446, %v510
      %v575 = vadd.f32 %v447, %v511
      %v576 = vadd.f32 %v448, %v512
      %v577 = vadd.f32 %v449, %v513
      %v578 = vadd.f32 %v450, %v514
      %v579 = vadd.f32 %v451, %v515
      %v580 = vadd.f32 %v452, %v516
      %v581 = vadd.f32 %v453, %v517
      %v582 = vadd.f32 %v454, %v518
      %v583 = vadd.f32 %v455, %v519
      %v584 = vadd.f32 %v456, %v520
      %v585 = vadd.f32 %v457, %v521
      %v586 = vadd.f32 %v458, %v522
      %v587 = vadd.f32 %v459, %v523
      %v588 = vadd.f32 %v460, %v524
      %v589 = vadd.f32 %v461, %v525
      %v590 = vadd.f32 %v462, %v526
      %v591 = vadd.f32 %v463, %v527
      %v592 = vadd.f32 %v464, %v528
      %v593 = vadd.f32 %v465, %v529
      %v594 = vadd.f32 %v466, %v530
      %v595 = vadd.f32 %v467, %v531
      %v596 = vadd.f32 %v468, %v532
      %v597 = vadd.f32 %v469, %v533
      %v598 = vadd.f32 %v470, %v534
      %v599 = vadd.f32 %v471, %v535
      %v600 = vadd.f32 %v472, %v536
      %v601 = vadd.f32 %v473, %v537
      %v602 = vadd.f32 %v474, %v538
      %v603 = vadd.f32 %v475, %v539
      %v604 = vadd.f32 %v476, %v540
      %v605 = vadd.f32 %v477, %v541
      %v606 = vadd.f32 %v478, %v542
      %v607 = vadd.f32 %v479, %v543
      %v608 = vadd.f32 %v480, %v544
      %v609 = vadd.f32 %v481, %v545
      %v610 = vadd.f32 %v482, %v546
      %v611 = vadd.f32 %v483, %v547
      %v612 = vadd.f32 %v484, %v548
      %v613 = vadd.f32 %v485, %v549
      %v614 = vadd.f32 %v486, %v550
      %v615 = vadd.f32 %v487, %v551
      %v616 = vadd.f32 %v488, %v552
      %v617 = vadd.f32 %v489, %v553
      %v618 = vadd.f32 %v490, %v554
      %v619 = vadd.f32 %v491, %v555
      %v620 = vadd.f32 %v492, %v556
      %v621 = vadd.f32 %v493, %v557
      %v622 = vadd.f32 %v494, %v558
      %v623 = vadd.f32 %v495, %v559
      %v624 = vadd.f32 %v496, %v560
      %v625 = vadd.f32 %v497, %v561
      %v626 = vadd.f32 %v498, %v562
      %v627 = vadd.f32 %v499, %v563
      %v628 = vadd.f32 %v500, %v564
      %v629 = vmax.f32 %v565, 0.0
      %v630 = vmax.f32 %v566, 0.0
      %v631 = vmax.f32 %v567, 0.0
      %v632 = vmax.f32 %v568, 0.0
      %v633 = vmax.f32 %v569, 0.0
      %v634 = vmax.f32 %v570, 0.0
      %v635 = vmax.f32 %v571, 0.0
      %v636 = vmax.f32 %v572, 0.0
      %v637 = vmax.f32 %v573, 0.0
      %v638 = vmax.f32 %v574, 0.0
      %v639 = vmax.f32 %v575, 0.0
      %v640 = vmax.f32 %v576, 0.0
      %v641 = vmax.f32 %v577, 0.0
      %v642 = vmax.f32 %v578, 0.0
      %v643 = vmax.f32 %v579, 0.0
      %v644 = vmax.f32 %v580, 0.0
      %v645 = vmax.f32 %v581, 0.0
      %v646 = vmax.f32 %v582, 0.0
      %v647 = vmax.f32 %v583, 0.0
      %v648 = vmax.f32 %v584, 0.0
      %v649 = vmax.f32 %v585, 0.0
      %v650 = vmax.f32 %v586, 0.0
      %v651 = vmax.f32 %v587, 0.0
      %v652 = vmax.f32 %v588, 0.0
      %v653 = vmax.f32 %v589, 0.0
      %v654 = vmax.f32 %v590, 0.0
      %v655 = vmax.f32 %v591, 0.0
      %v656 = vmax.f32 %v592, 0.0
      %v657 = vmax.f32 %v593, 0.0
      %v658 = vmax.f32 %v594, 0.0
      %v659 = vmax.f32 %v595, 0.0
      %v660 = vmax.f32 %v596, 0.0
      %v661 = vmax.f32 %v597, 0.0
      %v662 = vmax.f32 %v598, 0.0
      %v663 = vmax.f32 %v599, 0.0
      %v664 = vmax.f32 %v600, 0.0
      %v665 = vmax.f32 %v601, 0.0
      %v666 = vmax.f32 %v602, 0.0
      %v667 = vmax.f32 %v603, 0.0
      %v668 = vmax.f32 %v604, 0.0
      %v669 = vmax.f32 %v605, 0.0
      %v670 = vmax.f32 %v606, 0.0
      %v671 = vmax.f32 %v607, 0.0
      %v672 = vmax.f32 %v608, 0.0
      %v673 = vmax.f32 %v609, 0.0
      %v674 = vmax.f32 %v610, 0.0
      %v675 = vmax.f32 %v611, 0.0
      %v676 = vmax.f32 %v612, 0.0
      %v677 = vmax.f32 %v613, 0.0
      %v678 = vmax.f32 %v614, 0.0
      %v679 = vmax.f32 %v615, 0.0
      %v680 = vmax.f32 %v616, 0.0
      %v681 = vmax.f32 %v617, 0.0
      %v682 = vmax.f32 %v618, 0.0
      %v683 = vmax.f32 %v619, 0.0
      %v684 = vmax.f32 %v620, 0.0
      %v685 = vmax.f32 %v621, 0.0
      %v686 = vmax.f32 %v622, 0.0
      %v687 = vmax.f32 %v623, 0.0
      %v688 = vmax.f32 %v624, 0.0
      %v689 = vmax.f32 %v625, 0.0
      %v690 = vmax.f32 %v626, 0.0
      %v691 = vmax.f32 %v627, 0.0
      %v692 = vmax.f32 %v628, 0.0
      %693 = vst [vmem:[%s229] sm:$0xff] %v629
      %694 = vst [vmem:[%s229 + $0x8] sm:$0xff] %v630
      %695 = vst [vmem:[%s229 + $0x10] sm:$0xff] %v631
      %696 = vst [vmem:[%s229 + $0x18] sm:$0xff] %v632
      %697 = vst [vmem:[%s229 + $0x20] sm:$0xff] %v633
      %698 = vst [vmem:[%s229 + $0x28] sm:$0xff] %v634
      %699 = vst [vmem:[%s229 + $0x30] sm:$0xff] %v635
      %700 = vst [vmem:[%s229 + $0x38] sm:$0xff] %v636
      %701 = vst [vmem:[%s229 + $0x40] sm:$0xff] %v637
      %702 = vst [vmem:[%s229 + $0x48] sm:$0xff] %v638
      %703 = vst [vmem:[%s229 + $0x50] sm:$0xff] %v639
      %704 = vst [vmem:[%s229 + $0x58] sm:$0xff] %v640
      %705 = vst [vmem:[%s229 + $0x60] sm:$0xff] %v641
      %706 = vst [vmem:[%s229 + $0x68] sm:$0xff] %v642
      %707 = vst [vmem:[%s229 + $0x70] sm:$0xff] %v643
      %708 = vst [vmem:[%s229 + $0x78] sm:$0xff] %v644
      %709 = vst [vmem:[%s229 + $0x80] sm:$0xff] %v645
      %710 = vst [vmem:[%s229 + $0x88] sm:$0xff] %v646
      %711 = vst [vmem:[%s229 + $0x90] sm:$0xff] %v647
      %712 = vst [vmem:[%s229 + $0x98] sm:$0xff] %v648
      %713 = vst [vmem:[%s229 + $0xa0] sm:$0xff] %v649
      %714 = vst [vmem:[%s229 + $0xa8] sm:$0xff] %v650
      %715 = vst [vmem:[%s229 + $0xb0] sm:$0xff] %v651
      %716 = vst [vmem:[%s229 + $0xb8] sm:$0xff] %v652
      %717 = vst [vmem:[%s229 + $0xc0] sm:$0xff] %v653
      %718 = vst [vmem:[%s229 + $0xc8] sm:$0xff] %v654
      %719 = vst [vmem:[%s229 + $0xd0] sm:$0xff] %v655
      %720 = vst [vmem:[%s229 + $0xd8] sm:$0xff] %v656
      %721 = vst [vmem:[%s229 + $0xe0] sm:$0xff] %v657
      %722 = vst [vmem:[%s229 + $0xe8] sm:$0xff] %v658
      %723 = vst [vmem:[%s229 + $0xf0] sm:$0xff] %v659
      %724 = vst [vmem:[%s229 + $0xf8] sm:$0xff] %v660
      %725 = vst [vmem:[%s229 + $0x100] sm:$0xff] %v661
      %726 = vst [vmem:[%s229 + $0x108] sm:$0xff] %v662
      %727 = vst [vmem:[%s229 + $0x110] sm:$0xff] %v663
      %728 = vst [vmem:[%s229 + $0x118] sm:$0xff] %v664
      %729 = vst [vmem:[%s229 + $0x120] sm:$0xff] %v665
      %730 = vst [vmem:[%s229 + $0x128] sm:$0xff] %v666
      %731 = vst [vmem:[%s229 + $0x130] sm:$0xff] %v667
      %732 = vst [vmem:[%s229 + $0x138] sm:$0xff] %v668
      %733 = vst [vmem:[%s229 + $0x140] sm:$0xff] %v669
      %734 = vst [vmem:[%s229 + $0x148] sm:$0xff] %v670
      %735 = vst [vmem:[%s229 + $0x150] sm:$0xff] %v671
      %736 = vst [vmem:[%s229 + $0x158] sm:$0xff] %v672
      %737 = vst [vmem:[%s229 + $0x160] sm:$0xff] %v673
      %738 = vst [vmem:[%s229 + $0x168] sm:$0xff] %v674
      %739 = vst [vmem:[%s229 + $0x170] sm:$0xff] %v675
      %740 = vst [vmem:[%s229 + $0x178] sm:$0xff] %v676
      %741 = vst [vmem:[%s229 + $0x180] sm:$0xff] %v677
      %742 = vst [vmem:[%s229 + $0x188] sm:$0xff] %v678
      %743 = vst [vmem:[%s229 + $0x190] sm:$0xff] %v679
      %744 = vst [vmem:[%s229 + $0x198] sm:$0xff] %v680
      %745 = vst [vmem:[%s229 + $0x1a0] sm:$0xff] %v681
      %746 = vst [vmem:[%s229 + $0x1a8] sm:$0xff] %v682
      %747 = vst [vmem:[%s229 + $0x1b0] sm:$0xff] %v683
      %748 = vst [vmem:[%s229 + $0x1b8] sm:$0xff] %v684
      %749 = vst [vmem:[%s229 + $0x1c0] sm:$0xff] %v685
      %750 = vst [vmem:[%s229 + $0x1c8] sm:$0xff] %v686
      %751 = vst [vmem:[%s229 + $0x1d0] sm:$0xff] %v687
      %752 = vst [vmem:[%s229 + $0x1d8] sm:$0xff] %v688
      %753 = vst [vmem:[%s229 + $0x1e0] sm:$0xff] %v689
      %754 = vst [vmem:[%s229 + $0x1e8] sm:$0xff] %v690
      %755 = vst [vmem:[%s229 + $0x1f0] sm:$0xff] %v691
      %756 = vst [vmem:[%s229 + $0x1f8] sm:$0xff] %v692
      %s757 = smul.u32 8, %s15
      %p758 = scmp.lt.s32.totalorder %s757, 15
      %s759 = scalar_select %p758, %s757, 15
      %s760 = smul.addr %s759, 8
      %s761 = smul.addr %s760, 8
      %s762 = scalar_lea.vmem %s4, %s761
      // Predicated region
      $region37: #{basic_block.5} parent=35 // pred_check
        %p763 = pneg %p127
      $region38: #{basic_block.5} parent=35 // pred_check_branch
        %765 = sbr.rel (%p763) target = $region40
      $region39: #{basic_block.5} parent=35 // pred_region
        %s766 = smul.u32 8, %s15
      $region40: #{basic_block.5} parent=35 // pred_fallthru
        _
    $region36: #{basic_block.5} parent=5 // pred_fallthru
      _
    %p767 = scmp.le.s32.totalorder 2, %s10
    // Predicated region
    $region41: #{basic_block.5} parent=5 // pred_check
      %p768 = pneg %p767
    $region42: #{basic_block.5} parent=5 // pred_check_branch
      %770 = sbr.rel (%p768) target = $region44
    $region43: #{basic_block.5} parent=5 // pred_region
      %s771 = ssub.s32 %s10, 2
      // Predicated region
      $region45: #{basic_block.5} parent=43 // pred_check
        %p772 = pneg %p133
      $region46: #{basic_block.5} parent=43 // pred_check_branch
        %774 = sbr.rel (%p772) target = $region48
      $region47: #{basic_block.5} parent=43 // pred_region
        %s775 = smul.u32 8, %s16
        %p776 = scmp.lt.s32.totalorder %s775, 15
        %s777 = scalar_select %p776, %s775, 15
        %s778 = smul.addr %s777, 8
        %s779 = smul.addr %s778, 8
        %s780 = scalar_lea.vmem %s4, %s779
      $region48: #{basic_block.5} parent=43 // pred_fallthru
        _
    $region44: #{basic_block.5} parent=5 // pred_fallthru
      _
  $region6: #{basic_block.5} parent=0 // loop_footer
    %s14 = sadd.s32 1, %s10
  $region7: #{basic_block.5} parent=0 // loop_footer_branch
    %9 = sbr.rel target = $region3
  $region8: #{basic_block.5} parent=0 // loop_exit
    _

// kernel: basic_block.3
$region0: #{basic_block.3}
  #allocation0 [shape = 'u32[]', space=smem, size = 0x4, offset = 0x4, fixed_abs, tag = 'smem constant byte address 0x4 - core index']
  #allocation1 [shape = 'u32[144,128]{1,0:T(1,128)}', space=vmem, size = 0x12000, scoped, tag = 'internal scratch']
  %s0 = inlined_call_operand.vmem [shape: f32[16,64,128], index: 0, kind: input, shape index: {}]
  %s1 = inlined_call_operand.vmem [shape: bf16[256,128], index: 1, kind: input, shape index: {}]
  %s2 = inlined_call_operand.vmem [shape: bf16[16,64,128], index: 2, kind: output, shape index: {0}]
  %s3 = inlined_call_operand.vmem [shape: f32[2,2,128], index: 3, kind: output, shape index: {1}]
  %4 = xla_tuple %s2, %s3
  %s5 = sld [smem:[#allocation0]]
  $region49: #{basic_block.3} parent=0
    _
  %s7 = ssub.s32 1, %s5
  %s8 = scalar_select 0, %s7, %s5
  loop: start=0, step=1, limit=4
  $region2: #{basic_block.3} parent=0 // loop_pre_header
    _
  $region3: #{basic_block.3} parent=0 // loop_header
    %s10 = sphi 0, %s14
    %p11 = scmp.ge.s32.totalorder %s10, 4
    %s20 = sphi 0, %s22
    %s23 = sphi 0, %s20
    %s24 = sphi 0, %s23
    %s40 = sphi 0, %s24
    %s44 = sphi 0, %s44
    %s46 = sphi 0, %s44
    %s47 = sphi 0, %s46
    %s61 = sphi 0, %s47
    %s67 = sphi 0, %s69
    %s70 = sphi 0, %s67
    %s71 = sphi 0, %s70
    %s87 = sphi 0, %s71
    %s93 = sphi 0, %s95
    %s96 = sphi 0, %s93
    %s97 = sphi 0, %s96
    %s113 = sphi 0, %s97
  $region4: #{basic_block.3} parent=0 // loop_header_branch
    %13 = sbr.rel (%p11) target = $region8
  $region5: #{basic_block.3} parent=0 // loop_body
    %s15 = ssub.s32 %s10, 1
    %s16 = ssub.s32 %s10, 2
    %s17 = sadd.s32 %s10, 1
    %s18 = ssub.s32 %s10, %s17
    %p19 = scmp.eq.s32.totalorder %s18, 0
    %s21 = sadd.s32 %s20, 1
    %s22 = scalar_select %p19, %s20, %s21
    %p25 = pneg %p19
    %p26 = scmp.eq.s32.totalorder %s10, 1
    %p27 = por %p25, %p26
    %p28 = scmp.ne.s32.totalorder %s20, %s23
    %p29 = scmp.eq.s32.totalorder %s10, 0
    %p30 = por %p28, %p29
    %p31 = scmp.ne.s32.totalorder %s20, %s23
    %p32 = scmp.eq.s32.totalorder %s15, 1
    %p33 = por %p31, %p32
    %p34 = scmp.ne.s32.totalorder %s23, %s24
    %p35 = scmp.eq.s32.totalorder %s15, 0
    %p36 = por %p34, %p35
    %p37 = scmp.ne.s32.totalorder %s23, %s24
    %p38 = scmp.eq.s32.totalorder %s16, 1
    %p39 = por %p37, %p38
    %p41 = scmp.ne.s32.totalorder %s24, %s40
    %p42 = scmp.eq.s32.totalorder %s16, 0
    %p43 = por %p41, %p42
    %s45 = sadd.s32 %s44, 1
    %p48 = scmp.eq.s32.totalorder %s10, 1
    %p49 = scmp.ne.s32.totalorder %s44, %s46
    %p50 = scmp.eq.s32.totalorder %s10, 0
    %p51 = por %p49, %p50
    %p52 = scmp.ne.s32.totalorder %s44, %s46
    %p53 = scmp.eq.s32.totalorder %s15, 1
    %p54 = por %p52, %p53
    %p55 = scmp.ne.s32.totalorder %s46, %s47
    %p56 = scmp.eq.s32.totalorder %s15, 0
    %p57 = por %p55, %p56
    %p58 = scmp.ne.s32.totalorder %s46, %s47
    %p59 = scmp.eq.s32.totalorder %s16, 1
    %p60 = por %p58, %p59
    %p62 = scmp.ne.s32.totalorder %s47, %s61
    %p63 = scmp.eq.s32.totalorder %s16, 0
    %p64 = por %p62, %p63
    %s65 = ssub.s32 %s10, %s17
    %p66 = scmp.eq.s32.totalorder %s65, 0
    %s68 = sadd.s32 %s67, 1
    %s69 = scalar_select %p66, %s67, %s68
    %p72 = pneg %p66
    %p73 = scmp.eq.s32.totalorder %s10, 1
    %p74 = por %p72, %p73
    %p75 = scmp.ne.s32.totalorder %s67, %s70
    %p76 = scmp.eq.s32.totalorder %s10, 0
    %p77 = por %p75, %p76
    %p78 = scmp.ne.s32.totalorder %s67, %s70
    %p79 = scmp.eq.s32.totalorder %s15, 1
    %p80 = por %p78, %p79
    %p81 = scmp.ne.s32.totalorder %s70, %s71
    %p82 = scmp.eq.s32.totalorder %s15, 0
    %p83 = por %p81, %p82
    %p84 = scmp.ne.s32.totalorder %s70, %s71
    %p85 = scmp.eq.s32.totalorder %s16, 1
    %p86 = por %p84, %p85
    %p88 = scmp.ne.s32.totalorder %s71, %s87
    %p89 = scmp.eq.s32.totalorder %s16, 0
    %p90 = por %p88, %p89
    %s91 = ssub.s32 %s10, %s17
    %p92 = scmp.eq.s32.totalorder %s91, 0
    %s94 = sadd.s32 %s93, 1
    %s95 = scalar_select %p92, %s93, %s94
    %p98 = pneg %p92
    %p99 = scmp.eq.s32.totalorder %s10, 1
    %p100 = por %p98, %p99
    %p101 = scmp.ne.s32.totalorder %s93, %s96
    %p102 = scmp.eq.s32.totalorder %s10, 0
    %p103 = por %p101, %p102
    %p104 = scmp.ne.s32.totalorder %s93, %s96
    %p105 = scmp.eq.s32.totalorder %s15, 1
    %p106 = por %p104, %p105
    %p107 = scmp.ne.s32.totalorder %s96, %s97
    %p108 = scmp.eq.s32.totalorder %s15, 0
    %p109 = por %p107, %p108
    %p110 = scmp.ne.s32.totalorder %s96, %s97
    %p111 = scmp.eq.s32.totalorder %s16, 1
    %p112 = por %p110, %p111
    %p114 = scmp.ne.s32.totalorder %s97, %s113
    %p115 = scmp.eq.s32.totalorder %s16, 0
    %p116 = por %p114, %p115
    %p117 = scmp.le.s32.totalorder 1, %s10
    %p118 = scmp.lt.s32.totalorder %s10, 3
    %p119 = pnand %p117, %p118
    %p120 = pneg %p119
    // Predicated region
    $region9: #{basic_block.3} parent=5 // pred_check
      _
    $region10: #{basic_block.3} parent=5 // pred_check_branch
      %122 = sbr.rel (%p119) target = $region12
    $region11: #{basic_block.3} parent=5 // pred_region
      %s123 = ssub.s32 %s10, 1
      // Predicated region
      $region13: #{basic_block.3} parent=11 // pred_check
        %p124 = pneg %p57
      $region14: #{basic_block.3} parent=11 // pred_check_branch
        %126 = sbr.rel (%p124) target = $region16
      $region15: #{basic_block.3} parent=11 // pred_region
        _
      $region16: #{basic_block.3} parent=11 // pred_fallthru
        _
    $region12: #{basic_block.3} parent=5 // pred_fallthru
      _
    %p127 = scmp.lt.s32.totalorder %s10, 2
    // Predicated region
    $region17: #{basic_block.3} parent=5 // pred_check
      %p128 = pneg %p127
    $region18: #{basic_block.3} parent=5 // pred_check_branch
      %130 = sbr.rel (%p128) target = $region20
    $region19: #{basic_block.3} parent=5 // pred_region
      // Predicated region
      $region21: #{basic_block.3} parent=19 // pred_check
        %p131 = pneg %p30
      $region22: #{basic_block.3} parent=19 // pred_check_branch
        %133 = sbr.rel (%p131) target = $region24
      $region23: #{basic_block.3} parent=19 // pred_region
        %s134 = smul.u32 8, %s10
        %p135 = scmp.lt.s32.totalorder %s134, 15
        %s136 = scalar_select %p135, %s134, 15
        %s137 = smul.addr %s136, 8
        %s138 = smul.addr %s137, 8
        %s139 = scalar_lea.vmem %s0, %s138
        %s140 = smul.u32 8, %s10
      $region24: #{basic_block.3} parent=19 // pred_fallthru
        _
    $region20: #{basic_block.3} parent=5 // pred_fallthru
      _
    %p141 = scmp.le.s32.totalorder 1, %s10
    %p142 = scmp.lt.s32.totalorder %s10, 3
    %p143 = pnand %p141, %p142
    %p144 = pneg %p143
    // Predicated region
    $region25: #{basic_block.3} parent=5 // pred_check
      _
    $region26: #{basic_block.3} parent=5 // pred_check_branch
      %146 = sbr.rel (%p143) target = $region28
    $region27: #{basic_block.3} parent=5 // pred_region
      %s147 = ssub.s32 %s10, 1
      %s148 = smul.u32 8, %s15
      %p149 = scmp.lt.s32.totalorder %s148, 15
      %s150 = scalar_select %p149, %s148, 15
      %s151 = smul.addr %s150, 8
      %s152 = smul.addr %s151, 8
      %s153 = scalar_lea.vmem %s0, %s152
      %p154 = pneg %p36
      %p155 = pneg %p33
      %p156 = pneg %p57
      %p157 = pneg %p54
      %p158 = pneg %p83
      %p159 = pneg %p80
      %s160 = smul.u32 8, %s15
      %p161 = scmp.lt.s32.totalorder %s160, 15
      %s162 = scalar_select %p161, %s160, 15
      %s163 = smul.addr %s162, 8
      %s164 = smul.addr %s163, 4
      %s165 = scalar_lea.vmem %s2, %s164
      %p166 = pneg %p109
      %p167 = pneg %p106
      %p168 = scmp.lt.s32.totalorder %s15, 1
      %s169 = scalar_select %p168, %s15, 1
      %s170 = smul.addr %s169, 2
      %s171 = scalar_lea.vmem %s3, %s170
      %s172 = smul.u32 8, %s15
      %p173 = scmp.lt.s32.totalorder %s172, 15
      %s174 = scalar_select %p173, %s172, 15
      %s175 = smul.addr %s174, 8
      %s176 = smul.addr %s175, 8
      %s177 = scalar_lea.vmem %s0, %s176
      %s178 = smul.u32 8, %s15
      %s179 = smul.u32 8, %s15
      %p180 = scmp.lt.s32.totalorder %s179, 15
      %s181 = scalar_select %p180, %s179, 15
      %s182 = smul.addr %s181, 8
      %s183 = smul.addr %s182, 4
      %s184 = scalar_lea.vmem %s2, %s183
      %s185 = smul.u32 8, %s15
      %p186 = scmp.lt.s32.totalorder %s15, 1
      %s187 = scalar_select %p186, %s15, 1
      %s188 = smul.addr %s187, 2
      %s189 = scalar_lea.vmem %s3, %s188
      %v191 = vld [vmem:[%s177] sm:$0xff]
      %v192 = vld [vmem:[%s177 + $0x8] sm:$0xff]
      %v193 = vld [vmem:[%s177 + $0x10] sm:$0xff]
      %v194 = vld [vmem:[%s177 + $0x18] sm:$0xff]
      %v195 = vld [vmem:[%s177 + $0x20] sm:$0xff]
      %v196 = vld [vmem:[%s177 + $0x28] sm:$0xff]
      %v197 = vld [vmem:[%s177 + $0x30] sm:$0xff]
      %v198 = vld [vmem:[%s177 + $0x38] sm:$0xff]
      %v199 = vld [vmem:[%s177 + $0x40] sm:$0xff]
      %v200 = vld [vmem:[%s177 + $0x48] sm:$0xff]
      %v201 = vld [vmem:[%s177 + $0x50] sm:$0xff]
      %v202 = vld [vmem:[%s177 + $0x58] sm:$0xff]
      %v203 = vld [vmem:[%s177 + $0x60] sm:$0xff]
      %v204 = vld [vmem:[%s177 + $0x68] sm:$0xff]
      %v205 = vld [vmem:[%s177 + $0x70] sm:$0xff]
      %v206 = vld [vmem:[%s177 + $0x78] sm:$0xff]
      %v207 = vld [vmem:[%s177 + $0x80] sm:$0xff]
      %v208 = vld [vmem:[%s177 + $0x88] sm:$0xff]
      %v209 = vld [vmem:[%s177 + $0x90] sm:$0xff]
      %v210 = vld [vmem:[%s177 + $0x98] sm:$0xff]
      %v211 = vld [vmem:[%s177 + $0xa0] sm:$0xff]
      %v212 = vld [vmem:[%s177 + $0xa8] sm:$0xff]
      %v213 = vld [vmem:[%s177 + $0xb0] sm:$0xff]
      %v214 = vld [vmem:[%s177 + $0xb8] sm:$0xff]
      %v215 = vld [vmem:[%s177 + $0xc0] sm:$0xff]
      %v216 = vld [vmem:[%s177 + $0xc8] sm:$0xff]
      %v217 = vld [vmem:[%s177 + $0xd0] sm:$0xff]
      %v218 = vld [vmem:[%s177 + $0xd8] sm:$0xff]
      %v219 = vld [vmem:[%s177 + $0xe0] sm:$0xff]
      %v220 = vld [vmem:[%s177 + $0xe8] sm:$0xff]
      %v221 = vld [vmem:[%s177 + $0xf0] sm:$0xff]
      %v222 = vld [vmem:[%s177 + $0xf8] sm:$0xff]
      %v223 = vld [vmem:[%s177 + $0x100] sm:$0xff]
      %v224 = vld [vmem:[%s177 + $0x108] sm:$0xff]
      %v225 = vld [vmem:[%s177 + $0x110] sm:$0xff]
      %v226 = vld [vmem:[%s177 + $0x118] sm:$0xff]
      %v227 = vld [vmem:[%s177 + $0x120] sm:$0xff]
      %v228 = vld [vmem:[%s177 + $0x128] sm:$0xff]
      %v229 = vld [vmem:[%s177 + $0x130] sm:$0xff]
      %v230 = vld [vmem:[%s177 + $0x138] sm:$0xff]
      %v231 = vld [vmem:[%s177 + $0x140] sm:$0xff]
      %v232 = vld [vmem:[%s177 + $0x148] sm:$0xff]
      %v233 = vld [vmem:[%s177 + $0x150] sm:$0xff]
      %v234 = vld [vmem:[%s177 + $0x158] sm:$0xff]
      %v235 = vld [vmem:[%s177 + $0x160] sm:$0xff]
      %v236 = vld [vmem:[%s177 + $0x168] sm:$0xff]
      %v237 = vld [vmem:[%s177 + $0x170] sm:$0xff]
      %v238 = vld [vmem:[%s177 + $0x178] sm:$0xff]
      %v239 = vld [vmem:[%s177 + $0x180] sm:$0xff]
      %v240 = vld [vmem:[%s177 + $0x188] sm:$0xff]
      %v241 = vld [vmem:[%s177 + $0x190] sm:$0xff]
      %v242 = vld [vmem:[%s177 + $0x198] sm:$0xff]
      %v243 = vld [vmem:[%s177 + $0x1a0] sm:$0xff]
      %v244 = vld [vmem:[%s177 + $0x1a8] sm:$0xff]
      %v245 = vld [vmem:[%s177 + $0x1b0] sm:$0xff]
      %v246 = vld [vmem:[%s177 + $0x1b8] sm:$0xff]
      %v247 = vld [vmem:[%s177 + $0x1c0] sm:$0xff]
      %v248 = vld [vmem:[%s177 + $0x1c8] sm:$0xff]
      %v249 = vld [vmem:[%s177 + $0x1d0] sm:$0xff]
      %v250 = vld [vmem:[%s177 + $0x1d8] sm:$0xff]
      %v251 = vld [vmem:[%s177 + $0x1e0] sm:$0xff]
      %v252 = vld [vmem:[%s177 + $0x1e8] sm:$0xff]
      %v253 = vld [vmem:[%s177 + $0x1f0] sm:$0xff]
      %v254 = vld [vmem:[%s177 + $0x1f8] sm:$0xff]
      %v255 = vpack.c.bf16 %v192, %v191
      %v256 = vpack.c.bf16 %v194, %v193
      %v257 = vpack.c.bf16 %v196, %v195
      %v258 = vpack.c.bf16 %v198, %v197
      %v259 = vpack.c.bf16 %v200, %v199
      %v260 = vpack.c.bf16 %v202, %v201
      %v261 = vpack.c.bf16 %v204, %v203
      %v262 = vpack.c.bf16 %v206, %v205
      %v263 = vpack.c.bf16 %v208, %v207
      %v264 = vpack.c.bf16 %v210, %v209
      %v265 = vpack.c.bf16 %v212, %v211
      %v266 = vpack.c.bf16 %v214, %v213
      %v267 = vpack.c.bf16 %v216, %v215
      %v268 = vpack.c.bf16 %v218, %v217
      %v269 = vpack.c.bf16 %v220, %v219
      %v270 = vpack.c.bf16 %v222, %v221
      %v271 = vpack.c.bf16 %v224, %v223
      %v272 = vpack.c.bf16 %v226, %v225
      %v273 = vpack.c.bf16 %v228, %v227
      %v274 = vpack.c.bf16 %v230, %v229
      %v275 = vpack.c.bf16 %v232, %v231
      %v276 = vpack.c.bf16 %v234, %v233
      %v277 = vpack.c.bf16 %v236, %v235
      %v278 = vpack.c.bf16 %v238, %v237
      %v279 = vpack.c.bf16 %v240, %v239
      %v280 = vpack.c.bf16 %v242, %v241
      %v281 = vpack.c.bf16 %v244, %v243
      %v282 = vpack.c.bf16 %v246, %v245
      %v283 = vpack.c.bf16 %v248, %v247
      %v284 = vpack.c.bf16 %v250, %v249
      %v285 = vpack.c.bf16 %v252, %v251
      %v286 = vpack.c.bf16 %v254, %v253
      %vm287 = vsmask.f32 256
      %v289 = vshrl.u32 %v255, 16
      %v291 = vrot.slane %v289, 7
      %v292 = vshll.u32 %v255, 16
      %v294 = vor.u32 %v291, %v292
      %v296 = vshrl.u32 %v256, 16
      %v298 = vrot.slane %v296, 7
      %v299 = vshll.u32 %v256, 16
      %v301 = vor.u32 %v298, %v299
      %v302 = vsel %vm287, %v291, %v301
      %v304 = vshrl.u32 %v257, 16
      %v306 = vrot.slane %v304, 7
      %v307 = vshll.u32 %v257, 16
      %v309 = vor.u32 %v306, %v307
      %v310 = vsel %vm287, %v298, %v309
      %v312 = vshrl.u32 %v258, 16
      %v314 = vrot.slane %v312, 7
      %v315 = vshll.u32 %v258, 16
      %v317 = vor.u32 %v314, %v315
      %v318 = vsel %vm287, %v306, %v317
      %v320 = vshrl.u32 %v259, 16
      %v322 = vrot.slane %v320, 7
      %v323 = vshll.u32 %v259, 16
      %v325 = vor.u32 %v322, %v323
      %v327 = vshrl.u32 %v260, 16
      %v329 = vrot.slane %v327, 7
      %v330 = vshll.u32 %v260, 16
      %v332 = vor.u32 %v329, %v330
      %v333 = vsel %vm287, %v322, %v332
      %v335 = vshrl.u32 %v261, 16
      %v337 = vrot.slane %v335, 7
      %v338 = vshll.u32 %v261, 16
      %v340 = vor.u32 %v337, %v338
      %v341 = vsel %vm287, %v329, %v340
      %v343 = vshrl.u32 %v262, 16
      %v345 = vrot.slane %v343, 7
      %v346 = vshll.u32 %v262, 16
      %v348 = vor.u32 %v345, %v346
      %v349 = vsel %vm287, %v337, %v348
      %v351 = vshrl.u32 %v263, 16
      %v353 = vrot.slane %v351, 7
      %v354 = vshll.u32 %v263, 16
      %v356 = vor.u32 %v353, %v354
      %v358 = vshrl.u32 %v264, 16
      %v360 = vrot.slane %v358, 7
      %v361 = vshll.u32 %v264, 16
      %v363 = vor.u32 %v360, %v361
      %v364 = vsel %vm287, %v353, %v363
      %v366 = vshrl.u32 %v265, 16
      %v368 = vrot.slane %v366, 7
      %v369 = vshll.u32 %v265, 16
      %v371 = vor.u32 %v368, %v369
      %v372 = vsel %vm287, %v360, %v371
      %v374 = vshrl.u32 %v266, 16
      %v376 = vrot.slane %v374, 7
      %v377 = vshll.u32 %v266, 16
      %v379 = vor.u32 %v376, %v377
      %v380 = vsel %vm287, %v368, %v379
      %v382 = vshrl.u32 %v267, 16
      %v384 = vrot.slane %v382, 7
      %v385 = vshll.u32 %v267, 16
      %v387 = vor.u32 %v384, %v385
      %v389 = vshrl.u32 %v268, 16
      %v391 = vrot.slane %v389, 7
      %v392 = vshll.u32 %v268, 16
      %v394 = vor.u32 %v391, %v392
      %v395 = vsel %vm287, %v384, %v394
      %v397 = vshrl.u32 %v269, 16
      %v399 = vrot.slane %v397, 7
      %v400 = vshll.u32 %v269, 16
      %v402 = vor.u32 %v399, %v400
      %v403 = vsel %vm287, %v391, %v402
      %v405 = vshrl.u32 %v270, 16
      %v407 = vrot.slane %v405, 7
      %v408 = vshll.u32 %v270, 16
      %v410 = vor.u32 %v407, %v408
      %v411 = vsel %vm287, %v399, %v410
      %v413 = vshrl.u32 %v271, 16
      %v415 = vrot.slane %v413, 7
      %v416 = vshll.u32 %v271, 16
      %v418 = vor.u32 %v415, %v416
      %v420 = vshrl.u32 %v272, 16
      %v422 = vrot.slane %v420, 7
      %v423 = vshll.u32 %v272, 16
      %v425 = vor.u32 %v422, %v423
      %v426 = vsel %vm287, %v415, %v425
      %v428 = vshrl.u32 %v273, 16
      %v430 = vrot.slane %v428, 7
      %v431 = vshll.u32 %v273, 16
      %v433 = vor.u32 %v430, %v431
      %v434 = vsel %vm287, %v422, %v433
      %v436 = vshrl.u32 %v274, 16
      %v438 = vrot.slane %v436, 7
      %v439 = vshll.u32 %v274, 16
      %v441 = vor.u32 %v438, %v439
      %v442 = vsel %vm287, %v430, %v441
      %v444 = vshrl.u32 %v275, 16
      %v446 = vrot.slane %v444, 7
      %v447 = vshll.u32 %v275, 16
      %v449 = vor.u32 %v446, %v447
      %v451 = vshrl.u32 %v276, 16
      %v453 = vrot.slane %v451, 7
      %v454 = vshll.u32 %v276, 16
      %v456 = vor.u32 %v453, %v454
      %v457 = vsel %vm287, %v446, %v456
      %v459 = vshrl.u32 %v277, 16
      %v461 = vrot.slane %v459, 7
      %v462 = vshll.u32 %v277, 16
      %v464 = vor.u32 %v461, %v462
      %v465 = vsel %vm287, %v453, %v464
      %v467 = vshrl.u32 %v278, 16
      %v469 = vrot.slane %v467, 7
      %v470 = vshll.u32 %v278, 16
      %v472 = vor.u32 %v469, %v470
      %v473 = vsel %vm287, %v461, %v472
      %v475 = vshrl.u32 %v279, 16
      %v477 = vrot.slane %v475, 7
      %v478 = vshll.u32 %v279, 16
      %v480 = vor.u32 %v477, %v478
      %v482 = vshrl.u32 %v280, 16
      %v484 = vrot.slane %v482, 7
      %v485 = vshll.u32 %v280, 16
      %v487 = vor.u32 %v484, %v485
      %v488 = vsel %vm287, %v477, %v487
      %v490 = vshrl.u32 %v281, 16
      %v492 = vrot.slane %v490, 7
      %v493 = vshll.u32 %v281, 16
      %v495 = vor.u32 %v492, %v493
      %v496 = vsel %vm287, %v484, %v495
      %v498 = vshrl.u32 %v282, 16
      %v500 = vrot.slane %v498, 7
      %v501 = vshll.u32 %v282, 16
      %v503 = vor.u32 %v500, %v501
      %v504 = vsel %vm287, %v492, %v503
      %v506 = vshrl.u32 %v283, 16
      %v508 = vrot.slane %v506, 7
      %v509 = vshll.u32 %v283, 16
      %v511 = vor.u32 %v508, %v509
      %v513 = vshrl.u32 %v284, 16
      %v515 = vrot.slane %v513, 7
      %v516 = vshll.u32 %v284, 16
      %v518 = vor.u32 %v515, %v516
      %v519 = vsel %vm287, %v508, %v518
      %v521 = vshrl.u32 %v285, 16
      %v523 = vrot.slane %v521, 7
      %v524 = vshll.u32 %v285, 16
      %v526 = vor.u32 %v523, %v524
      %v527 = vsel %vm287, %v515, %v526
      %v529 = vshrl.u32 %v286, 16
      %v531 = vrot.slane %v529, 7
      %v532 = vshll.u32 %v286, 16
      %v534 = vor.u32 %v531, %v532
      %v535 = vsel %vm287, %v523, %v534
      %vm544 = vcmask 1040384
      %vm545 = vmand %vm544, %vm287
      %v546 = vsel %vm545, 0, %v294
      %v547 = vsel %vm545, 0, %v325
      %v548 = vsel %vm545, 0, %v356
      %v549 = vsel %vm545, 0, %v387
      %v550 = vsel %vm545, 0, %v418
      %v551 = vsel %vm545, 0, %v449
      %v552 = vsel %vm545, 0, %v480
      %v553 = vsel %vm545, 0, %v511
      %vm554 = vsmask.f32 7424
      %v555 = vrot.slane %v292, 1
      %v556 = vor.u32 %v289, %v555
      %v557 = vrot.slane %v299, 1
      %v558 = vsel %vm554, %v556, %v557
      %v559 = vor.u32 %v296, %v557
      %v560 = vrot.slane %v307, 1
      %v561 = vsel %vm554, %v559, %v560
      %v562 = vor.u32 %v304, %v560
      %v563 = vrot.slane %v315, 1
      %v564 = vsel %vm554, %v562, %v563
      %v565 = vor.u32 %v312, %v563
      %v566 = vrot.slane %v323, 1
      %v567 = vor.u32 %v320, %v566
      %v568 = vrot.slane %v330, 1
      %v569 = vsel %vm554, %v567, %v568
      %v570 = vor.u32 %v327, %v568
      %v571 = vrot.slane %v338, 1
      %v572 = vsel %vm554, %v570, %v571
      %v573 = vor.u32 %v335, %v571
      %v574 = vrot.slane %v346, 1
      %v575 = vsel %vm554, %v573, %v574
      %v576 = vor.u32 %v343, %v574
      %v577 = vrot.slane %v354, 1
      %v578 = vor.u32 %v351, %v577
      %v579 = vrot.slane %v361, 1
      %v580 = vsel %vm554, %v578, %v579
      %v581 = vor.u32 %v358, %v579
      %v582 = vrot.slane %v369, 1
      %v583 = vsel %vm554, %v581, %v582
      %v584 = vor.u32 %v366, %v582
      %v585 = vrot.slane %v377, 1
      %v586 = vsel %vm554, %v584, %v585
      %v587 = vor.u32 %v374, %v585
      %v588 = vrot.slane %v385, 1
      %v589 = vor.u32 %v382, %v588
      %v590 = vrot.slane %v392, 1
      %v591 = vsel %vm554, %v589, %v590
      %v592 = vor.u32 %v389, %v590
      %v593 = vrot.slane %v400, 1
      %v594 = vsel %vm554, %v592, %v593
      %v595 = vor.u32 %v397, %v593
      %v596 = vrot.slane %v408, 1
      %v597 = vsel %vm554, %v595, %v596
      %v598 = vor.u32 %v405, %v596
      %v599 = vrot.slane %v416, 1
      %v600 = vor.u32 %v413, %v599
      %v601 = vrot.slane %v423, 1
      %v602 = vsel %vm554, %v600, %v601
      %v603 = vor.u32 %v420, %v601
      %v604 = vrot.slane %v431, 1
      %v605 = vsel %vm554, %v603, %v604
      %v606 = vor.u32 %v428, %v604
      %v607 = vrot.slane %v439, 1
      %v608 = vsel %vm554, %v606, %v607
      %v609 = vor.u32 %v436, %v607
      %v610 = vrot.slane %v447, 1
      %v611 = vor.u32 %v444, %v610
      %v612 = vrot.slane %v454, 1
      %v613 = vsel %vm554, %v611, %v612
      %v614 = vor.u32 %v451, %v612
      %v615 = vrot.slane %v462, 1
      %v616 = vsel %vm554, %v614, %v615
      %v617 = vor.u32 %v459, %v615
      %v618 = vrot.slane %v470, 1
      %v619 = vsel %vm554, %v617, %v618
      %v620 = vor.u32 %v467, %v618
      %v621 = vrot.slane %v478, 1
      %v622 = vor.u32 %v475, %v621
      %v623 = vrot.slane %v485, 1
      %v624 = vsel %vm554, %v622, %v623
      %v625 = vor.u32 %v482, %v623
      %v626 = vrot.slane %v493, 1
      %v627 = vsel %vm554, %v625, %v626
      %v628 = vor.u32 %v490, %v626
      %v629 = vrot.slane %v501, 1
      %v630 = vsel %vm554, %v628, %v629
      %v631 = vor.u32 %v498, %v629
      %v632 = vrot.slane %v509, 1
      %v633 = vor.u32 %v506, %v632
      %v634 = vrot.slane %v516, 1
      %v635 = vsel %vm554, %v633, %v634
      %v636 = vor.u32 %v513, %v634
      %v637 = vrot.slane %v524, 1
      %v638 = vsel %vm554, %v636, %v637
      %v639 = vor.u32 %v521, %v637
      %v640 = vrot.slane %v532, 1
      %v641 = vsel %vm554, %v639, %v640
      %v642 = vor.u32 %v529, %v640
      %vm651 = vcmask 1047552
      %vm652 = vmand %vm651, %vm554
      %v653 = vsel %vm652, %v565, 0
      %v654 = vsel %vm652, %v576, 0
      %v655 = vsel %vm652, %v587, 0
      %v656 = vsel %vm652, %v598, 0
      %v657 = vsel %vm652, %v609, 0
      %v658 = vsel %vm652, %v620, 0
      %v659 = vsel %vm652, %v631, 0
      %v660 = vsel %vm652, %v642, 0
      %669 = vrot.lane.b32.xlu0 %v546, 64
      %v670 = vpop.permute.xlu0 %669
      %671 = vrot.lane.b32.xlu0 %v302, 64
      %v672 = vpop.permute.xlu0 %671
      %673 = vrot.lane.b32.xlu0 %v310, 64
      %v674 = vpop.permute.xlu0 %673
      %675 = vrot.lane.b32.xlu0 %v318, 64
      %v676 = vpop.permute.xlu0 %675
      %677 = vrot.lane.b32.xlu0 %v547, 64
      %v678 = vpop.permute.xlu0 %677
      %679 = vrot.lane.b32.xlu0 %v333, 64
      %v680 = vpop.permute.xlu0 %679
      %681 = vrot.lane.b32.xlu0 %v341, 64
      %v682 = vpop.permute.xlu0 %681
      %683 = vrot.lane.b32.xlu0 %v349, 64
      %v684 = vpop.permute.xlu0 %683
      %685 = vrot.lane.b32.xlu0 %v548, 64
      %v686 = vpop.permute.xlu0 %685
      %687 = vrot.lane.b32.xlu0 %v364, 64
      %v688 = vpop.permute.xlu0 %687
      %689 = vrot.lane.b32.xlu0 %v372, 64
      %v690 = vpop.permute.xlu0 %689
      %691 = vrot.lane.b32.xlu0 %v380, 64
      %v692 = vpop.permute.xlu0 %691
      %693 = vrot.lane.b32.xlu0 %v549, 64
      %v694 = vpop.permute.xlu0 %693
      %695 = vrot.lane.b32.xlu0 %v395, 64
      %v696 = vpop.permute.xlu0 %695
      %697 = vrot.lane.b32.xlu0 %v403, 64
      %v698 = vpop.permute.xlu0 %697
      %699 = vrot.lane.b32.xlu0 %v411, 64
      %v700 = vpop.permute.xlu0 %699
      %701 = vrot.lane.b32.xlu0 %v550, 64
      %v702 = vpop.permute.xlu0 %701
      %703 = vrot.lane.b32.xlu0 %v426, 64
      %v704 = vpop.permute.xlu0 %703
      %705 = vrot.lane.b32.xlu0 %v434, 64
      %v706 = vpop.permute.xlu0 %705
      %707 = vrot.lane.b32.xlu0 %v442, 64
      %v708 = vpop.permute.xlu0 %707
      %709 = vrot.lane.b32.xlu0 %v551, 64
      %v710 = vpop.permute.xlu0 %709
      %711 = vrot.lane.b32.xlu0 %v457, 64
      %v712 = vpop.permute.xlu0 %711
      %713 = vrot.lane.b32.xlu0 %v465, 64
      %v714 = vpop.permute.xlu0 %713
      %715 = vrot.lane.b32.xlu0 %v473, 64
      %v716 = vpop.permute.xlu0 %715
      %717 = vrot.lane.b32.xlu0 %v552, 64
      %v718 = vpop.permute.xlu0 %717
      %719 = vrot.lane.b32.xlu0 %v488, 64
      %v720 = vpop.permute.xlu0 %719
      %721 = vrot.lane.b32.xlu0 %v496, 64
      %v722 = vpop.permute.xlu0 %721
      %723 = vrot.lane.b32.xlu0 %v504, 64
      %v724 = vpop.permute.xlu0 %723
      %725 = vrot.lane.b32.xlu0 %v553, 64
      %v726 = vpop.permute.xlu0 %725
      %727 = vrot.lane.b32.xlu0 %v519, 64
      %v728 = vpop.permute.xlu0 %727
      %729 = vrot.lane.b32.xlu0 %v527, 64
      %v730 = vpop.permute.xlu0 %729
      %731 = vrot.lane.b32.xlu0 %v535, 64
      %v732 = vpop.permute.xlu0 %731
      %765 = vrot.lane.b32.xlu0 %v255, 64
      %v766 = vpop.permute.xlu0 %765
      %767 = vrot.lane.b32.xlu0 %v256, 64
      %v768 = vpop.permute.xlu0 %767
      %769 = vrot.lane.b32.xlu0 %v257, 64
      %v770 = vpop.permute.xlu0 %769
      %771 = vrot.lane.b32.xlu0 %v258, 64
      %v772 = vpop.permute.xlu0 %771
      %773 = vrot.lane.b32.xlu0 %v259, 64
      %v774 = vpop.permute.xlu0 %773
      %775 = vrot.lane.b32.xlu0 %v260, 64
      %v776 = vpop.permute.xlu0 %775
      %777 = vrot.lane.b32.xlu0 %v261, 64
      %v778 = vpop.permute.xlu0 %777
      %779 = vrot.lane.b32.xlu0 %v262, 64
      %v780 = vpop.permute.xlu0 %779
      %781 = vrot.lane.b32.xlu0 %v263, 64
      %v782 = vpop.permute.xlu0 %781
      %783 = vrot.lane.b32.xlu0 %v264, 64
      %v784 = vpop.permute.xlu0 %783
      %785 = vrot.lane.b32.xlu0 %v265, 64
      %v786 = vpop.permute.xlu0 %785
      %787 = vrot.lane.b32.xlu0 %v266, 64
      %v788 = vpop.permute.xlu0 %787
      %789 = vrot.lane.b32.xlu0 %v267, 64
      %v790 = vpop.permute.xlu0 %789
      %791 = vrot.lane.b32.xlu0 %v268, 64
      %v792 = vpop.permute.xlu0 %791
      %793 = vrot.lane.b32.xlu0 %v269, 64
      %v794 = vpop.permute.xlu0 %793
      %795 = vrot.lane.b32.xlu0 %v270, 64
      %v796 = vpop.permute.xlu0 %795
      %797 = vrot.lane.b32.xlu0 %v271, 64
      %v798 = vpop.permute.xlu0 %797
      %799 = vrot.lane.b32.xlu0 %v272, 64
      %v800 = vpop.permute.xlu0 %799
      %801 = vrot.lane.b32.xlu0 %v273, 64
      %v802 = vpop.permute.xlu0 %801
      %803 = vrot.lane.b32.xlu0 %v274, 64
      %v804 = vpop.permute.xlu0 %803
      %805 = vrot.lane.b32.xlu0 %v275, 64
      %v806 = vpop.permute.xlu0 %805
      %807 = vrot.lane.b32.xlu0 %v276, 64
      %v808 = vpop.permute.xlu0 %807
      %809 = vrot.lane.b32.xlu0 %v277, 64
      %v810 = vpop.permute.xlu0 %809
      %811 = vrot.lane.b32.xlu0 %v278, 64
      %v812 = vpop.permute.xlu0 %811
      %813 = vrot.lane.b32.xlu0 %v279, 64
      %v814 = vpop.permute.xlu0 %813
      %815 = vrot.lane.b32.xlu0 %v280, 64
      %v816 = vpop.permute.xlu0 %815
      %817 = vrot.lane.b32.xlu0 %v281, 64
      %v818 = vpop.permute.xlu0 %817
      %819 = vrot.lane.b32.xlu0 %v282, 64
      %v820 = vpop.permute.xlu0 %819
      %821 = vrot.lane.b32.xlu0 %v283, 64
      %v822 = vpop.permute.xlu0 %821
      %823 = vrot.lane.b32.xlu0 %v284, 64
      %v824 = vpop.permute.xlu0 %823
      %825 = vrot.lane.b32.xlu0 %v285, 64
      %v826 = vpop.permute.xlu0 %825
      %827 = vrot.lane.b32.xlu0 %v286, 64
      %v828 = vpop.permute.xlu0 %827
      %837 = vrot.lane.b32.xlu0 %v558, 64
      %v838 = vpop.permute.xlu0 %837
      %839 = vrot.lane.b32.xlu0 %v561, 64
      %v840 = vpop.permute.xlu0 %839
      %841 = vrot.lane.b32.xlu0 %v564, 64
      %v842 = vpop.permute.xlu0 %841
      %843 = vrot.lane.b32.xlu0 %v653, 64
      %v844 = vpop.permute.xlu0 %843
      %845 = vrot.lane.b32.xlu0 %v569, 64
      %v846 = vpop.permute.xlu0 %845
      %847 = vrot.lane.b32.xlu0 %v572, 64
      %v848 = vpop.permute.xlu0 %847
      %849 = vrot.lane.b32.xlu0 %v575, 64
      %v850 = vpop.permute.xlu0 %849
      %851 = vrot.lane.b32.xlu0 %v654, 64
      %v852 = vpop.permute.xlu0 %851
      %853 = vrot.lane.b32.xlu0 %v580, 64
      %v854 = vpop.permute.xlu0 %853
      %855 = vrot.lane.b32.xlu0 %v583, 64
      %v856 = vpop.permute.xlu0 %855
      %857 = vrot.lane.b32.xlu0 %v586, 64
      %v858 = vpop.permute.xlu0 %857
      %859 = vrot.lane.b32.xlu0 %v655, 64
      %v860 = vpop.permute.xlu0 %859
      %861 = vrot.lane.b32.xlu0 %v591, 64
      %v862 = vpop.permute.xlu0 %861
      %863 = vrot.lane.b32.xlu0 %v594, 64
      %v864 = vpop.permute.xlu0 %863
      %865 = vrot.lane.b32.xlu0 %v597, 64
      %v866 = vpop.permute.xlu0 %865
      %867 = vrot.lane.b32.xlu0 %v656, 64
      %v868 = vpop.permute.xlu0 %867
      %869 = vrot.lane.b32.xlu0 %v602, 64
      %v870 = vpop.permute.xlu0 %869
      %871 = vrot.lane.b32.xlu0 %v605, 64
      %v872 = vpop.permute.xlu0 %871
      %873 = vrot.lane.b32.xlu0 %v608, 64
      %v874 = vpop.permute.xlu0 %873
      %875 = vrot.lane.b32.xlu0 %v657, 64
      %v876 = vpop.permute.xlu0 %875
      %877 = vrot.lane.b32.xlu0 %v613, 64
      %v878 = vpop.permute.xlu0 %877
      %879 = vrot.lane.b32.xlu0 %v616, 64
      %v880 = vpop.permute.xlu0 %879
      %881 = vrot.lane.b32.xlu0 %v619, 64
      %v882 = vpop.permute.xlu0 %881
      %883 = vrot.lane.b32.xlu0 %v658, 64
      %v884 = vpop.permute.xlu0 %883
      %885 = vrot.lane.b32.xlu0 %v624, 64
      %v886 = vpop.permute.xlu0 %885
      %887 = vrot.lane.b32.xlu0 %v627, 64
      %v888 = vpop.permute.xlu0 %887
      %889 = vrot.lane.b32.xlu0 %v630, 64
      %v890 = vpop.permute.xlu0 %889
      %891 = vrot.lane.b32.xlu0 %v659, 64
      %v892 = vpop.permute.xlu0 %891
      %893 = vrot.lane.b32.xlu0 %v635, 64
      %v894 = vpop.permute.xlu0 %893
      %895 = vrot.lane.b32.xlu0 %v638, 64
      %v896 = vpop.permute.xlu0 %895
      %897 = vrot.lane.b32.xlu0 %v641, 64
      %v898 = vpop.permute.xlu0 %897
      %899 = vrot.lane.b32.xlu0 %v660, 64
      %v900 = vpop.permute.xlu0 %899
      %vm901 = vcmask 523264
      %v904 = vsel %vm901, %v670, %v766
      %v908 = vsel %vm901, %v672, %v768
      %v912 = vsel %vm901, %v674, %v770
      %v916 = vsel %vm901, %v676, %v772
      %v920 = vsel %vm901, %v678, %v774
      %v924 = vsel %vm901, %v680, %v776
      %v928 = vsel %vm901, %v682, %v778
      %v932 = vsel %vm901, %v684, %v780
      %v936 = vsel %vm901, %v686, %v782
      %v940 = vsel %vm901, %v688, %v784
      %v944 = vsel %vm901, %v690, %v786
      %v948 = vsel %vm901, %v692, %v788
      %v952 = vsel %vm901, %v694, %v790
      %v956 = vsel %vm901, %v696, %v792
      %v960 = vsel %vm901, %v698, %v794
      %v964 = vsel %vm901, %v700, %v796
      %v968 = vsel %vm901, %v702, %v798
      %v972 = vsel %vm901, %v704, %v800
      %v976 = vsel %vm901, %v706, %v802
      %v980 = vsel %vm901, %v708, %v804
      %v984 = vsel %vm901, %v710, %v806
      %v988 = vsel %vm901, %v712, %v808
      %v992 = vsel %vm901, %v714, %v810
      %v996 = vsel %vm901, %v716, %v812
      %v1000 = vsel %vm901, %v718, %v814
      %v1004 = vsel %vm901, %v720, %v816
      %v1008 = vsel %vm901, %v722, %v818
      %v1012 = vsel %vm901, %v724, %v820
      %v1016 = vsel %vm901, %v726, %v822
      %v1020 = vsel %vm901, %v728, %v824
      %v1024 = vsel %vm901, %v730, %v826
      %v1028 = vsel %vm901, %v732, %v828
      %v1031 = vsel %vm901, %v766, %v838
      %v1034 = vsel %vm901, %v768, %v840
      %v1037 = vsel %vm901, %v770, %v842
      %v1040 = vsel %vm901, %v772, %v844
      %v1043 = vsel %vm901, %v774, %v846
      %v1046 = vsel %vm901, %v776, %v848
      %v1049 = vsel %vm901, %v778, %v850
      %v1052 = vsel %vm901, %v780, %v852
      %v1055 = vsel %vm901, %v782, %v854
      %v1058 = vsel %vm901, %v784, %v856
      %v1061 = vsel %vm901, %v786, %v858
      %v1064 = vsel %vm901, %v788, %v860
      %v1067 = vsel %vm901, %v790, %v862
      %v1070 = vsel %vm901, %v792, %v864
      %v1073 = vsel %vm901, %v794, %v866
      %v1076 = vsel %vm901, %v796, %v868
      %v1079 = vsel %vm901, %v798, %v870
      %v1082 = vsel %vm901, %v800, %v872
      %v1085 = vsel %vm901, %v802, %v874
      %v1088 = vsel %vm901, %v804, %v876
      %v1091 = vsel %vm901, %v806, %v878
      %v1094 = vsel %vm901, %v808, %v880
      %v1097 = vsel %vm901, %v810, %v882
      %v1100 = vsel %vm901, %v812, %v884
      %v1103 = vsel %vm901, %v814, %v886
      %v1106 = vsel %vm901, %v816, %v888
      %v1109 = vsel %vm901, %v818, %v890
      %v1112 = vsel %vm901, %v820, %v892
      %v1115 = vsel %vm901, %v822, %v894
      %v1118 = vsel %vm901, %v824, %v896
      %v1121 = vsel %vm901, %v826, %v898
      %v1124 = vsel %vm901, %v828, %v900
      %v1126 = vld [vmem:[%s1] sm:$0xf]
      %v1127 = vld [vmem:[%s1 + $0x4] sm:$0xf]
      %v1128 = vld [vmem:[%s1 + $0x8] sm:$0xf]
      %v1129 = vld [vmem:[%s1 + $0xc] sm:$0xf]
      %v1130 = vld [vmem:[%s1 + $0x10] sm:$0xf]
      %v1131 = vld [vmem:[%s1 + $0x14] sm:$0xf]
      %v1132 = vld [vmem:[%s1 + $0x18] sm:$0xf]
      %v1133 = vld [vmem:[%s1 + $0x1c] sm:$0xf]
      %v1134 = vld [vmem:[%s1 + $0x20] sm:$0xf]
      %v1135 = vld [vmem:[%s1 + $0x24] sm:$0xf]
      %v1136 = vld [vmem:[%s1 + $0x28] sm:$0xf]
      %v1137 = vld [vmem:[%s1 + $0x2c] sm:$0xf]
      %v1138 = vld [vmem:[%s1 + $0x30] sm:$0xf]
      %v1139 = vld [vmem:[%s1 + $0x34] sm:$0xf]
      %v1140 = vld [vmem:[%s1 + $0x38] sm:$0xf]
      %v1141 = vld [vmem:[%s1 + $0x3c] sm:$0xf]
      %v1142 = vld [vmem:[%s1 + $0x40] sm:$0xf]
      %v1143 = vld [vmem:[%s1 + $0x44] sm:$0xf]
      %v1144 = vld [vmem:[%s1 + $0x48] sm:$0xf]
      %v1145 = vld [vmem:[%s1 + $0x4c] sm:$0xf]
      %v1146 = vld [vmem:[%s1 + $0x50] sm:$0xf]
      %v1147 = vld [vmem:[%s1 + $0x54] sm:$0xf]
      %v1148 = vld [vmem:[%s1 + $0x58] sm:$0xf]
      %v1149 = vld [vmem:[%s1 + $0x5c] sm:$0xf]
      %v1150 = vld [vmem:[%s1 + $0x60] sm:$0xf]
      %v1151 = vld [vmem:[%s1 + $0x64] sm:$0xf]
      %v1152 = vld [vmem:[%s1 + $0x68] sm:$0xf]
      %v1153 = vld [vmem:[%s1 + $0x6c] sm:$0xf]
      %v1154 = vld [vmem:[%s1 + $0x70] sm:$0xf]
      %v1155 = vld [vmem:[%s1 + $0x74] sm:$0xf]
      %v1156 = vld [vmem:[%s1 + $0x78] sm:$0xf]
      %v1157 = vld [vmem:[%s1 + $0x7c] sm:$0xf]
      %v1190 = vunpack.c.l.b16 %v1126
      %v1191 = vunpack.c.l.b16 %v1127
      %v1192 = vunpack.c.l.b16 %v1128
      %v1193 = vunpack.c.l.b16 %v1129
      %v1194 = vunpack.c.l.b16 %v1130
      %v1195 = vunpack.c.l.b16 %v1131
      %v1196 = vunpack.c.l.b16 %v1132
      %v1197 = vunpack.c.l.b16 %v1133
      %v1198 = vunpack.c.l.b16 %v1134
      %v1199 = vunpack.c.l.b16 %v1135
      %v1200 = vunpack.c.l.b16 %v1136
      %v1201 = vunpack.c.l.b16 %v1137
      %v1202 = vunpack.c.l.b16 %v1138
      %v1203 = vunpack.c.l.b16 %v1139
      %v1204 = vunpack.c.l.b16 %v1140
      %v1205 = vunpack.c.l.b16 %v1141
      %v1206 = vunpack.c.l.b16 %v1142
      %v1207 = vunpack.c.l.b16 %v1143
      %v1208 = vunpack.c.l.b16 %v1144
      %v1209 = vunpack.c.l.b16 %v1145
      %v1210 = vunpack.c.l.b16 %v1146
      %v1211 = vunpack.c.l.b16 %v1147
      %v1212 = vunpack.c.l.b16 %v1148
      %v1213 = vunpack.c.l.b16 %v1149
      %v1214 = vunpack.c.l.b16 %v1150
      %v1215 = vunpack.c.l.b16 %v1151
      %v1216 = vunpack.c.l.b16 %v1152
      %v1217 = vunpack.c.l.b16 %v1153
      %v1218 = vunpack.c.l.b16 %v1154
      %v1219 = vunpack.c.l.b16 %v1155
      %v1220 = vunpack.c.l.b16 %v1156
      %v1221 = vunpack.c.l.b16 %v1157
      %v1222 = vpack.c.b16 %v1191, %v1190
      %v1223 = vpack.c.b16 %v1193, %v1192
      %v1224 = vpack.c.b16 %v1195, %v1194
      %v1225 = vpack.c.b16 %v1197, %v1196
      %v1226 = vpack.c.b16 %v1199, %v1198
      %v1227 = vpack.c.b16 %v1201, %v1200
      %v1228 = vpack.c.b16 %v1203, %v1202
      %v1229 = vpack.c.b16 %v1205, %v1204
      %v1230 = vpack.c.b16 %v1207, %v1206
      %v1231 = vpack.c.b16 %v1209, %v1208
      %v1232 = vpack.c.b16 %v1211, %v1210
      %v1233 = vpack.c.b16 %v1213, %v1212
      %v1234 = vpack.c.b16 %v1215, %v1214
      %v1235 = vpack.c.b16 %v1217, %v1216
      %v1236 = vpack.c.b16 %v1219, %v1218
      %v1237 = vpack.c.b16 %v1221, %v1220
      %1254 = vmatprep.subr.bf16.mxu0 0
      %1255 = vmatpush1.bf16.msra.mxu0 %v1222
      %1256 = vmatprep.subr.bf16.mxu0 0
      %1257 = vmatpush1.bf16.msra.mxu0 %v1223
      %1258 = vmatprep.subr.bf16.mxu0 0
      %1259 = vmatpush1.bf16.msra.mxu0 %v1224
      %1260 = vmatprep.subr.bf16.mxu0 0
      %1261 = vmatpush1.bf16.msra.mxu0 %v1225
      %1262 = vmatprep.subr.bf16.mxu0 0
      %1263 = vmatpush1.bf16.msra.mxu0 %v1226
      %1264 = vmatprep.subr.bf16.mxu0 0
      %1265 = vmatpush1.bf16.msra.mxu0 %v1227
      %1266 = vmatprep.subr.bf16.mxu0 0
      %1267 = vmatpush1.bf16.msra.mxu0 %v1228
      %1268 = vmatprep.subr.bf16.mxu0 0
      %1269 = vmatpush1.bf16.msra.mxu0 %v1229
      %1270 = vmatprep.subr.bf16.mxu0 0
      %1271 = vmatpush1.bf16.msra.mxu0 %v1230
      %1272 = vmatprep.subr.bf16.mxu0 0
      %1273 = vmatpush1.bf16.msra.mxu0 %v1231
      %1274 = vmatprep.subr.bf16.mxu0 0
      %1275 = vmatpush1.bf16.msra.mxu0 %v1232
      %1276 = vmatprep.subr.bf16.mxu0 0
      %1277 = vmatpush1.bf16.msra.mxu0 %v1233
      %1278 = vmatprep.subr.bf16.mxu0 0
      %1279 = vmatpush1.bf16.msra.mxu0 %v1234
      %1280 = vmatprep.subr.bf16.mxu0 0
      %1281 = vmatpush1.bf16.msra.mxu0 %v1235
      %1282 = vmatprep.subr.bf16.mxu0 0
      %1283 = vmatpush1.bf16.msra.mxu0 %v1236
      %1284 = vmatprep.subr.bf16.mxu0 0
      %1285 = vmatpush1.bf16.msra.mxu0 %v1237
      %1286 = vmatprep.mubr.bf16.mxu0 %v1031
      %1287 = vmatmul.mubr.bf16.gmra.mrb[0].mxu0 %v904
      %v1288 = vpop.f32.mrb[0].mxu0
      %v1289 = vadd.f32 0.0, %v1288
      %v1290 = vpop.f32.mrb[0].mxu0
      %v1291 = vpop.f32.mrb[0].mxu0
      %v1292 = vadd.f32 0.0, %v1291
      %v1293 = vpop.f32.mrb[0].mxu0
      %1294 = vmatprep.mubr.bf16.mxu0 %v1034
      %1295 = vmatmul.mubr.bf16.gmra.mrb[0].mxu0 %v908
      %v1296 = vpop.f32.mrb[0].mxu0
      %v1297 = vadd.f32 0.0, %v1296
      %v1298 = vpop.f32.mrb[0].mxu0
      %v1299 = vpop.f32.mrb[0].mxu0
      %v1300 = vadd.f32 0.0, %v1299
      %v1301 = vpop.f32.mrb[0].mxu0
      %1302 = vmatprep.mubr.bf16.mxu0 %v1037
      %1303 = vmatmul.mubr.bf16.gmra.mrb[0].mxu0 %v912
      %v1304 = vpop.f32.mrb[0].mxu0
      %v1305 = vadd.f32 0.0, %v1304
      %v1306 = vpop.f32.mrb[0].mxu0
      %v1307 = vpop.f32.mrb[0].mxu0
      %v1308 = vadd.f32 0.0, %v1307
      %v1309 = vpop.f32.mrb[0].mxu0
      %1310 = vmatprep.mubr.bf16.mxu0 %v1040
      %1311 = vmatmul.mubr.bf16.gmra.mrb[0].mxu0 %v916
      %v1312 = vpop.f32.mrb[0].mxu0
      %v1313 = vadd.f32 0.0, %v1312
      %v1314 = vpop.f32.mrb[0].mxu0
      %v1315 = vpop.f32.mrb[0].mxu0
      %v1316 = vadd.f32 0.0, %v1315
      %v1317 = vpop.f32.mrb[0].mxu0
      %1318 = vmatprep.mubr.bf16.mxu0 %v1043
      %1319 = vmatmul.mubr.bf16.gmra.mrb[0].mxu0 %v920
      %v1320 = vpop.f32.mrb[0].mxu0
      %v1321 = vadd.f32 0.0, %v1320
      %v1322 = vpop.f32.mrb[0].mxu0
      %v1323 = vpop.f32.mrb[0].mxu0
      %v1324 = vadd.f32 0.0, %v1323
      %v1325 = vpop.f32.mrb[0].mxu0
      %1326 = vmatprep.mubr.bf16.mxu0 %v1046
      %1327 = vmatmul.mubr.bf16.gmra.mrb[0].mxu0 %v924
      %v1328 = vpop.f32.mrb[0].mxu0
      %v1329 = vadd.f32 0.0, %v1328
      %v1330 = vpop.f32.mrb[0].mxu0
      %v1331 = vpop.f32.mrb[0].mxu0
      %v1332 = vadd.f32 0.0, %v1331
      %v1333 = vpop.f32.mrb[0].mxu0
      %1334 = vmatprep.mubr.bf16.mxu0 %v1049
      %1335 = vmatmul.mubr.bf16.gmra.mrb[0].mxu0 %v928
      %v1336 = vpop.f32.mrb[0].mxu0
      %v1337 = vadd.f32 0.0, %v1336
      %v1338 = vpop.f32.mrb[0].mxu0
      %v1339 = vpop.f32.mrb[0].mxu0
      %v1340 = vadd.f32 0.0, %v1339
      %v1341 = vpop.f32.mrb[0].mxu0
      %1342 = vmatprep.mubr.bf16.mxu0 %v1052
      %1343 = vmatmul.mubr.bf16.gmra.mrb[0].mxu0 %v932
      %v1344 = vpop.f32.mrb[0].mxu0
      %v1345 = vadd.f32 0.0, %v1344
      %v1346 = vpop.f32.mrb[0].mxu0
      %v1347 = vpop.f32.mrb[0].mxu0
      %v1348 = vadd.f32 0.0, %v1347
      %v1349 = vpop.f32.mrb[0].mxu0
      %1350 = vmatprep.mubr.bf16.mxu0 %v1055
      %1351 = vmatmul.mubr.bf16.gmra.mrb[0].mxu0 %v936
      %v1352 = vpop.f32.mrb[0].mxu0
      %v1353 = vadd.f32 0.0, %v1352
      %v1354 = vpop.f32.mrb[0].mxu0
      %v1355 = vpop.f32.mrb[0].mxu0
      %v1356 = vadd.f32 0.0, %v1355
      %v1357 = vpop.f32.mrb[0].mxu0
      %1358 = vmatprep.mubr.bf16.mxu0 %v1058
      %1359 = vmatmul.mubr.bf16.gmra.mrb[0].mxu0 %v940
      %v1360 = vpop.f32.mrb[0].mxu0
      %v1361 = vadd.f32 0.0, %v1360
      %v1362 = vpop.f32.mrb[0].mxu0
      %v1363 = vpop.f32.mrb[0].mxu0
      %v1364 = vadd.f32 0.0, %v1363
      %v1365 = vpop.f32.mrb[0].mxu0
      %1366 = vmatprep.mubr.bf16.mxu0 %v1061
      %1367 = vmatmul.mubr.bf16.gmra.mrb[0].mxu0 %v944
      %v1368 = vpop.f32.mrb[0].mxu0
      %v1369 = vadd.f32 0.0, %v1368
      %v1370 = vpop.f32.mrb[0].mxu0
      %v1371 = vpop.f32.mrb[0].mxu0
      %v1372 = vadd.f32 0.0, %v1371
      %v1373 = vpop.f32.mrb[0].mxu0
      %1374 = vmatprep.mubr.bf16.mxu0 %v1064
      %1375 = vmatmul.mubr.bf16.gmra.mrb[0].mxu0 %v948
      %v1376 = vpop.f32.mrb[0].mxu0
      %v1377 = vadd.f32 0.0, %v1376
      %v1378 = vpop.f32.mrb[0].mxu0
      %v1379 = vpop.f32.mrb[0].mxu0
      %v1380 = vadd.f32 0.0, %v1379
      %v1381 = vpop.f32.mrb[0].mxu0
      %1382 = vmatprep.mubr.bf16.mxu0 %v1067
      %1383 = vmatmul.mubr.bf16.gmra.mrb[0].mxu0 %v952
      %v1384 = vpop.f32.mrb[0].mxu0
      %v1385 = vadd.f32 0.0, %v1384
      %v1386 = vpop.f32.mrb[0].mxu0
      %v1387 = vpop.f32.mrb[0].mxu0
      %v1388 = vadd.f32 0.0, %v1387
      %v1389 = vpop.f32.mrb[0].mxu0
      %1390 = vmatprep.mubr.bf16.mxu0 %v1070
      %1391 = vmatmul.mubr.bf16.gmra.mrb[0].mxu0 %v956
      %v1392 = vpop.f32.mrb[0].mxu0
      %v1393 = vadd.f32 0.0, %v1392
      %v1394 = vpop.f32.mrb[0].mxu0
      %v1395 = vpop.f32.mrb[0].mxu0
      %v1396 = vadd.f32 0.0, %v1395
      %v1397 = vpop.f32.mrb[0].mxu0
      %1398 = vmatprep.mubr.bf16.mxu0 %v1073
      %1399 = vmatmul.mubr.bf16.gmra.mrb[0].mxu0 %v960
      %v1400 = vpop.f32.mrb[0].mxu0
      %v1401 = vadd.f32 0.0, %v1400
      %v1402 = vpop.f32.mrb[0].mxu0
      %v1403 = vpop.f32.mrb[0].mxu0
      %v1404 = vadd.f32 0.0, %v1403
      %v1405 = vpop.f32.mrb[0].mxu0
      %1406 = vmatprep.mubr.bf16.mxu0 %v1076
      %1407 = vmatmul.mubr.bf16.gmra.mrb[0].mxu0 %v964
      %v1408 = vpop.f32.mrb[0].mxu0
      %v1409 = vadd.f32 0.0, %v1408
      %v1410 = vpop.f32.mrb[0].mxu0
      %v1411 = vpop.f32.mrb[0].mxu0
      %v1412 = vadd.f32 0.0, %v1411
      %v1413 = vpop.f32.mrb[0].mxu0
      %1414 = vmatprep.mubr.bf16.mxu0 %v1079
      %1415 = vmatmul.mubr.bf16.gmra.mrb[0].mxu0 %v968
      %v1416 = vpop.f32.mrb[0].mxu0
      %v1417 = vadd.f32 0.0, %v1416
      %v1418 = vpop.f32.mrb[0].mxu0
      %v1419 = vpop.f32.mrb[0].mxu0
      %v1420 = vadd.f32 0.0, %v1419
      %v1421 = vpop.f32.mrb[0].mxu0
      %1422 = vmatprep.mubr.bf16.mxu0 %v1082
      %1423 = vmatmul.mubr.bf16.gmra.mrb[0].mxu0 %v972
      %v1424 = vpop.f32.mrb[0].mxu0
      %v1425 = vadd.f32 0.0, %v1424
      %v1426 = vpop.f32.mrb[0].mxu0
      %v1427 = vpop.f32.mrb[0].mxu0
      %v1428 = vadd.f32 0.0, %v1427
      %v1429 = vpop.f32.mrb[0].mxu0
      %1430 = vmatprep.mubr.bf16.mxu0 %v1085
      %1431 = vmatmul.mubr.bf16.gmra.mrb[0].mxu0 %v976
      %v1432 = vpop.f32.mrb[0].mxu0
      %v1433 = vadd.f32 0.0, %v1432
      %v1434 = vpop.f32.mrb[0].mxu0
      %v1435 = vpop.f32.mrb[0].mxu0
      %v1436 = vadd.f32 0.0, %v1435
      %v1437 = vpop.f32.mrb[0].mxu0
      %1438 = vmatprep.mubr.bf16.mxu0 %v1088
      %1439 = vmatmul.mubr.bf16.gmra.mrb[0].mxu0 %v980
      %v1440 = vpop.f32.mrb[0].mxu0
      %v1441 = vadd.f32 0.0, %v1440
      %v1442 = vpop.f32.mrb[0].mxu0
      %v1443 = vpop.f32.mrb[0].mxu0
      %v1444 = vadd.f32 0.0, %v1443
      %v1445 = vpop.f32.mrb[0].mxu0
      %1446 = vmatprep.mubr.bf16.mxu0 %v1091
      %1447 = vmatmul.mubr.bf16.gmra.mrb[0].mxu0 %v984
      %v1448 = vpop.f32.mrb[0].mxu0
      %v1449 = vadd.f32 0.0, %v1448
      %v1450 = vpop.f32.mrb[0].mxu0
      %v1451 = vpop.f32.mrb[0].mxu0
      %v1452 = vadd.f32 0.0, %v1451
      %v1453 = vpop.f32.mrb[0].mxu0
      %1454 = vmatprep.mubr.bf16.mxu0 %v1094
      %1455 = vmatmul.mubr.bf16.gmra.mrb[0].mxu0 %v988
      %v1456 = vpop.f32.mrb[0].mxu0
      %v1457 = vadd.f32 0.0, %v1456
      %v1458 = vpop.f32.mrb[0].mxu0
      %v1459 = vpop.f32.mrb[0].mxu0
      %v1460 = vadd.f32 0.0, %v1459
      %v1461 = vpop.f32.mrb[0].mxu0
      %1462 = vmatprep.mubr.bf16.mxu0 %v1097
      %1463 = vmatmul.mubr.bf16.gmra.mrb[0].mxu0 %v992
      %v1464 = vpop.f32.mrb[0].mxu0
      %v1465 = vadd.f32 0.0, %v1464
      %v1466 = vpop.f32.mrb[0].mxu0
      %v1467 = vpop.f32.mrb[0].mxu0
      %v1468 = vadd.f32 0.0, %v1467
      %v1469 = vpop.f32.mrb[0].mxu0
      %1470 = vmatprep.mubr.bf16.mxu0 %v1100
      %1471 = vmatmul.mubr.bf16.gmra.mrb[0].mxu0 %v996
      %v1472 = vpop.f32.mrb[0].mxu0
      %v1473 = vadd.f32 0.0, %v1472
      %v1474 = vpop.f32.mrb[0].mxu0
      %v1475 = vpop.f32.mrb[0].mxu0
      %v1476 = vadd.f32 0.0, %v1475
      %v1477 = vpop.f32.mrb[0].mxu0
      %1478 = vmatprep.mubr.bf16.mxu0 %v1103
      %1479 = vmatmul.mubr.bf16.gmra.mrb[0].mxu0 %v1000
      %v1480 = vpop.f32.mrb[0].mxu0
      %v1481 = vadd.f32 0.0, %v1480
      %v1482 = vpop.f32.mrb[0].mxu0
      %v1483 = vpop.f32.mrb[0].mxu0
      %v1484 = vadd.f32 0.0, %v1483
      %v1485 = vpop.f32.mrb[0].mxu0
      %1486 = vmatprep.mubr.bf16.mxu0 %v1106
      %1487 = vmatmul.mubr.bf16.gmra.mrb[0].mxu0 %v1004
      %v1488 = vpop.f32.mrb[0].mxu0
      %v1489 = vadd.f32 0.0, %v1488
      %v1490 = vpop.f32.mrb[0].mxu0
      %v1491 = vpop.f32.mrb[0].mxu0
      %v1492 = vadd.f32 0.0, %v1491
      %v1493 = vpop.f32.mrb[0].mxu0
      %1494 = vmatprep.mubr.bf16.mxu0 %v1109
      %1495 = vmatmul.mubr.bf16.gmra.mrb[0].mxu0 %v1008
      %v1496 = vpop.f32.mrb[0].mxu0
      %v1497 = vadd.f32 0.0, %v1496
      %v1498 = vpop.f32.mrb[0].mxu0
      %v1499 = vpop.f32.mrb[0].mxu0
      %v1500 = vadd.f32 0.0, %v1499
      %v1501 = vpop.f32.mrb[0].mxu0
      %1502 = vmatprep.mubr.bf16.mxu0 %v1112
      %1503 = vmatmul.mubr.bf16.gmra.mrb[0].mxu0 %v1012
      %v1504 = vpop.f32.mrb[0].mxu0
      %v1505 = vadd.f32 0.0, %v1504
      %v1506 = vpop.f32.mrb[0].mxu0
      %v1507 = vpop.f32.mrb[0].mxu0
      %v1508 = vadd.f32 0.0, %v1507
      %v1509 = vpop.f32.mrb[0].mxu0
      %1510 = vmatprep.mubr.bf16.mxu0 %v1115
      %1511 = vmatmul.mubr.bf16.gmra.mrb[0].mxu0 %v1016
      %v1512 = vpop.f32.mrb[0].mxu0
      %v1513 = vadd.f32 0.0, %v1512
      %v1514 = vpop.f32.mrb[0].mxu0
      %v1515 = vpop.f32.mrb[0].mxu0
      %v1516 = vadd.f32 0.0, %v1515
      %v1517 = vpop.f32.mrb[0].mxu0
      %1518 = vmatprep.mubr.bf16.mxu0 %v1118
      %1519 = vmatmul.mubr.bf16.gmra.mrb[0].mxu0 %v1020
      %v1520 = vpop.f32.mrb[0].mxu0
      %v1521 = vadd.f32 0.0, %v1520
      %v1522 = vpop.f32.mrb[0].mxu0
      %v1523 = vpop.f32.mrb[0].mxu0
      %v1524 = vadd.f32 0.0, %v1523
      %v1525 = vpop.f32.mrb[0].mxu0
      %1526 = vmatprep.mubr.bf16.mxu0 %v1121
      %1527 = vmatmul.mubr.bf16.gmra.mrb[0].mxu0 %v1024
      %v1528 = vpop.f32.mrb[0].mxu0
      %v1529 = vadd.f32 0.0, %v1528
      %v1530 = vpop.f32.mrb[0].mxu0
      %v1531 = vpop.f32.mrb[0].mxu0
      %v1532 = vadd.f32 0.0, %v1531
      %v1533 = vpop.f32.mrb[0].mxu0
      %1534 = vmatprep.mubr.bf16.mxu0 %v1124
      %1535 = vmatmul.mubr.bf16.gmra.mrb[0].mxu0 %v1028
      %v1536 = vpop.f32.mrb[0].mxu0
      %v1537 = vadd.f32 0.0, %v1536
      %v1538 = vpop.f32.mrb[0].mxu0
      %v1539 = vpop.f32.mrb[0].mxu0
      %v1540 = vadd.f32 0.0, %v1539
      %v1541 = vpop.f32.mrb[0].mxu0
      %1542 = vdwg.mxu0
      %v1543 = vpack.c.bf16 %v1292, %v1289
      %v1544 = vpack.c.bf16 %v1300, %v1297
      %v1545 = vpack.c.bf16 %v1308, %v1305
      %v1546 = vpack.c.bf16 %v1316, %v1313
      %v1547 = vpack.c.bf16 %v1324, %v1321
      %v1548 = vpack.c.bf16 %v1332, %v1329
      %v1549 = vpack.c.bf16 %v1340, %v1337
      %v1550 = vpack.c.bf16 %v1348, %v1345
      %v1551 = vpack.c.bf16 %v1356, %v1353
      %v1552 = vpack.c.bf16 %v1364, %v1361
      %v1553 = vpack.c.bf16 %v1372, %v1369
      %v1554 = vpack.c.bf16 %v1380, %v1377
      %v1555 = vpack.c.bf16 %v1388, %v1385
      %v1556 = vpack.c.bf16 %v1396, %v1393
      %v1557 = vpack.c.bf16 %v1404, %v1401
      %v1558 = vpack.c.bf16 %v1412, %v1409
      %v1559 = vpack.c.bf16 %v1420, %v1417
      %v1560 = vpack.c.bf16 %v1428, %v1425
      %v1561 = vpack.c.bf16 %v1436, %v1433
      %v1562 = vpack.c.bf16 %v1444, %v1441
      %v1563 = vpack.c.bf16 %v1452, %v1449
      %v1564 = vpack.c.bf16 %v1460, %v1457
      %v1565 = vpack.c.bf16 %v1468, %v1465
      %v1566 = vpack.c.bf16 %v1476, %v1473
      %v1567 = vpack.c.bf16 %v1484, %v1481
      %v1568 = vpack.c.bf16 %v1492, %v1489
      %v1569 = vpack.c.bf16 %v1500, %v1497
      %v1570 = vpack.c.bf16 %v1508, %v1505
      %v1571 = vpack.c.bf16 %v1516, %v1513
      %v1572 = vpack.c.bf16 %v1524, %v1521
      %v1573 = vpack.c.bf16 %v1532, %v1529
      %v1574 = vpack.c.bf16 %v1540, %v1537
      %v1607 = vunpack.c.l.b16 %v1543
      %v1608 = vunpack.c.h.b16 %v1543
      %v1609 = vunpack.c.l.b16 %v1544
      %v1610 = vunpack.c.h.b16 %v1544
      %v1611 = vunpack.c.l.b16 %v1545
      %v1612 = vunpack.c.h.b16 %v1545
      %v1613 = vunpack.c.l.b16 %v1546
      %v1614 = vunpack.c.h.b16 %v1546
      %v1615 = vunpack.c.l.b16 %v1547
      %v1616 = vunpack.c.h.b16 %v1547
      %v1617 = vunpack.c.l.b16 %v1548
      %v1618 = vunpack.c.h.b16 %v1548
      %v1619 = vunpack.c.l.b16 %v1549
      %v1620 = vunpack.c.h.b16 %v1549
      %v1621 = vunpack.c.l.b16 %v1550
      %v1622 = vunpack.c.h.b16 %v1550
      %v1623 = vunpack.c.l.b16 %v1551
      %v1624 = vunpack.c.h.b16 %v1551
      %v1625 = vunpack.c.l.b16 %v1552
      %v1626 = vunpack.c.h.b16 %v1552
      %v1627 = vunpack.c.l.b16 %v1553
      %v1628 = vunpack.c.h.b16 %v1553
      %v1629 = vunpack.c.l.b16 %v1554
      %v1630 = vunpack.c.h.b16 %v1554
      %v1631 = vunpack.c.l.b16 %v1555
      %v1632 = vunpack.c.h.b16 %v1555
      %v1633 = vunpack.c.l.b16 %v1556
      %v1634 = vunpack.c.h.b16 %v1556
      %v1635 = vunpack.c.l.b16 %v1557
      %v1636 = vunpack.c.h.b16 %v1557
      %v1637 = vunpack.c.l.b16 %v1558
      %v1638 = vunpack.c.h.b16 %v1558
      %v1639 = vunpack.c.l.b16 %v1559
      %v1640 = vunpack.c.h.b16 %v1559
      %v1641 = vunpack.c.l.b16 %v1560
      %v1642 = vunpack.c.h.b16 %v1560
      %v1643 = vunpack.c.l.b16 %v1561
      %v1644 = vunpack.c.h.b16 %v1561
      %v1645 = vunpack.c.l.b16 %v1562
      %v1646 = vunpack.c.h.b16 %v1562
      %v1647 = vunpack.c.l.b16 %v1563
      %v1648 = vunpack.c.h.b16 %v1563
      %v1649 = vunpack.c.l.b16 %v1564
      %v1650 = vunpack.c.h.b16 %v1564
      %v1651 = vunpack.c.l.b16 %v1565
      %v1652 = vunpack.c.h.b16 %v1565
      %v1653 = vunpack.c.l.b16 %v1566
      %v1654 = vunpack.c.h.b16 %v1566
      %v1655 = vunpack.c.l.b16 %v1567
      %v1656 = vunpack.c.h.b16 %v1567
      %v1657 = vunpack.c.l.b16 %v1568
      %v1658 = vunpack.c.h.b16 %v1568
      %v1659 = vunpack.c.l.b16 %v1569
      %v1660 = vunpack.c.h.b16 %v1569
      %v1661 = vunpack.c.l.b16 %v1570
      %v1662 = vunpack.c.h.b16 %v1570
      %v1663 = vunpack.c.l.b16 %v1571
      %v1664 = vunpack.c.h.b16 %v1571
      %v1665 = vunpack.c.l.b16 %v1572
      %v1666 = vunpack.c.h.b16 %v1572
      %v1667 = vunpack.c.l.b16 %v1573
      %v1668 = vunpack.c.h.b16 %v1573
      %v1669 = vunpack.c.l.b16 %v1574
      %v1670 = vunpack.c.h.b16 %v1574
      %v1671 = vpack.c.b16 %v1607, %v1607
      %v1672 = vpack.c.b16 %v1608, %v1608
      %v1673 = vpack.c.b16 %v1609, %v1609
      %v1674 = vpack.c.b16 %v1610, %v1610
      %v1675 = vpack.c.b16 %v1611, %v1611
      %v1676 = vpack.c.b16 %v1612, %v1612
      %v1677 = vpack.c.b16 %v1613, %v1613
      %v1678 = vpack.c.b16 %v1614, %v1614
      %v1679 = vpack.c.b16 %v1615, %v1615
      %v1680 = vpack.c.b16 %v1616, %v1616
      %v1681 = vpack.c.b16 %v1617, %v1617
      %v1682 = vpack.c.b16 %v1618, %v1618
      %v1683 = vpack.c.b16 %v1619, %v1619
      %v1684 = vpack.c.b16 %v1620, %v1620
      %v1685 = vpack.c.b16 %v1621, %v1621
      %v1686 = vpack.c.b16 %v1622, %v1622
      %v1687 = vpack.c.b16 %v1623, %v1623
      %v1688 = vpack.c.b16 %v1624, %v1624
      %v1689 = vpack.c.b16 %v1625, %v1625
      %v1690 = vpack.c.b16 %v1626, %v1626
      %v1691 = vpack.c.b16 %v1627, %v1627
      %v1692 = vpack.c.b16 %v1628, %v1628
      %v1693 = vpack.c.b16 %v1629, %v1629
      %v1694 = vpack.c.b16 %v1630, %v1630
      %v1695 = vpack.c.b16 %v1631, %v1631
      %v1696 = vpack.c.b16 %v1632, %v1632
      %v1697 = vpack.c.b16 %v1633, %v1633
      %v1698 = vpack.c.b16 %v1634, %v1634
      %v1699 = vpack.c.b16 %v1635, %v1635
      %v1700 = vpack.c.b16 %v1636, %v1636
      %v1701 = vpack.c.b16 %v1637, %v1637
      %v1702 = vpack.c.b16 %v1638, %v1638
      %v1703 = vpack.c.b16 %v1639, %v1639
      %v1704 = vpack.c.b16 %v1640, %v1640
      %v1705 = vpack.c.b16 %v1641, %v1641
      %v1706 = vpack.c.b16 %v1642, %v1642
      %v1707 = vpack.c.b16 %v1643, %v1643
      %v1708 = vpack.c.b16 %v1644, %v1644
      %v1709 = vpack.c.b16 %v1645, %v1645
      %v1710 = vpack.c.b16 %v1646, %v1646
      %v1711 = vpack.c.b16 %v1647, %v1647
      %v1712 = vpack.c.b16 %v1648, %v1648
      %v1713 = vpack.c.b16 %v1649, %v1649
      %v1714 = vpack.c.b16 %v1650, %v1650
      %v1715 = vpack.c.b16 %v1651, %v1651
      %v1716 = vpack.c.b16 %v1652, %v1652
      %v1717 = vpack.c.b16 %v1653, %v1653
      %v1718 = vpack.c.b16 %v1654, %v1654
      %v1719 = vpack.c.b16 %v1655, %v1655
      %v1720 = vpack.c.b16 %v1656, %v1656
      %v1721 = vpack.c.b16 %v1657, %v1657
      %v1722 = vpack.c.b16 %v1658, %v1658
      %v1723 = vpack.c.b16 %v1659, %v1659
      %v1724 = vpack.c.b16 %v1660, %v1660
      %v1725 = vpack.c.b16 %v1661, %v1661
      %v1726 = vpack.c.b16 %v1662, %v1662
      %v1727 = vpack.c.b16 %v1663, %v1663
      %v1728 = vpack.c.b16 %v1664, %v1664
      %v1729 = vpack.c.b16 %v1665, %v1665
      %v1730 = vpack.c.b16 %v1666, %v1666
      %v1731 = vpack.c.b16 %v1667, %v1667
      %v1732 = vpack.c.b16 %v1668, %v1668
      %v1733 = vpack.c.b16 %v1669, %v1669
      %v1734 = vpack.c.b16 %v1670, %v1670
      %1799 = vst [vmem:[%s184] sm:$0xf] %v1671
      %1800 = vst [vmem:[%s184 + $0x4] sm:$0xf] %v1672
      %1801 = vst [vmem:[%s184 + $0x8] sm:$0xf] %v1673
      %1802 = vst [vmem:[%s184 + $0xc] sm:$0xf] %v1674
      %1803 = vst [vmem:[%s184 + $0x10] sm:$0xf] %v1675
      %1804 = vst [vmem:[%s184 + $0x14] sm:$0xf] %v1676
      %1805 = vst [vmem:[%s184 + $0x18] sm:$0xf] %v1677
      %1806 = vst [vmem:[%s184 + $0x1c] sm:$0xf] %v1678
      %1807 = vst [vmem:[%s184 + $0x20] sm:$0xf] %v1679
      %1808 = vst [vmem:[%s184 + $0x24] sm:$0xf] %v1680
      %1809 = vst [vmem:[%s184 + $0x28] sm:$0xf] %v1681
      %1810 = vst [vmem:[%s184 + $0x2c] sm:$0xf] %v1682
      %1811 = vst [vmem:[%s184 + $0x30] sm:$0xf] %v1683
      %1812 = vst [vmem:[%s184 + $0x34] sm:$0xf] %v1684
      %1813 = vst [vmem:[%s184 + $0x38] sm:$0xf] %v1685
      %1814 = vst [vmem:[%s184 + $0x3c] sm:$0xf] %v1686
      %1815 = vst [vmem:[%s184 + $0x40] sm:$0xf] %v1687
      %1816 = vst [vmem:[%s184 + $0x44] sm:$0xf] %v1688
      %1817 = vst [vmem:[%s184 + $0x48] sm:$0xf] %v1689
      %1818 = vst [vmem:[%s184 + $0x4c] sm:$0xf] %v1690
      %1819 = vst [vmem:[%s184 + $0x50] sm:$0xf] %v1691
      %1820 = vst [vmem:[%s184 + $0x54] sm:$0xf] %v1692
      %1821 = vst [vmem:[%s184 + $0x58] sm:$0xf] %v1693
      %1822 = vst [vmem:[%s184 + $0x5c] sm:$0xf] %v1694
      %1823 = vst [vmem:[%s184 + $0x60] sm:$0xf] %v1695
      %1824 = vst [vmem:[%s184 + $0x64] sm:$0xf] %v1696
      %1825 = vst [vmem:[%s184 + $0x68] sm:$0xf] %v1697
      %1826 = vst [vmem:[%s184 + $0x6c] sm:$0xf] %v1698
      %1827 = vst [vmem:[%s184 + $0x70] sm:$0xf] %v1699
      %1828 = vst [vmem:[%s184 + $0x74] sm:$0xf] %v1700
      %1829 = vst [vmem:[%s184 + $0x78] sm:$0xf] %v1701
      %1830 = vst [vmem:[%s184 + $0x7c] sm:$0xf] %v1702
      %1831 = vst [vmem:[%s184 + $0x80] sm:$0xf] %v1703
      %1832 = vst [vmem:[%s184 + $0x84] sm:$0xf] %v1704
      %1833 = vst [vmem:[%s184 + $0x88] sm:$0xf] %v1705
      %1834 = vst [vmem:[%s184 + $0x8c] sm:$0xf] %v1706
      %1835 = vst [vmem:[%s184 + $0x90] sm:$0xf] %v1707
      %1836 = vst [vmem:[%s184 + $0x94] sm:$0xf] %v1708
      %1837 = vst [vmem:[%s184 + $0x98] sm:$0xf] %v1709
      %1838 = vst [vmem:[%s184 + $0x9c] sm:$0xf] %v1710
      %1839 = vst [vmem:[%s184 + $0xa0] sm:$0xf] %v1711
      %1840 = vst [vmem:[%s184 + $0xa4] sm:$0xf] %v1712
      %1841 = vst [vmem:[%s184 + $0xa8] sm:$0xf] %v1713
      %1842 = vst [vmem:[%s184 + $0xac] sm:$0xf] %v1714
      %1843 = vst [vmem:[%s184 + $0xb0] sm:$0xf] %v1715
      %1844 = vst [vmem:[%s184 + $0xb4] sm:$0xf] %v1716
      %1845 = vst [vmem:[%s184 + $0xb8] sm:$0xf] %v1717
      %1846 = vst [vmem:[%s184 + $0xbc] sm:$0xf] %v1718
      %1847 = vst [vmem:[%s184 + $0xc0] sm:$0xf] %v1719
      %1848 = vst [vmem:[%s184 + $0xc4] sm:$0xf] %v1720
      %1849 = vst [vmem:[%s184 + $0xc8] sm:$0xf] %v1721
      %1850 = vst [vmem:[%s184 + $0xcc] sm:$0xf] %v1722
      %1851 = vst [vmem:[%s184 + $0xd0] sm:$0xf] %v1723
      %1852 = vst [vmem:[%s184 + $0xd4] sm:$0xf] %v1724
      %1853 = vst [vmem:[%s184 + $0xd8] sm:$0xf] %v1725
      %1854 = vst [vmem:[%s184 + $0xdc] sm:$0xf] %v1726
      %1855 = vst [vmem:[%s184 + $0xe0] sm:$0xf] %v1727
      %1856 = vst [vmem:[%s184 + $0xe4] sm:$0xf] %v1728
      %1857 = vst [vmem:[%s184 + $0xe8] sm:$0xf] %v1729
      %1858 = vst [vmem:[%s184 + $0xec] sm:$0xf] %v1730
      %1859 = vst [vmem:[%s184 + $0xf0] sm:$0xf] %v1731
      %1860 = vst [vmem:[%s184 + $0xf4] sm:$0xf] %v1732
      %1861 = vst [vmem:[%s184 + $0xf8] sm:$0xf] %v1733
      %1862 = vst [vmem:[%s184 + $0xfc] sm:$0xf] %v1734
      %v1863 = vadd.f32 %v1289, %v1292
      %v1864 = vadd.f32 %v1863, %v1297
      %v1865 = vadd.f32 %v1864, %v1300
      %v1866 = vadd.f32 %v1865, %v1305
      %v1867 = vadd.f32 %v1866, %v1308
      %v1868 = vadd.f32 %v1867, %v1313
      %v1869 = vadd.f32 %v1868, %v1316
      %v1870 = vadd.f32 %v1869, %v1321
      %v1871 = vadd.f32 %v1870, %v1324
      %v1872 = vadd.f32 %v1871, %v1329
      %v1873 = vadd.f32 %v1872, %v1332
      %v1874 = vadd.f32 %v1873, %v1337
      %v1875 = vadd.f32 %v1874, %v1340
      %v1876 = vadd.f32 %v1875, %v1345
      %v1877 = vadd.f32 %v1876, %v1348
      %v1878 = vadd.f32 %v1877, %v1353
      %v1879 = vadd.f32 %v1878, %v1356
      %v1880 = vadd.f32 %v1879, %v1361
      %v1881 = vadd.f32 %v1880, %v1364
      %v1882 = vadd.f32 %v1881, %v1369
      %v1883 = vadd.f32 %v1882, %v1372
      %v1884 = vadd.f32 %v1883, %v1377
      %v1885 = vadd.f32 %v1884, %v1380
      %v1886 = vadd.f32 %v1885, %v1385
      %v1887 = vadd.f32 %v1886, %v1388
      %v1888 = vadd.f32 %v1887, %v1393
      %v1889 = vadd.f32 %v1888, %v1396
      %v1890 = vadd.f32 %v1889, %v1401
      %v1891 = vadd.f32 %v1890, %v1404
      %v1892 = vadd.f32 %v1891, %v1409
      %v1893 = vadd.f32 %v1892, %v1412
      %v1894 = vadd.f32 %v1893, %v1417
      %v1895 = vadd.f32 %v1894, %v1420
      %v1896 = vadd.f32 %v1895, %v1425
      %v1897 = vadd.f32 %v1896, %v1428
      %v1898 = vadd.f32 %v1897, %v1433
      %v1899 = vadd.f32 %v1898, %v1436
      %v1900 = vadd.f32 %v1899, %v1441
      %v1901 = vadd.f32 %v1900, %v1444
      %v1902 = vadd.f32 %v1901, %v1449
      %v1903 = vadd.f32 %v1902, %v1452
      %v1904 = vadd.f32 %v1903, %v1457
      %v1905 = vadd.f32 %v1904, %v1460
      %v1906 = vadd.f32 %v1905, %v1465
      %v1907 = vadd.f32 %v1906, %v1468
      %v1908 = vadd.f32 %v1907, %v1473
      %v1909 = vadd.f32 %v1908, %v1476
      %v1910 = vadd.f32 %v1909, %v1481
      %v1911 = vadd.f32 %v1910, %v1484
      %v1912 = vadd.f32 %v1911, %v1489
      %v1913 = vadd.f32 %v1912, %v1492
      %v1914 = vadd.f32 %v1913, %v1497
      %v1915 = vadd.f32 %v1914, %v1500
      %v1916 = vadd.f32 %v1915, %v1505
      %v1917 = vadd.f32 %v1916, %v1508
      %v1918 = vadd.f32 %v1917, %v1513
      %v1919 = vadd.f32 %v1918, %v1516
      %v1920 = vadd.f32 %v1919, %v1521
      %v1921 = vadd.f32 %v1920, %v1524
      %v1922 = vadd.f32 %v1921, %v1529
      %v1923 = vadd.f32 %v1922, %v1532
      %v1924 = vadd.f32 %v1923, %v1537
      %v1925 = vadd.f32 %v1924, %v1540
      %v1926 = vrot.slane %v1925, 4
      %v1927 = vadd.f32 %v1925, %v1926
      %v1928 = vrot.slane %v1927, 2
      %v1929 = vadd.f32 %v1927, %v1928
      %v1930 = vrot.slane %v1929, 1
      %v1931 = vadd.f32 %v1929, %v1930
      %v1932 = vmul.f32 %v1289, %v1289
      %v1933 = vmul.f32 %v1292, %v1292
      %v1934 = vmul.f32 %v1297, %v1297
      %v1935 = vmul.f32 %v1300, %v1300
      %v1936 = vmul.f32 %v1305, %v1305
      %v1937 = vmul.f32 %v1308, %v1308
      %v1938 = vmul.f32 %v1313, %v1313
      %v1939 = vmul.f32 %v1316, %v1316
      %v1940 = vmul.f32 %v1321, %v1321
      %v1941 = vmul.f32 %v1324, %v1324
      %v1942 = vmul.f32 %v1329, %v1329
      %v1943 = vmul.f32 %v1332, %v1332
      %v1944 = vmul.f32 %v1337, %v1337
      %v1945 = vmul.f32 %v1340, %v1340
      %v1946 = vmul.f32 %v1345, %v1345
      %v1947 = vmul.f32 %v1348, %v1348
      %v1948 = vmul.f32 %v1353, %v1353
      %v1949 = vmul.f32 %v1356, %v1356
      %v1950 = vmul.f32 %v1361, %v1361
      %v1951 = vmul.f32 %v1364, %v1364
      %v1952 = vmul.f32 %v1369, %v1369
      %v1953 = vmul.f32 %v1372, %v1372
      %v1954 = vmul.f32 %v1377, %v1377
      %v1955 = vmul.f32 %v1380, %v1380
      %v1956 = vmul.f32 %v1385, %v1385
      %v1957 = vmul.f32 %v1388, %v1388
      %v1958 = vmul.f32 %v1393, %v1393
      %v1959 = vmul.f32 %v1396, %v1396
      %v1960 = vmul.f32 %v1401, %v1401
      %v1961 = vmul.f32 %v1404, %v1404
      %v1962 = vmul.f32 %v1409, %v1409
      %v1963 = vmul.f32 %v1412, %v1412
      %v1964 = vmul.f32 %v1417, %v1417
      %v1965 = vmul.f32 %v1420, %v1420
      %v1966 = vmul.f32 %v1425, %v1425
      %v1967 = vmul.f32 %v1428, %v1428
      %v1968 = vmul.f32 %v1433, %v1433
      %v1969 = vmul.f32 %v1436, %v1436
      %v1970 = vmul.f32 %v1441, %v1441
      %v1971 = vmul.f32 %v1444, %v1444
      %v1972 = vmul.f32 %v1449, %v1449
      %v1973 = vmul.f32 %v1452, %v1452
      %v1974 = vmul.f32 %v1457, %v1457
      %v1975 = vmul.f32 %v1460, %v1460
      %v1976 = vmul.f32 %v1465, %v1465
      %v1977 = vmul.f32 %v1468, %v1468
      %v1978 = vmul.f32 %v1473, %v1473
      %v1979 = vmul.f32 %v1476, %v1476
      %v1980 = vmul.f32 %v1481, %v1481
      %v1981 = vmul.f32 %v1484, %v1484
      %v1982 = vmul.f32 %v1489, %v1489
      %v1983 = vmul.f32 %v1492, %v1492
      %v1984 = vmul.f32 %v1497, %v1497
      %v1985 = vmul.f32 %v1500, %v1500
      %v1986 = vmul.f32 %v1505, %v1505
      %v1987 = vmul.f32 %v1508, %v1508
      %v1988 = vmul.f32 %v1513, %v1513
      %v1989 = vmul.f32 %v1516, %v1516
      %v1990 = vmul.f32 %v1521, %v1521
      %v1991 = vmul.f32 %v1524, %v1524
      %v1992 = vmul.f32 %v1529, %v1529
      %v1993 = vmul.f32 %v1532, %v1532
      %v1994 = vmul.f32 %v1537, %v1537
      %v1995 = vmul.f32 %v1540, %v1540
      %v1996 = vadd.f32 %v1932, %v1933
      %v1997 = vadd.f32 %v1996, %v1934
      %v1998 = vadd.f32 %v1997, %v1935
      %v1999 = vadd.f32 %v1998, %v1936
      %v2000 = vadd.f32 %v1999, %v1937
      %v2001 = vadd.f32 %v2000, %v1938
      %v2002 = vadd.f32 %v2001, %v1939
      %v2003 = vadd.f32 %v2002, %v1940
      %v2004 = vadd.f32 %v2003, %v1941
      %v2005 = vadd.f32 %v2004, %v1942
      %v2006 = vadd.f32 %v2005, %v1943
      %v2007 = vadd.f32 %v2006, %v1944
      %v2008 = vadd.f32 %v2007, %v1945
      %v2009 = vadd.f32 %v2008, %v1946
      %v2010 = vadd.f32 %v2009, %v1947
      %v2011 = vadd.f32 %v2010, %v1948
      %v2012 = vadd.f32 %v2011, %v1949
      %v2013 = vadd.f32 %v2012, %v1950
      %v2014 = vadd.f32 %v2013, %v1951
      %v2015 = vadd.f32 %v2014, %v1952
      %v2016 = vadd.f32 %v2015, %v1953
      %v2017 = vadd.f32 %v2016, %v1954
      %v2018 = vadd.f32 %v2017, %v1955
      %v2019 = vadd.f32 %v2018, %v1956
      %v2020 = vadd.f32 %v2019, %v1957
      %v2021 = vadd.f32 %v2020, %v1958
      %v2022 = vadd.f32 %v2021, %v1959
      %v2023 = vadd.f32 %v2022, %v1960
      %v2024 = vadd.f32 %v2023, %v1961
      %v2025 = vadd.f32 %v2024, %v1962
      %v2026 = vadd.f32 %v2025, %v1963
      %v2027 = vadd.f32 %v2026, %v1964
      %v2028 = vadd.f32 %v2027, %v1965
      %v2029 = vadd.f32 %v2028, %v1966
      %v2030 = vadd.f32 %v2029, %v1967
      %v2031 = vadd.f32 %v2030, %v1968
      %v2032 = vadd.f32 %v2031, %v1969
      %v2033 = vadd.f32 %v2032, %v1970
      %v2034 = vadd.f32 %v2033, %v1971
      %v2035 = vadd.f32 %v2034, %v1972
      %v2036 = vadd.f32 %v2035, %v1973
      %v2037 = vadd.f32 %v2036, %v1974
      %v2038 = vadd.f32 %v2037, %v1975
      %v2039 = vadd.f32 %v2038, %v1976
      %v2040 = vadd.f32 %v2039, %v1977
      %v2041 = vadd.f32 %v2040, %v1978
      %v2042 = vadd.f32 %v2041, %v1979
      %v2043 = vadd.f32 %v2042, %v1980
      %v2044 = vadd.f32 %v2043, %v1981
      %v2045 = vadd.f32 %v2044, %v1982
      %v2046 = vadd.f32 %v2045, %v1983
      %v2047 = vadd.f32 %v2046, %v1984
      %v2048 = vadd.f32 %v2047, %v1985
      %v2049 = vadd.f32 %v2048, %v1986
      %v2050 = vadd.f32 %v2049, %v1987
      %v2051 = vadd.f32 %v2050, %v1988
      %v2052 = vadd.f32 %v2051, %v1989
      %v2053 = vadd.f32 %v2052, %v1990
      %v2054 = vadd.f32 %v2053, %v1991
      %v2055 = vadd.f32 %v2054, %v1992
      %v2056 = vadd.f32 %v2055, %v1993
      %v2057 = vadd.f32 %v2056, %v1994
      %v2058 = vadd.f32 %v2057, %v1995
      %v2059 = vrot.slane %v2058, 4
      %v2060 = vadd.f32 %v2058, %v2059
      %v2061 = vrot.slane %v2060, 2
      %v2062 = vadd.f32 %v2060, %v2061
      %v2063 = vrot.slane %v2062, 1
      %v2064 = vadd.f32 %v2062, %v2063
      %vm2065 = vcmask 1040384
      %v2066 = vsel %vm2065, %v1931, %v2064
      %2067 = vst [vmem:[%s189] sm:$0x3] %v2066
      %s2068 = smul.u32 8, %s15
      %p2069 = scmp.lt.s32.totalorder %s2068, 15
      %s2070 = scalar_select %p2069, %s2068, 15
      %s2071 = smul.addr %s2070, 8
      %s2072 = smul.addr %s2071, 4
      %s2073 = scalar_lea.vmem %s2, %s2072
      %p2074 = scmp.lt.s32.totalorder %s15, 1
      %s2075 = scalar_select %p2074, %s15, 1
      %s2076 = smul.addr %s2075, 2
      %s2077 = scalar_lea.vmem %s3, %s2076
      // Predicated region
      $region29: #{basic_block.3} parent=27 // pred_check
        %p2078 = pneg %p80
      $region30: #{basic_block.3} parent=27 // pred_check_branch
        %2080 = sbr.rel (%p2078) target = $region32
      $region31: #{basic_block.3} parent=27 // pred_region
        %s2081 = smul.u32 8, %s15
      $region32: #{basic_block.3} parent=27 // pred_fallthru
        _
      // Predicated region
      $region33: #{basic_block.3} parent=27 // pred_check
        %p2082 = pneg %p106
      $region34: #{basic_block.3} parent=27 // pred_check_branch
        %2084 = sbr.rel (%p2082) target = $region36
      $region35: #{basic_block.3} parent=27 // pred_region
        _
      $region36: #{basic_block.3} parent=27 // pred_fallthru
        _
    $region28: #{basic_block.3} parent=5 // pred_fallthru
      _
    %p2085 = scmp.le.s32.totalorder 2, %s10
    // Predicated region
    $region37: #{basic_block.3} parent=5 // pred_check
      %p2086 = pneg %p2085
    $region38: #{basic_block.3} parent=5 // pred_check_branch
      %2088 = sbr.rel (%p2086) target = $region40
    $region39: #{basic_block.3} parent=5 // pred_region
      %s2089 = ssub.s32 %s10, 2
      // Predicated region
      $region41: #{basic_block.3} parent=39 // pred_check
        %p2090 = pneg %p86
      $region42: #{basic_block.3} parent=39 // pred_check_branch
        %2092 = sbr.rel (%p2090) target = $region44
      $region43: #{basic_block.3} parent=39 // pred_region
        %s2093 = smul.u32 8, %s16
        %p2094 = scmp.lt.s32.totalorder %s2093, 15
        %s2095 = scalar_select %p2094, %s2093, 15
        %s2096 = smul.addr %s2095, 8
        %s2097 = smul.addr %s2096, 4
        %s2098 = scalar_lea.vmem %s2, %s2097
      $region44: #{basic_block.3} parent=39 // pred_fallthru
        _
      // Predicated region
      $region45: #{basic_block.3} parent=39 // pred_check
        %p2099 = pneg %p112
      $region46: #{basic_block.3} parent=39 // pred_check_branch
        %2101 = sbr.rel (%p2099) target = $region48
      $region47: #{basic_block.3} parent=39 // pred_region
        %p2102 = scmp.lt.s32.totalorder %s16, 1
        %s2103 = scalar_select %p2102, %s16, 1
        %s2104 = smul.addr %s2103, 2
        %s2105 = scalar_lea.vmem %s3, %s2104
      $region48: #{basic_block.3} parent=39 // pred_fallthru
        _
    $region40: #{basic_block.3} parent=5 // pred_fallthru
      _
  $region6: #{basic_block.3} parent=0 // loop_footer
    %s14 = sadd.s32 1, %s10
  $region7: #{basic_block.3} parent=0 // loop_footer_branch
    %9 = sbr.rel target = $region3
  $region8: #{basic_block.3} parent=0 // loop_exit
    _

// kernel: basic_block.4
$region0: #{basic_block.4}
  #allocation0 [shape = 'u32[]', space=smem, size = 0x4, offset = 0x4, fixed_abs, tag = 'smem constant byte address 0x4 - core index']
  #allocation1 [shape = 'u32[144,128]{1,0:T(1,128)}', space=vmem, size = 0x12000, scoped, tag = 'internal scratch']
  %s0 = inlined_call_operand.vmem [shape: bf16[16,64,128], index: 0, kind: input, shape index: {}]
  %s1 = inlined_call_operand.vmem [shape: f32[1,128], index: 1, kind: input, shape index: {}]
  %s2 = inlined_call_operand.vmem [shape: f32[1,128], index: 2, kind: input, shape index: {}]
  %s3 = inlined_call_operand.vmem [shape: bf16[256,128], index: 3, kind: input, shape index: {}]
  %s4 = inlined_call_operand.vmem [shape: bf16[16,64,128], index: 4, kind: output, shape index: {0}]
  %s5 = inlined_call_operand.vmem [shape: f32[2,2,128], index: 5, kind: output, shape index: {1}]
  %6 = xla_tuple %s4, %s5
  %s7 = sld [smem:[#allocation0]]
  $region57: #{basic_block.4} parent=0
    _
  %s9 = ssub.s32 1, %s7
  %s10 = scalar_select 0, %s9, %s7
  loop: start=0, step=1, limit=4
  $region2: #{basic_block.4} parent=0 // loop_pre_header
    _
  $region3: #{basic_block.4} parent=0 // loop_header
    %s12 = sphi 0, %s16
    %p13 = scmp.ge.s32.totalorder %s12, 4
    %s22 = sphi 0, %s24
    %s25 = sphi 0, %s22
    %s26 = sphi 0, %s25
    %s42 = sphi 0, %s26
    %s46 = sphi 0, %s46
    %s48 = sphi 0, %s46
    %s49 = sphi 0, %s48
    %s63 = sphi 0, %s49
    %s67 = sphi 0, %s67
    %s69 = sphi 0, %s67
    %s70 = sphi 0, %s69
    %s84 = sphi 0, %s70
    %s88 = sphi 0, %s88
    %s90 = sphi 0, %s88
    %s91 = sphi 0, %s90
    %s105 = sphi 0, %s91
    %s111 = sphi 0, %s113
    %s114 = sphi 0, %s111
    %s115 = sphi 0, %s114
    %s131 = sphi 0, %s115
    %s137 = sphi 0, %s139
    %s140 = sphi 0, %s137
    %s141 = sphi 0, %s140
    %s157 = sphi 0, %s141
  $region4: #{basic_block.4} parent=0 // loop_header_branch
    %15 = sbr.rel (%p13) target = $region8
  $region5: #{basic_block.4} parent=0 // loop_body
    %s17 = ssub.s32 %s12, 1
    %s18 = ssub.s32 %s12, 2
    %s19 = sadd.s32 %s12, 1
    %s20 = ssub.s32 %s12, %s19
    %p21 = scmp.eq.s32.totalorder %s20, 0
    %s23 = sadd.s32 %s22, 1
    %s24 = scalar_select %p21, %s22, %s23
    %p27 = pneg %p21
    %p28 = scmp.eq.s32.totalorder %s12, 1
    %p29 = por %p27, %p28
    %p30 = scmp.ne.s32.totalorder %s22, %s25
    %p31 = scmp.eq.s32.totalorder %s12, 0
    %p32 = por %p30, %p31
    %p33 = scmp.ne.s32.totalorder %s22, %s25
    %p34 = scmp.eq.s32.totalorder %s17, 1
    %p35 = por %p33, %p34
    %p36 = scmp.ne.s32.totalorder %s25, %s26
    %p37 = scmp.eq.s32.totalorder %s17, 0
    %p38 = por %p36, %p37
    %p39 = scmp.ne.s32.totalorder %s25, %s26
    %p40 = scmp.eq.s32.totalorder %s18, 1
    %p41 = por %p39, %p40
    %p43 = scmp.ne.s32.totalorder %s26, %s42
    %p44 = scmp.eq.s32.totalorder %s18, 0
    %p45 = por %p43, %p44
    %s47 = sadd.s32 %s46, 1
    %p50 = scmp.eq.s32.totalorder %s12, 1
    %p51 = scmp.ne.s32.totalorder %s46, %s48
    %p52 = scmp.eq.s32.totalorder %s12, 0
    %p53 = por %p51, %p52
    %p54 = scmp.ne.s32.totalorder %s46, %s48
    %p55 = scmp.eq.s32.totalorder %s17, 1
    %p56 = por %p54, %p55
    %p57 = scmp.ne.s32.totalorder %s48, %s49
    %p58 = scmp.eq.s32.totalorder %s17, 0
    %p59 = por %p57, %p58
    %p60 = scmp.ne.s32.totalorder %s48, %s49
    %p61 = scmp.eq.s32.totalorder %s18, 1
    %p62 = por %p60, %p61
    %p64 = scmp.ne.s32.totalorder %s49, %s63
    %p65 = scmp.eq.s32.totalorder %s18, 0
    %p66 = por %p64, %p65
    %s68 = sadd.s32 %s67, 1
    %p71 = scmp.eq.s32.totalorder %s12, 1
    %p72 = scmp.ne.s32.totalorder %s67, %s69
    %p73 = scmp.eq.s32.totalorder %s12, 0
    %p74 = por %p72, %p73
    %p75 = scmp.ne.s32.totalorder %s67, %s69
    %p76 = scmp.eq.s32.totalorder %s17, 1
    %p77 = por %p75, %p76
    %p78 = scmp.ne.s32.totalorder %s69, %s70
    %p79 = scmp.eq.s32.totalorder %s17, 0
    %p80 = por %p78, %p79
    %p81 = scmp.ne.s32.totalorder %s69, %s70
    %p82 = scmp.eq.s32.totalorder %s18, 1
    %p83 = por %p81, %p82
    %p85 = scmp.ne.s32.totalorder %s70, %s84
    %p86 = scmp.eq.s32.totalorder %s18, 0
    %p87 = por %p85, %p86
    %s89 = sadd.s32 %s88, 1
    %p92 = scmp.eq.s32.totalorder %s12, 1
    %p93 = scmp.ne.s32.totalorder %s88, %s90
    %p94 = scmp.eq.s32.totalorder %s12, 0
    %p95 = por %p93, %p94
    %p96 = scmp.ne.s32.totalorder %s88, %s90
    %p97 = scmp.eq.s32.totalorder %s17, 1
    %p98 = por %p96, %p97
    %p99 = scmp.ne.s32.totalorder %s90, %s91
    %p100 = scmp.eq.s32.totalorder %s17, 0
    %p101 = por %p99, %p100
    %p102 = scmp.ne.s32.totalorder %s90, %s91
    %p103 = scmp.eq.s32.totalorder %s18, 1
    %p104 = por %p102, %p103
    %p106 = scmp.ne.s32.totalorder %s91, %s105
    %p107 = scmp.eq.s32.totalorder %s18, 0
    %p108 = por %p106, %p107
    %s109 = ssub.s32 %s12, %s19
    %p110 = scmp.eq.s32.totalorder %s109, 0
    %s112 = sadd.s32 %s111, 1
    %s113 = scalar_select %p110, %s111, %s112
    %p116 = pneg %p110
    %p117 = scmp.eq.s32.totalorder %s12, 1
    %p118 = por %p116, %p117
    %p119 = scmp.ne.s32.totalorder %s111, %s114
    %p120 = scmp.eq.s32.totalorder %s12, 0
    %p121 = por %p119, %p120
    %p122 = scmp.ne.s32.totalorder %s111, %s114
    %p123 = scmp.eq.s32.totalorder %s17, 1
    %p124 = por %p122, %p123
    %p125 = scmp.ne.s32.totalorder %s114, %s115
    %p126 = scmp.eq.s32.totalorder %s17, 0
    %p127 = por %p125, %p126
    %p128 = scmp.ne.s32.totalorder %s114, %s115
    %p129 = scmp.eq.s32.totalorder %s18, 1
    %p130 = por %p128, %p129
    %p132 = scmp.ne.s32.totalorder %s115, %s131
    %p133 = scmp.eq.s32.totalorder %s18, 0
    %p134 = por %p132, %p133
    %s135 = ssub.s32 %s12, %s19
    %p136 = scmp.eq.s32.totalorder %s135, 0
    %s138 = sadd.s32 %s137, 1
    %s139 = scalar_select %p136, %s137, %s138
    %p142 = pneg %p136
    %p143 = scmp.eq.s32.totalorder %s12, 1
    %p144 = por %p142, %p143
    %p145 = scmp.ne.s32.totalorder %s137, %s140
    %p146 = scmp.eq.s32.totalorder %s12, 0
    %p147 = por %p145, %p146
    %p148 = scmp.ne.s32.totalorder %s137, %s140
    %p149 = scmp.eq.s32.totalorder %s17, 1
    %p150 = por %p148, %p149
    %p151 = scmp.ne.s32.totalorder %s140, %s141
    %p152 = scmp.eq.s32.totalorder %s17, 0
    %p153 = por %p151, %p152
    %p154 = scmp.ne.s32.totalorder %s140, %s141
    %p155 = scmp.eq.s32.totalorder %s18, 1
    %p156 = por %p154, %p155
    %p158 = scmp.ne.s32.totalorder %s141, %s157
    %p159 = scmp.eq.s32.totalorder %s18, 0
    %p160 = por %p158, %p159
    %p161 = scmp.le.s32.totalorder 1, %s12
    %p162 = scmp.lt.s32.totalorder %s12, 3
    %p163 = pnand %p161, %p162
    %p164 = pneg %p163
    // Predicated region
    $region9: #{basic_block.4} parent=5 // pred_check
      _
    $region10: #{basic_block.4} parent=5 // pred_check_branch
      %166 = sbr.rel (%p163) target = $region12
    $region11: #{basic_block.4} parent=5 // pred_region
      %s167 = ssub.s32 %s12, 1
      // Predicated region
      $region13: #{basic_block.4} parent=11 // pred_check
        %p168 = pneg %p59
      $region14: #{basic_block.4} parent=11 // pred_check_branch
        %170 = sbr.rel (%p168) target = $region16
      $region15: #{basic_block.4} parent=11 // pred_region
        _
      $region16: #{basic_block.4} parent=11 // pred_fallthru
        _
      // Predicated region
      $region17: #{basic_block.4} parent=11 // pred_check
        %p171 = pneg %p80
      $region18: #{basic_block.4} parent=11 // pred_check_branch
        %173 = sbr.rel (%p171) target = $region20
      $region19: #{basic_block.4} parent=11 // pred_region
        _
      $region20: #{basic_block.4} parent=11 // pred_fallthru
        _
      // Predicated region
      $region21: #{basic_block.4} parent=11 // pred_check
        %p174 = pneg %p101
      $region22: #{basic_block.4} parent=11 // pred_check_branch
        %176 = sbr.rel (%p174) target = $region24
      $region23: #{basic_block.4} parent=11 // pred_region
        _
      $region24: #{basic_block.4} parent=11 // pred_fallthru
        _
    $region12: #{basic_block.4} parent=5 // pred_fallthru
      _
    %p177 = scmp.lt.s32.totalorder %s12, 2
    // Predicated region
    $region25: #{basic_block.4} parent=5 // pred_check
      %p178 = pneg %p177
    $region26: #{basic_block.4} parent=5 // pred_check_branch
      %180 = sbr.rel (%p178) target = $region28
    $region27: #{basic_block.4} parent=5 // pred_region
      // Predicated region
      $region29: #{basic_block.4} parent=27 // pred_check
        %p181 = pneg %p32
      $region30: #{basic_block.4} parent=27 // pred_check_branch
        %183 = sbr.rel (%p181) target = $region32
      $region31: #{basic_block.4} parent=27 // pred_region
        %s184 = smul.u32 8, %s12
        %p185 = scmp.lt.s32.totalorder %s184, 15
        %s186 = scalar_select %p185, %s184, 15
        %s187 = smul.addr %s186, 8
        %s188 = smul.addr %s187, 4
        %s189 = scalar_lea.vmem %s0, %s188
        %s190 = smul.u32 8, %s12
      $region32: #{basic_block.4} parent=27 // pred_fallthru
        _
    $region28: #{basic_block.4} parent=5 // pred_fallthru
      _
    %p191 = scmp.le.s32.totalorder 1, %s12
    %p192 = scmp.lt.s32.totalorder %s12, 3
    %p193 = pnand %p191, %p192
    %p194 = pneg %p193
    // Predicated region
    $region33: #{basic_block.4} parent=5 // pred_check
      _
    $region34: #{basic_block.4} parent=5 // pred_check_branch
      %196 = sbr.rel (%p193) target = $region36
    $region35: #{basic_block.4} parent=5 // pred_region
      %s197 = ssub.s32 %s12, 1
      %s198 = smul.u32 8, %s17
      %p199 = scmp.lt.s32.totalorder %s198, 15
      %s200 = scalar_select %p199, %s198, 15
      %s201 = smul.addr %s200, 8
      %s202 = smul.addr %s201, 4
      %s203 = scalar_lea.vmem %s0, %s202
      %p204 = pneg %p38
      %p205 = pneg %p35
      %p206 = pneg %p59
      %p207 = pneg %p56
      %p208 = pneg %p80
      %p209 = pneg %p77
      %p210 = pneg %p101
      %p211 = pneg %p98
      %p212 = pneg %p127
      %p213 = pneg %p124
      %s214 = smul.u32 8, %s17
      %p215 = scmp.lt.s32.totalorder %s214, 15
      %s216 = scalar_select %p215, %s214, 15
      %s217 = smul.addr %s216, 8
      %s218 = smul.addr %s217, 4
      %s219 = scalar_lea.vmem %s4, %s218
      %p220 = pneg %p153
      %p221 = pneg %p150
      %p222 = scmp.lt.s32.totalorder %s17, 1
      %s223 = scalar_select %p222, %s17, 1
      %s224 = smul.addr %s223, 2
      %s225 = scalar_lea.vmem %s5, %s224
      %s226 = smul.u32 8, %s17
      %p227 = scmp.lt.s32.totalorder %s226, 15
      %s228 = scalar_select %p227, %s226, 15
      %s229 = smul.addr %s228, 8
      %s230 = smul.addr %s229, 4
      %s231 = scalar_lea.vmem %s0, %s230
      %s232 = smul.u32 8, %s17
      %s233 = smul.u32 8, %s17
      %p234 = scmp.lt.s32.totalorder %s233, 15
      %s235 = scalar_select %p234, %s233, 15
      %s236 = smul.addr %s235, 8
      %s237 = smul.addr %s236, 4
      %s238 = scalar_lea.vmem %s4, %s237
      %s239 = smul.u32 8, %s17
      %p240 = scmp.lt.s32.totalorder %s17, 1
      %s241 = scalar_select %p240, %s17, 1
      %s242 = smul.addr %s241, 2
      %s243 = scalar_lea.vmem %s5, %s242
      %v245 = vld [vmem:[%s1] sm:$0x1]
      %v246 = vld [vmem:[%s2] sm:$0x1]
      %v247 = vld [vmem:[%s231] sm:$0xf]
      %v248 = vld [vmem:[%s231 + $0x4] sm:$0xf]
      %v249 = vld [vmem:[%s231 + $0x8] sm:$0xf]
      %v250 = vld [vmem:[%s231 + $0xc] sm:$0xf]
      %v251 = vld [vmem:[%s231 + $0x10] sm:$0xf]
      %v252 = vld [vmem:[%s231 + $0x14] sm:$0xf]
      %v253 = vld [vmem:[%s231 + $0x18] sm:$0xf]
      %v254 = vld [vmem:[%s231 + $0x1c] sm:$0xf]
      %v255 = vld [vmem:[%s231 + $0x20] sm:$0xf]
      %v256 = vld [vmem:[%s231 + $0x24] sm:$0xf]
      %v257 = vld [vmem:[%s231 + $0x28] sm:$0xf]
      %v258 = vld [vmem:[%s231 + $0x2c] sm:$0xf]
      %v259 = vld [vmem:[%s231 + $0x30] sm:$0xf]
      %v260 = vld [vmem:[%s231 + $0x34] sm:$0xf]
      %v261 = vld [vmem:[%s231 + $0x38] sm:$0xf]
      %v262 = vld [vmem:[%s231 + $0x3c] sm:$0xf]
      %v263 = vld [vmem:[%s231 + $0x40] sm:$0xf]
      %v264 = vld [vmem:[%s231 + $0x44] sm:$0xf]
      %v265 = vld [vmem:[%s231 + $0x48] sm:$0xf]
      %v266 = vld [vmem:[%s231 + $0x4c] sm:$0xf]
      %v267 = vld [vmem:[%s231 + $0x50] sm:$0xf]
      %v268 = vld [vmem:[%s231 + $0x54] sm:$0xf]
      %v269 = vld [vmem:[%s231 + $0x58] sm:$0xf]
      %v270 = vld [vmem:[%s231 + $0x5c] sm:$0xf]
      %v271 = vld [vmem:[%s231 + $0x60] sm:$0xf]
      %v272 = vld [vmem:[%s231 + $0x64] sm:$0xf]
      %v273 = vld [vmem:[%s231 + $0x68] sm:$0xf]
      %v274 = vld [vmem:[%s231 + $0x6c] sm:$0xf]
      %v275 = vld [vmem:[%s231 + $0x70] sm:$0xf]
      %v276 = vld [vmem:[%s231 + $0x74] sm:$0xf]
      %v277 = vld [vmem:[%s231 + $0x78] sm:$0xf]
      %v278 = vld [vmem:[%s231 + $0x7c] sm:$0xf]
      %v279 = vld [vmem:[%s231 + $0x80] sm:$0xf]
      %v280 = vld [vmem:[%s231 + $0x84] sm:$0xf]
      %v281 = vld [vmem:[%s231 + $0x88] sm:$0xf]
      %v282 = vld [vmem:[%s231 + $0x8c] sm:$0xf]
      %v283 = vld [vmem:[%s231 + $0x90] sm:$0xf]
      %v284 = vld [vmem:[%s231 + $0x94] sm:$0xf]
      %v285 = vld [vmem:[%s231 + $0x98] sm:$0xf]
      %v286 = vld [vmem:[%s231 + $0x9c] sm:$0xf]
      %v287 = vld [vmem:[%s231 + $0xa0] sm:$0xf]
      %v288 = vld [vmem:[%s231 + $0xa4] sm:$0xf]
      %v289 = vld [vmem:[%s231 + $0xa8] sm:$0xf]
      %v290 = vld [vmem:[%s231 + $0xac] sm:$0xf]
      %v291 = vld [vmem:[%s231 + $0xb0] sm:$0xf]
      %v292 = vld [vmem:[%s231 + $0xb4] sm:$0xf]
      %v293 = vld [vmem:[%s231 + $0xb8] sm:$0xf]
      %v294 = vld [vmem:[%s231 + $0xbc] sm:$0xf]
      %v295 = vld [vmem:[%s231 + $0xc0] sm:$0xf]
      %v296 = vld [vmem:[%s231 + $0xc4] sm:$0xf]
      %v297 = vld [vmem:[%s231 + $0xc8] sm:$0xf]
      %v298 = vld [vmem:[%s231 + $0xcc] sm:$0xf]
      %v299 = vld [vmem:[%s231 + $0xd0] sm:$0xf]
      %v300 = vld [vmem:[%s231 + $0xd4] sm:$0xf]
      %v301 = vld [vmem:[%s231 + $0xd8] sm:$0xf]
      %v302 = vld [vmem:[%s231 + $0xdc] sm:$0xf]
      %v303 = vld [vmem:[%s231 + $0xe0] sm:$0xf]
      %v304 = vld [vmem:[%s231 + $0xe4] sm:$0xf]
      %v305 = vld [vmem:[%s231 + $0xe8] sm:$0xf]
      %v306 = vld [vmem:[%s231 + $0xec] sm:$0xf]
      %v307 = vld [vmem:[%s231 + $0xf0] sm:$0xf]
      %v308 = vld [vmem:[%s231 + $0xf4] sm:$0xf]
      %v309 = vld [vmem:[%s231 + $0xf8] sm:$0xf]
      %v310 = vld [vmem:[%s231 + $0xfc] sm:$0xf]
      %v311 = vunpack.c.l.bf16 %v247
      %v312 = vunpack.c.l.bf16 %v248
      %v313 = vunpack.c.l.bf16 %v249
      %v314 = vunpack.c.l.bf16 %v250
      %v315 = vunpack.c.l.bf16 %v251
      %v316 = vunpack.c.l.bf16 %v252
      %v317 = vunpack.c.l.bf16 %v253
      %v318 = vunpack.c.l.bf16 %v254
      %v319 = vunpack.c.l.bf16 %v255
      %v320 = vunpack.c.l.bf16 %v256
      %v321 = vunpack.c.l.bf16 %v257
      %v322 = vunpack.c.l.bf16 %v258
      %v323 = vunpack.c.l.bf16 %v259
      %v324 = vunpack.c.l.bf16 %v260
      %v325 = vunpack.c.l.bf16 %v261
      %v326 = vunpack.c.l.bf16 %v262
      %v327 = vunpack.c.l.bf16 %v263
      %v328 = vunpack.c.l.bf16 %v264
      %v329 = vunpack.c.l.bf16 %v265
      %v330 = vunpack.c.l.bf16 %v266
      %v331 = vunpack.c.l.bf16 %v267
      %v332 = vunpack.c.l.bf16 %v268
      %v333 = vunpack.c.l.bf16 %v269
      %v334 = vunpack.c.l.bf16 %v270
      %v335 = vunpack.c.l.bf16 %v271
      %v336 = vunpack.c.l.bf16 %v272
      %v337 = vunpack.c.l.bf16 %v273
      %v338 = vunpack.c.l.bf16 %v274
      %v339 = vunpack.c.l.bf16 %v275
      %v340 = vunpack.c.l.bf16 %v276
      %v341 = vunpack.c.l.bf16 %v277
      %v342 = vunpack.c.l.bf16 %v278
      %v343 = vunpack.c.l.bf16 %v279
      %v344 = vunpack.c.l.bf16 %v280
      %v345 = vunpack.c.l.bf16 %v281
      %v346 = vunpack.c.l.bf16 %v282
      %v347 = vunpack.c.l.bf16 %v283
      %v348 = vunpack.c.l.bf16 %v284
      %v349 = vunpack.c.l.bf16 %v285
      %v350 = vunpack.c.l.bf16 %v286
      %v351 = vunpack.c.l.bf16 %v287
      %v352 = vunpack.c.l.bf16 %v288
      %v353 = vunpack.c.l.bf16 %v289
      %v354 = vunpack.c.l.bf16 %v290
      %v355 = vunpack.c.l.bf16 %v291
      %v356 = vunpack.c.l.bf16 %v292
      %v357 = vunpack.c.l.bf16 %v293
      %v358 = vunpack.c.l.bf16 %v294
      %v359 = vunpack.c.l.bf16 %v295
      %v360 = vunpack.c.l.bf16 %v296
      %v361 = vunpack.c.l.bf16 %v297
      %v362 = vunpack.c.l.bf16 %v298
      %v363 = vunpack.c.l.bf16 %v299
      %v364 = vunpack.c.l.bf16 %v300
      %v365 = vunpack.c.l.bf16 %v301
      %v366 = vunpack.c.l.bf16 %v302
      %v367 = vunpack.c.l.bf16 %v303
      %v368 = vunpack.c.l.bf16 %v304
      %v369 = vunpack.c.l.bf16 %v305
      %v370 = vunpack.c.l.bf16 %v306
      %v371 = vunpack.c.l.bf16 %v307
      %v372 = vunpack.c.l.bf16 %v308
      %v373 = vunpack.c.l.bf16 %v309
      %v374 = vunpack.c.l.bf16 %v310
      %v376 = vlaneseq
      %v377 = vshrl.u32 %v376, 7
      %v378 = vsub.s32 0, %v377
      %v379 = vrot.slane %v245, %v378
      %v381 = vmul.f32 %v311, %v379
      %v382 = vmul.f32 %v312, %v379
      %v383 = vmul.f32 %v313, %v379
      %v384 = vmul.f32 %v314, %v379
      %v385 = vmul.f32 %v315, %v379
      %v386 = vmul.f32 %v316, %v379
      %v387 = vmul.f32 %v317, %v379
      %v388 = vmul.f32 %v318, %v379
      %v389 = vmul.f32 %v319, %v379
      %v390 = vmul.f32 %v320, %v379
      %v391 = vmul.f32 %v321, %v379
      %v392 = vmul.f32 %v322, %v379
      %v393 = vmul.f32 %v323, %v379
      %v394 = vmul.f32 %v324, %v379
      %v395 = vmul.f32 %v325, %v379
      %v396 = vmul.f32 %v326, %v379
      %v397 = vmul.f32 %v327, %v379
      %v398 = vmul.f32 %v328, %v379
      %v399 = vmul.f32 %v329, %v379
      %v400 = vmul.f32 %v330, %v379
      %v401 = vmul.f32 %v331, %v379
      %v402 = vmul.f32 %v332, %v379
      %v403 = vmul.f32 %v333, %v379
      %v404 = vmul.f32 %v334, %v379
      %v405 = vmul.f32 %v335, %v379
      %v406 = vmul.f32 %v336, %v379
      %v407 = vmul.f32 %v337, %v379
      %v408 = vmul.f32 %v338, %v379
      %v409 = vmul.f32 %v339, %v379
      %v410 = vmul.f32 %v340, %v379
      %v411 = vmul.f32 %v341, %v379
      %v412 = vmul.f32 %v342, %v379
      %v413 = vmul.f32 %v343, %v379
      %v414 = vmul.f32 %v344, %v379
      %v415 = vmul.f32 %v345, %v379
      %v416 = vmul.f32 %v346, %v379
      %v417 = vmul.f32 %v347, %v379
      %v418 = vmul.f32 %v348, %v379
      %v419 = vmul.f32 %v349, %v379
      %v420 = vmul.f32 %v350, %v379
      %v421 = vmul.f32 %v351, %v379
      %v422 = vmul.f32 %v352, %v379
      %v423 = vmul.f32 %v353, %v379
      %v424 = vmul.f32 %v354, %v379
      %v425 = vmul.f32 %v355, %v379
      %v426 = vmul.f32 %v356, %v379
      %v427 = vmul.f32 %v357, %v379
      %v428 = vmul.f32 %v358, %v379
      %v429 = vmul.f32 %v359, %v379
      %v430 = vmul.f32 %v360, %v379
      %v431 = vmul.f32 %v361, %v379
      %v432 = vmul.f32 %v362, %v379
      %v433 = vmul.f32 %v363, %v379
      %v434 = vmul.f32 %v364, %v379
      %v435 = vmul.f32 %v365, %v379
      %v436 = vmul.f32 %v366, %v379
      %v437 = vmul.f32 %v367, %v379
      %v438 = vmul.f32 %v368, %v379
      %v439 = vmul.f32 %v369, %v379
      %v440 = vmul.f32 %v370, %v379
      %v441 = vmul.f32 %v371, %v379
      %v442 = vmul.f32 %v372, %v379
      %v443 = vmul.f32 %v373, %v379
      %v444 = vmul.f32 %v374, %v379
      %v446 = vlaneseq
      %v447 = vshrl.u32 %v446, 7
      %v448 = vsub.s32 0, %v447
      %v449 = vrot.slane %v246, %v448
      %v451 = vadd.f32 %v381, %v449
      %v452 = vadd.f32 %v382, %v449
      %v453 = vadd.f32 %v383, %v449
      %v454 = vadd.f32 %v384, %v449
      %v455 = vadd.f32 %v385, %v449
      %v456 = vadd.f32 %v386, %v449
      %v457 = vadd.f32 %v387, %v449
      %v458 = vadd.f32 %v388, %v449
      %v459 = vadd.f32 %v389, %v449
      %v460 = vadd.f32 %v390, %v449
      %v461 = vadd.f32 %v391, %v449
      %v462 = vadd.f32 %v392, %v449
      %v463 = vadd.f32 %v393, %v449
      %v464 = vadd.f32 %v394, %v449
      %v465 = vadd.f32 %v395, %v449
      %v466 = vadd.f32 %v396, %v449
      %v467 = vadd.f32 %v397, %v449
      %v468 = vadd.f32 %v398, %v449
      %v469 = vadd.f32 %v399, %v449
      %v470 = vadd.f32 %v400, %v449
      %v471 = vadd.f32 %v401, %v449
      %v472 = vadd.f32 %v402, %v449
      %v473 = vadd.f32 %v403, %v449
      %v474 = vadd.f32 %v404, %v449
      %v475 = vadd.f32 %v405, %v449
      %v476 = vadd.f32 %v406, %v449
      %v477 = vadd.f32 %v407, %v449
      %v478 = vadd.f32 %v408, %v449
      %v479 = vadd.f32 %v409, %v449
      %v480 = vadd.f32 %v410, %v449
      %v481 = vadd.f32 %v411, %v449
      %v482 = vadd.f32 %v412, %v449
      %v483 = vadd.f32 %v413, %v449
      %v484 = vadd.f32 %v414, %v449
      %v485 = vadd.f32 %v415, %v449
      %v486 = vadd.f32 %v416, %v449
      %v487 = vadd.f32 %v417, %v449
      %v488 = vadd.f32 %v418, %v449
      %v489 = vadd.f32 %v419, %v449
      %v490 = vadd.f32 %v420, %v449
      %v491 = vadd.f32 %v421, %v449
      %v492 = vadd.f32 %v422, %v449
      %v493 = vadd.f32 %v423, %v449
      %v494 = vadd.f32 %v424, %v449
      %v495 = vadd.f32 %v425, %v449
      %v496 = vadd.f32 %v426, %v449
      %v497 = vadd.f32 %v427, %v449
      %v498 = vadd.f32 %v428, %v449
      %v499 = vadd.f32 %v429, %v449
      %v500 = vadd.f32 %v430, %v449
      %v501 = vadd.f32 %v431, %v449
      %v502 = vadd.f32 %v432, %v449
      %v503 = vadd.f32 %v433, %v449
      %v504 = vadd.f32 %v434, %v449
      %v505 = vadd.f32 %v435, %v449
      %v506 = vadd.f32 %v436, %v449
      %v507 = vadd.f32 %v437, %v449
      %v508 = vadd.f32 %v438, %v449
      %v509 = vadd.f32 %v439, %v449
      %v510 = vadd.f32 %v440, %v449
      %v511 = vadd.f32 %v441, %v449
      %v512 = vadd.f32 %v442, %v449
      %v513 = vadd.f32 %v443, %v449
      %v514 = vadd.f32 %v444, %v449
      %v515 = vmax.f32 %v451, 0.0
      %v516 = vmax.f32 %v452, 0.0
      %v517 = vmax.f32 %v453, 0.0
      %v518 = vmax.f32 %v454, 0.0
      %v519 = vmax.f32 %v455, 0.0
      %v520 = vmax.f32 %v456, 0.0
      %v521 = vmax.f32 %v457, 0.0
      %v522 = vmax.f32 %v458, 0.0
      %v523 = vmax.f32 %v459, 0.0
      %v524 = vmax.f32 %v460, 0.0
      %v525 = vmax.f32 %v461, 0.0
      %v526 = vmax.f32 %v462, 0.0
      %v527 = vmax.f32 %v463, 0.0
      %v528 = vmax.f32 %v464, 0.0
      %v529 = vmax.f32 %v465, 0.0
      %v530 = vmax.f32 %v466, 0.0
      %v531 = vmax.f32 %v467, 0.0
      %v532 = vmax.f32 %v468, 0.0
      %v533 = vmax.f32 %v469, 0.0
      %v534 = vmax.f32 %v470, 0.0
      %v535 = vmax.f32 %v471, 0.0
      %v536 = vmax.f32 %v472, 0.0
      %v537 = vmax.f32 %v473, 0.0
      %v538 = vmax.f32 %v474, 0.0
      %v539 = vmax.f32 %v475, 0.0
      %v540 = vmax.f32 %v476, 0.0
      %v541 = vmax.f32 %v477, 0.0
      %v542 = vmax.f32 %v478, 0.0
      %v543 = vmax.f32 %v479, 0.0
      %v544 = vmax.f32 %v480, 0.0
      %v545 = vmax.f32 %v481, 0.0
      %v546 = vmax.f32 %v482, 0.0
      %v547 = vmax.f32 %v483, 0.0
      %v548 = vmax.f32 %v484, 0.0
      %v549 = vmax.f32 %v485, 0.0
      %v550 = vmax.f32 %v486, 0.0
      %v551 = vmax.f32 %v487, 0.0
      %v552 = vmax.f32 %v488, 0.0
      %v553 = vmax.f32 %v489, 0.0
      %v554 = vmax.f32 %v490, 0.0
      %v555 = vmax.f32 %v491, 0.0
      %v556 = vmax.f32 %v492, 0.0
      %v557 = vmax.f32 %v493, 0.0
      %v558 = vmax.f32 %v494, 0.0
      %v559 = vmax.f32 %v495, 0.0
      %v560 = vmax.f32 %v496, 0.0
      %v561 = vmax.f32 %v497, 0.0
      %v562 = vmax.f32 %v498, 0.0
      %v563 = vmax.f32 %v499, 0.0
      %v564 = vmax.f32 %v500, 0.0
      %v565 = vmax.f32 %v501, 0.0
      %v566 = vmax.f32 %v502, 0.0
      %v567 = vmax.f32 %v503, 0.0
      %v568 = vmax.f32 %v504, 0.0
      %v569 = vmax.f32 %v505, 0.0
      %v570 = vmax.f32 %v506, 0.0
      %v571 = vmax.f32 %v507, 0.0
      %v572 = vmax.f32 %v508, 0.0
      %v573 = vmax.f32 %v509, 0.0
      %v574 = vmax.f32 %v510, 0.0
      %v575 = vmax.f32 %v511, 0.0
      %v576 = vmax.f32 %v512, 0.0
      %v577 = vmax.f32 %v513, 0.0
      %v578 = vmax.f32 %v514, 0.0
      %v579 = vpack.c.bf16 %v516, %v515
      %v580 = vpack.c.bf16 %v518, %v517
      %v581 = vpack.c.bf16 %v520, %v519
      %v582 = vpack.c.bf16 %v522, %v521
      %v583 = vpack.c.bf16 %v524, %v523
      %v584 = vpack.c.bf16 %v526, %v525
      %v585 = vpack.c.bf16 %v528, %v527
      %v586 = vpack.c.bf16 %v530, %v529
      %v587 = vpack.c.bf16 %v532, %v531
      %v588 = vpack.c.bf16 %v534, %v533
      %v589 = vpack.c.bf16 %v536, %v535
      %v590 = vpack.c.bf16 %v538, %v537
      %v591 = vpack.c.bf16 %v540, %v539
      %v592 = vpack.c.bf16 %v542, %v541
      %v593 = vpack.c.bf16 %v544, %v543
      %v594 = vpack.c.bf16 %v546, %v545
      %v595 = vpack.c.bf16 %v548, %v547
      %v596 = vpack.c.bf16 %v550, %v549
      %v597 = vpack.c.bf16 %v552, %v551
      %v598 = vpack.c.bf16 %v554, %v553
      %v599 = vpack.c.bf16 %v556, %v555
      %v600 = vpack.c.bf16 %v558, %v557
      %v601 = vpack.c.bf16 %v560, %v559
      %v602 = vpack.c.bf16 %v562, %v561
      %v603 = vpack.c.bf16 %v564, %v563
      %v604 = vpack.c.bf16 %v566, %v565
      %v605 = vpack.c.bf16 %v568, %v567
      %v606 = vpack.c.bf16 %v570, %v569
      %v607 = vpack.c.bf16 %v572, %v571
      %v608 = vpack.c.bf16 %v574, %v573
      %v609 = vpack.c.bf16 %v576, %v575
      %v610 = vpack.c.bf16 %v578, %v577
      %vm611 = vsmask.f32 256
      %v613 = vshrl.u32 %v579, 16
      %v615 = vrot.slane %v613, 7
      %v616 = vshll.u32 %v579, 16
      %v618 = vor.u32 %v615, %v616
      %v620 = vshrl.u32 %v580, 16
      %v622 = vrot.slane %v620, 7
      %v623 = vshll.u32 %v580, 16
      %v625 = vor.u32 %v622, %v623
      %v626 = vsel %vm611, %v615, %v625
      %v628 = vshrl.u32 %v581, 16
      %v630 = vrot.slane %v628, 7
      %v631 = vshll.u32 %v581, 16
      %v633 = vor.u32 %v630, %v631
      %v634 = vsel %vm611, %v622, %v633
      %v636 = vshrl.u32 %v582, 16
      %v638 = vrot.slane %v636, 7
      %v639 = vshll.u32 %v582, 16
      %v641 = vor.u32 %v638, %v639
      %v642 = vsel %vm611, %v630, %v641
      %v644 = vshrl.u32 %v583, 16
      %v646 = vrot.slane %v644, 7
      %v647 = vshll.u32 %v583, 16
      %v649 = vor.u32 %v646, %v647
      %v651 = vshrl.u32 %v584, 16
      %v653 = vrot.slane %v651, 7
      %v654 = vshll.u32 %v584, 16
      %v656 = vor.u32 %v653, %v654
      %v657 = vsel %vm611, %v646, %v656
      %v659 = vshrl.u32 %v585, 16
      %v661 = vrot.slane %v659, 7
      %v662 = vshll.u32 %v585, 16
      %v664 = vor.u32 %v661, %v662
      %v665 = vsel %vm611, %v653, %v664
      %v667 = vshrl.u32 %v586, 16
      %v669 = vrot.slane %v667, 7
      %v670 = vshll.u32 %v586, 16
      %v672 = vor.u32 %v669, %v670
      %v673 = vsel %vm611, %v661, %v672
      %v675 = vshrl.u32 %v587, 16
      %v677 = vrot.slane %v675, 7
      %v678 = vshll.u32 %v587, 16
      %v680 = vor.u32 %v677, %v678
      %v682 = vshrl.u32 %v588, 16
      %v684 = vrot.slane %v682, 7
      %v685 = vshll.u32 %v588, 16
      %v687 = vor.u32 %v684, %v685
      %v688 = vsel %vm611, %v677, %v687
      %v690 = vshrl.u32 %v589, 16
      %v692 = vrot.slane %v690, 7
      %v693 = vshll.u32 %v589, 16
      %v695 = vor.u32 %v692, %v693
      %v696 = vsel %vm611, %v684, %v695
      %v698 = vshrl.u32 %v590, 16
      %v700 = vrot.slane %v698, 7
      %v701 = vshll.u32 %v590, 16
      %v703 = vor.u32 %v700, %v701
      %v704 = vsel %vm611, %v692, %v703
      %v706 = vshrl.u32 %v591, 16
      %v708 = vrot.slane %v706, 7
      %v709 = vshll.u32 %v591, 16
      %v711 = vor.u32 %v708, %v709
      %v713 = vshrl.u32 %v592, 16
      %v715 = vrot.slane %v713, 7
      %v716 = vshll.u32 %v592, 16
      %v718 = vor.u32 %v715, %v716
      %v719 = vsel %vm611, %v708, %v718
      %v721 = vshrl.u32 %v593, 16
      %v723 = vrot.slane %v721, 7
      %v724 = vshll.u32 %v593, 16
      %v726 = vor.u32 %v723, %v724
      %v727 = vsel %vm611, %v715, %v726
      %v729 = vshrl.u32 %v594, 16
      %v731 = vrot.slane %v729, 7
      %v732 = vshll.u32 %v594, 16
      %v734 = vor.u32 %v731, %v732
      %v735 = vsel %vm611, %v723, %v734
      %v737 = vshrl.u32 %v595, 16
      %v739 = vrot.slane %v737, 7
      %v740 = vshll.u32 %v595, 16
      %v742 = vor.u32 %v739, %v740
      %v744 = vshrl.u32 %v596, 16
      %v746 = vrot.slane %v744, 7
      %v747 = vshll.u32 %v596, 16
      %v749 = vor.u32 %v746, %v747
      %v750 = vsel %vm611, %v739, %v749
      %v752 = vshrl.u32 %v597, 16
      %v754 = vrot.slane %v752, 7
      %v755 = vshll.u32 %v597, 16
      %v757 = vor.u32 %v754, %v755
      %v758 = vsel %vm611, %v746, %v757
      %v760 = vshrl.u32 %v598, 16
      %v762 = vrot.slane %v760, 7
      %v763 = vshll.u32 %v598, 16
      %v765 = vor.u32 %v762, %v763
      %v766 = vsel %vm611, %v754, %v765
      %v768 = vshrl.u32 %v599, 16
      %v770 = vrot.slane %v768, 7
      %v771 = vshll.u32 %v599, 16
      %v773 = vor.u32 %v770, %v771
      %v775 = vshrl.u32 %v600, 16
      %v777 = vrot.slane %v775, 7
      %v778 = vshll.u32 %v600, 16
      %v780 = vor.u32 %v777, %v778
      %v781 = vsel %vm611, %v770, %v780
      %v783 = vshrl.u32 %v601, 16
      %v785 = vrot.slane %v783, 7
      %v786 = vshll.u32 %v601, 16
      %v788 = vor.u32 %v785, %v786
      %v789 = vsel %vm611, %v777, %v788
      %v791 = vshrl.u32 %v602, 16
      %v793 = vrot.slane %v791, 7
      %v794 = vshll.u32 %v602, 16
      %v796 = vor.u32 %v793, %v794
      %v797 = vsel %vm611, %v785, %v796
      %v799 = vshrl.u32 %v603, 16
      %v801 = vrot.slane %v799, 7
      %v802 = vshll.u32 %v603, 16
      %v804 = vor.u32 %v801, %v802
      %v806 = vshrl.u32 %v604, 16
      %v808 = vrot.slane %v806, 7
      %v809 = vshll.u32 %v604, 16
      %v811 = vor.u32 %v808, %v809
      %v812 = vsel %vm611, %v801, %v811
      %v814 = vshrl.u32 %v605, 16
      %v816 = vrot.slane %v814, 7
      %v817 = vshll.u32 %v605, 16
      %v819 = vor.u32 %v816, %v817
      %v820 = vsel %vm611, %v808, %v819
      %v822 = vshrl.u32 %v606, 16
      %v824 = vrot.slane %v822, 7
      %v825 = vshll.u32 %v606, 16
      %v827 = vor.u32 %v824, %v825
      %v828 = vsel %vm611, %v816, %v827
      %v830 = vshrl.u32 %v607, 16
      %v832 = vrot.slane %v830, 7
      %v833 = vshll.u32 %v607, 16
      %v835 = vor.u32 %v832, %v833
      %v837 = vshrl.u32 %v608, 16
      %v839 = vrot.slane %v837, 7
      %v840 = vshll.u32 %v608, 16
      %v842 = vor.u32 %v839, %v840
      %v843 = vsel %vm611, %v832, %v842
      %v845 = vshrl.u32 %v609, 16
      %v847 = vrot.slane %v845, 7
      %v848 = vshll.u32 %v609, 16
      %v850 = vor.u32 %v847, %v848
      %v851 = vsel %vm611, %v839, %v850
      %v853 = vshrl.u32 %v610, 16
      %v855 = vrot.slane %v853, 7
      %v856 = vshll.u32 %v610, 16
      %v858 = vor.u32 %v855, %v856
      %v859 = vsel %vm611, %v847, %v858
      %vm868 = vcmask 1040384
      %vm869 = vmand %vm868, %vm611
      %v870 = vsel %vm869, 0, %v618
      %v871 = vsel %vm869, 0, %v649
      %v872 = vsel %vm869, 0, %v680
      %v873 = vsel %vm869, 0, %v711
      %v874 = vsel %vm869, 0, %v742
      %v875 = vsel %vm869, 0, %v773
      %v876 = vsel %vm869, 0, %v804
      %v877 = vsel %vm869, 0, %v835
      %vm878 = vsmask.f32 7424
      %v879 = vrot.slane %v616, 1
      %v880 = vor.u32 %v613, %v879
      %v881 = vrot.slane %v623, 1
      %v882 = vsel %vm878, %v880, %v881
      %v883 = vor.u32 %v620, %v881
      %v884 = vrot.slane %v631, 1
      %v885 = vsel %vm878, %v883, %v884
      %v886 = vor.u32 %v628, %v884
      %v887 = vrot.slane %v639, 1
      %v888 = vsel %vm878, %v886, %v887
      %v889 = vor.u32 %v636, %v887
      %v890 = vrot.slane %v647, 1
      %v891 = vor.u32 %v644, %v890
      %v892 = vrot.slane %v654, 1
      %v893 = vsel %vm878, %v891, %v892
      %v894 = vor.u32 %v651, %v892
      %v895 = vrot.slane %v662, 1
      %v896 = vsel %vm878, %v894, %v895
      %v897 = vor.u32 %v659, %v895
      %v898 = vrot.slane %v670, 1
      %v899 = vsel %vm878, %v897, %v898
      %v900 = vor.u32 %v667, %v898
      %v901 = vrot.slane %v678, 1
      %v902 = vor.u32 %v675, %v901
      %v903 = vrot.slane %v685, 1
      %v904 = vsel %vm878, %v902, %v903
      %v905 = vor.u32 %v682, %v903
      %v906 = vrot.slane %v693, 1
      %v907 = vsel %vm878, %v905, %v906
      %v908 = vor.u32 %v690, %v906
      %v909 = vrot.slane %v701, 1
      %v910 = vsel %vm878, %v908, %v909
      %v911 = vor.u32 %v698, %v909
      %v912 = vrot.slane %v709, 1
      %v913 = vor.u32 %v706, %v912
      %v914 = vrot.slane %v716, 1
      %v915 = vsel %vm878, %v913, %v914
      %v916 = vor.u32 %v713, %v914
      %v917 = vrot.slane %v724, 1
      %v918 = vsel %vm878, %v916, %v917
      %v919 = vor.u32 %v721, %v917
      %v920 = vrot.slane %v732, 1
      %v921 = vsel %vm878, %v919, %v920
      %v922 = vor.u32 %v729, %v920
      %v923 = vrot.slane %v740, 1
      %v924 = vor.u32 %v737, %v923
      %v925 = vrot.slane %v747, 1
      %v926 = vsel %vm878, %v924, %v925
      %v927 = vor.u32 %v744, %v925
      %v928 = vrot.slane %v755, 1
      %v929 = vsel %vm878, %v927, %v928
      %v930 = vor.u32 %v752, %v928
      %v931 = vrot.slane %v763, 1
      %v932 = vsel %vm878, %v930, %v931
      %v933 = vor.u32 %v760, %v931
      %v934 = vrot.slane %v771, 1
      %v935 = vor.u32 %v768, %v934
      %v936 = vrot.slane %v778, 1
      %v937 = vsel %vm878, %v935, %v936
      %v938 = vor.u32 %v775, %v936
      %v939 = vrot.slane %v786, 1
      %v940 = vsel %vm878, %v938, %v939
      %v941 = vor.u32 %v783, %v939
      %v942 = vrot.slane %v794, 1
      %v943 = vsel %vm878, %v941, %v942
      %v944 = vor.u32 %v791, %v942
      %v945 = vrot.slane %v802, 1
      %v946 = vor.u32 %v799, %v945
      %v947 = vrot.slane %v809, 1
      %v948 = vsel %vm878, %v946, %v947
      %v949 = vor.u32 %v806, %v947
      %v950 = vrot.slane %v817, 1
      %v951 = vsel %vm878, %v949, %v950
      %v952 = vor.u32 %v814, %v950
      %v953 = vrot.slane %v825, 1
      %v954 = vsel %vm878, %v952, %v953
      %v955 = vor.u32 %v822, %v953
      %v956 = vrot.slane %v833, 1
      %v957 = vor.u32 %v830, %v956
      %v958 = vrot.slane %v840, 1
      %v959 = vsel %vm878, %v957, %v958
      %v960 = vor.u32 %v837, %v958
      %v961 = vrot.slane %v848, 1
      %v962 = vsel %vm878, %v960, %v961
      %v963 = vor.u32 %v845, %v961
      %v964 = vrot.slane %v856, 1
      %v965 = vsel %vm878, %v963, %v964
      %v966 = vor.u32 %v853, %v964
      %vm975 = vcmask 1047552
      %vm976 = vmand %vm975, %vm878
      %v977 = vsel %vm976, %v889, 0
      %v978 = vsel %vm976, %v900, 0
      %v979 = vsel %vm976, %v911, 0
      %v980 = vsel %vm976, %v922, 0
      %v981 = vsel %vm976, %v933, 0
      %v982 = vsel %vm976, %v944, 0
      %v983 = vsel %vm976, %v955, 0
      %v984 = vsel %vm976, %v966, 0
      %993 = vrot.lane.b32.xlu0 %v870, 64
      %v994 = vpop.permute.xlu0 %993
      %995 = vrot.lane.b32.xlu0 %v626, 64
      %v996 = vpop.permute.xlu0 %995
      %997 = vrot.lane.b32.xlu0 %v634, 64
      %v998 = vpop.permute.xlu0 %997
      %999 = vrot.lane.b32.xlu0 %v642, 64
      %v1000 = vpop.permute.xlu0 %999
      %1001 = vrot.lane.b32.xlu0 %v871, 64
      %v1002 = vpop.permute.xlu0 %1001
      %1003 = vrot.lane.b32.xlu0 %v657, 64
      %v1004 = vpop.permute.xlu0 %1003
      %1005 = vrot.lane.b32.xlu0 %v665, 64
      %v1006 = vpop.permute.xlu0 %1005
      %1007 = vrot.lane.b32.xlu0 %v673, 64
      %v1008 = vpop.permute.xlu0 %1007
      %1009 = vrot.lane.b32.xlu0 %v872, 64
      %v1010 = vpop.permute.xlu0 %1009
      %1011 = vrot.lane.b32.xlu0 %v688, 64
      %v1012 = vpop.permute.xlu0 %1011
      %1013 = vrot.lane.b32.xlu0 %v696, 64
      %v1014 = vpop.permute.xlu0 %1013
      %1015 = vrot.lane.b32.xlu0 %v704, 64
      %v1016 = vpop.permute.xlu0 %1015
      %1017 = vrot.lane.b32.xlu0 %v873, 64
      %v1018 = vpop.permute.xlu0 %1017
      %1019 = vrot.lane.b32.xlu0 %v719, 64
      %v1020 = vpop.permute.xlu0 %1019
      %1021 = vrot.lane.b32.xlu0 %v727, 64
      %v1022 = vpop.permute.xlu0 %1021
      %1023 = vrot.lane.b32.xlu0 %v735, 64
      %v1024 = vpop.permute.xlu0 %1023
      %1025 = vrot.lane.b32.xlu0 %v874, 64
      %v1026 = vpop.permute.xlu0 %1025
      %1027 = vrot.lane.b32.xlu0 %v750, 64
      %v1028 = vpop.permute.xlu0 %1027
      %1029 = vrot.lane.b32.xlu0 %v758, 64
      %v1030 = vpop.permute.xlu0 %1029
      %1031 = vrot.lane.b32.xlu0 %v766, 64
      %v1032 = vpop.permute.xlu0 %1031
      %1033 = vrot.lane.b32.xlu0 %v875, 64
      %v1034 = vpop.permute.xlu0 %1033
      %1035 = vrot.lane.b32.xlu0 %v781, 64
      %v1036 = vpop.permute.xlu0 %1035
      %1037 = vrot.lane.b32.xlu0 %v789, 64
      %v1038 = vpop.permute.xlu0 %1037
      %1039 = vrot.lane.b32.xlu0 %v797, 64
      %v1040 = vpop.permute.xlu0 %1039
      %1041 = vrot.lane.b32.xlu0 %v876, 64
      %v1042 = vpop.permute.xlu0 %1041
      %1043 = vrot.lane.b32.xlu0 %v812, 64
      %v1044 = vpop.permute.xlu0 %1043
      %1045 = vrot.lane.b32.xlu0 %v820, 64
      %v1046 = vpop.permute.xlu0 %1045
      %1047 = vrot.lane.b32.xlu0 %v828, 64
      %v1048 = vpop.permute.xlu0 %1047
      %1049 = vrot.lane.b32.xlu0 %v877, 64
      %v1050 = vpop.permute.xlu0 %1049
      %1051 = vrot.lane.b32.xlu0 %v843, 64
      %v1052 = vpop.permute.xlu0 %1051
      %1053 = vrot.lane.b32.xlu0 %v851, 64
      %v1054 = vpop.permute.xlu0 %1053
      %1055 = vrot.lane.b32.xlu0 %v859, 64
      %v1056 = vpop.permute.xlu0 %1055
      %1089 = vrot.lane.b32.xlu0 %v579, 64
      %v1090 = vpop.permute.xlu0 %1089
      %1091 = vrot.lane.b32.xlu0 %v580, 64
      %v1092 = vpop.permute.xlu0 %1091
      %1093 = vrot.lane.b32.xlu0 %v581, 64
      %v1094 = vpop.permute.xlu0 %1093
      %1095 = vrot.lane.b32.xlu0 %v582, 64
      %v1096 = vpop.permute.xlu0 %1095
      %1097 = vrot.lane.b32.xlu0 %v583, 64
      %v1098 = vpop.permute.xlu0 %1097
      %1099 = vrot.lane.b32.xlu0 %v584, 64
      %v1100 = vpop.permute.xlu0 %1099
      %1101 = vrot.lane.b32.xlu0 %v585, 64
      %v1102 = vpop.permute.xlu0 %1101
      %1103 = vrot.lane.b32.xlu0 %v586, 64
      %v1104 = vpop.permute.xlu0 %1103
      %1105 = vrot.lane.b32.xlu0 %v587, 64
      %v1106 = vpop.permute.xlu0 %1105
      %1107 = vrot.lane.b32.xlu0 %v588, 64
      %v1108 = vpop.permute.xlu0 %1107
      %1109 = vrot.lane.b32.xlu0 %v589, 64
      %v1110 = vpop.permute.xlu0 %1109
      %1111 = vrot.lane.b32.xlu0 %v590, 64
      %v1112 = vpop.permute.xlu0 %1111
      %1113 = vrot.lane.b32.xlu0 %v591, 64
      %v1114 = vpop.permute.xlu0 %1113
      %1115 = vrot.lane.b32.xlu0 %v592, 64
      %v1116 = vpop.permute.xlu0 %1115
      %1117 = vrot.lane.b32.xlu0 %v593, 64
      %v1118 = vpop.permute.xlu0 %1117
      %1119 = vrot.lane.b32.xlu0 %v594, 64
      %v1120 = vpop.permute.xlu0 %1119
      %1121 = vrot.lane.b32.xlu0 %v595, 64
      %v1122 = vpop.permute.xlu0 %1121
      %1123 = vrot.lane.b32.xlu0 %v596, 64
      %v1124 = vpop.permute.xlu0 %1123
      %1125 = vrot.lane.b32.xlu0 %v597, 64
      %v1126 = vpop.permute.xlu0 %1125
      %1127 = vrot.lane.b32.xlu0 %v598, 64
      %v1128 = vpop.permute.xlu0 %1127
      %1129 = vrot.lane.b32.xlu0 %v599, 64
      %v1130 = vpop.permute.xlu0 %1129
      %1131 = vrot.lane.b32.xlu0 %v600, 64
      %v1132 = vpop.permute.xlu0 %1131
      %1133 = vrot.lane.b32.xlu0 %v601, 64
      %v1134 = vpop.permute.xlu0 %1133
      %1135 = vrot.lane.b32.xlu0 %v602, 64
      %v1136 = vpop.permute.xlu0 %1135
      %1137 = vrot.lane.b32.xlu0 %v603, 64
      %v1138 = vpop.permute.xlu0 %1137
      %1139 = vrot.lane.b32.xlu0 %v604, 64
      %v1140 = vpop.permute.xlu0 %1139
      %1141 = vrot.lane.b32.xlu0 %v605, 64
      %v1142 = vpop.permute.xlu0 %1141
      %1143 = vrot.lane.b32.xlu0 %v606, 64
      %v1144 = vpop.permute.xlu0 %1143
      %1145 = vrot.lane.b32.xlu0 %v607, 64
      %v1146 = vpop.permute.xlu0 %1145
      %1147 = vrot.lane.b32.xlu0 %v608, 64
      %v1148 = vpop.permute.xlu0 %1147
      %1149 = vrot.lane.b32.xlu0 %v609, 64
      %v1150 = vpop.permute.xlu0 %1149
      %1151 = vrot.lane.b32.xlu0 %v610, 64
      %v1152 = vpop.permute.xlu0 %1151
      %1161 = vrot.lane.b32.xlu0 %v882, 64
      %v1162 = vpop.permute.xlu0 %1161
      %1163 = vrot.lane.b32.xlu0 %v885, 64
      %v1164 = vpop.permute.xlu0 %1163
      %1165 = vrot.lane.b32.xlu0 %v888, 64
      %v1166 = vpop.permute.xlu0 %1165
      %1167 = vrot.lane.b32.xlu0 %v977, 64
      %v1168 = vpop.permute.xlu0 %1167
      %1169 = vrot.lane.b32.xlu0 %v893, 64
      %v1170 = vpop.permute.xlu0 %1169
      %1171 = vrot.lane.b32.xlu0 %v896, 64
      %v1172 = vpop.permute.xlu0 %1171
      %1173 = vrot.lane.b32.xlu0 %v899, 64
      %v1174 = vpop.permute.xlu0 %1173
      %1175 = vrot.lane.b32.xlu0 %v978, 64
      %v1176 = vpop.permute.xlu0 %1175
      %1177 = vrot.lane.b32.xlu0 %v904, 64
      %v1178 = vpop.permute.xlu0 %1177
      %1179 = vrot.lane.b32.xlu0 %v907, 64
      %v1180 = vpop.permute.xlu0 %1179
      %1181 = vrot.lane.b32.xlu0 %v910, 64
      %v1182 = vpop.permute.xlu0 %1181
      %1183 = vrot.lane.b32.xlu0 %v979, 64
      %v1184 = vpop.permute.xlu0 %1183
      %1185 = vrot.lane.b32.xlu0 %v915, 64
      %v1186 = vpop.permute.xlu0 %1185
      %1187 = vrot.lane.b32.xlu0 %v918, 64
      %v1188 = vpop.permute.xlu0 %1187
      %1189 = vrot.lane.b32.xlu0 %v921, 64
      %v1190 = vpop.permute.xlu0 %1189
      %1191 = vrot.lane.b32.xlu0 %v980, 64
      %v1192 = vpop.permute.xlu0 %1191
      %1193 = vrot.lane.b32.xlu0 %v926, 64
      %v1194 = vpop.permute.xlu0 %1193
      %1195 = vrot.lane.b32.xlu0 %v929, 64
      %v1196 = vpop.permute.xlu0 %1195
      %1197 = vrot.lane.b32.xlu0 %v932, 64
      %v1198 = vpop.permute.xlu0 %1197
      %1199 = vrot.lane.b32.xlu0 %v981, 64
      %v1200 = vpop.permute.xlu0 %1199
      %1201 = vrot.lane.b32.xlu0 %v937, 64
      %v1202 = vpop.permute.xlu0 %1201
      %1203 = vrot.lane.b32.xlu0 %v940, 64
      %v1204 = vpop.permute.xlu0 %1203
      %1205 = vrot.lane.b32.xlu0 %v943, 64
      %v1206 = vpop.permute.xlu0 %1205
      %1207 = vrot.lane.b32.xlu0 %v982, 64
      %v1208 = vpop.permute.xlu0 %1207
      %1209 = vrot.lane.b32.xlu0 %v948, 64
      %v1210 = vpop.permute.xlu0 %1209
      %1211 = vrot.lane.b32.xlu0 %v951, 64
      %v1212 = vpop.permute.xlu0 %1211
      %1213 = vrot.lane.b32.xlu0 %v954, 64
      %v1214 = vpop.permute.xlu0 %1213
      %1215 = vrot.lane.b32.xlu0 %v983, 64
      %v1216 = vpop.permute.xlu0 %1215
      %1217 = vrot.lane.b32.xlu0 %v959, 64
      %v1218 = vpop.permute.xlu0 %1217
      %1219 = vrot.lane.b32.xlu0 %v962, 64
      %v1220 = vpop.permute.xlu0 %1219
      %1221 = vrot.lane.b32.xlu0 %v965, 64
      %v1222 = vpop.permute.xlu0 %1221
      %1223 = vrot.lane.b32.xlu0 %v984, 64
      %v1224 = vpop.permute.xlu0 %1223
      %vm1225 = vcmask 523264
      %v1228 = vsel %vm1225, %v994, %v1090
      %v1232 = vsel %vm1225, %v996, %v1092
      %v1236 = vsel %vm1225, %v998, %v1094
      %v1240 = vsel %vm1225, %v1000, %v1096
      %v1244 = vsel %vm1225, %v1002, %v1098
      %v1248 = vsel %vm1225, %v1004, %v1100
      %v1252 = vsel %vm1225, %v1006, %v1102
      %v1256 = vsel %vm1225, %v1008, %v1104
      %v1260 = vsel %vm1225, %v1010, %v1106
      %v1264 = vsel %vm1225, %v1012, %v1108
      %v1268 = vsel %vm1225, %v1014, %v1110
      %v1272 = vsel %vm1225, %v1016, %v1112
      %v1276 = vsel %vm1225, %v1018, %v1114
      %v1280 = vsel %vm1225, %v1020, %v1116
      %v1284 = vsel %vm1225, %v1022, %v1118
      %v1288 = vsel %vm1225, %v1024, %v1120
      %v1292 = vsel %vm1225, %v1026, %v1122
      %v1296 = vsel %vm1225, %v1028, %v1124
      %v1300 = vsel %vm1225, %v1030, %v1126
      %v1304 = vsel %vm1225, %v1032, %v1128
      %v1308 = vsel %vm1225, %v1034, %v1130
      %v1312 = vsel %vm1225, %v1036, %v1132
      %v1316 = vsel %vm1225, %v1038, %v1134
      %v1320 = vsel %vm1225, %v1040, %v1136
      %v1324 = vsel %vm1225, %v1042, %v1138
      %v1328 = vsel %vm1225, %v1044, %v1140
      %v1332 = vsel %vm1225, %v1046, %v1142
      %v1336 = vsel %vm1225, %v1048, %v1144
      %v1340 = vsel %vm1225, %v1050, %v1146
      %v1344 = vsel %vm1225, %v1052, %v1148
      %v1348 = vsel %vm1225, %v1054, %v1150
      %v1352 = vsel %vm1225, %v1056, %v1152
      %v1355 = vsel %vm1225, %v1090, %v1162
      %v1358 = vsel %vm1225, %v1092, %v1164
      %v1361 = vsel %vm1225, %v1094, %v1166
      %v1364 = vsel %vm1225, %v1096, %v1168
      %v1367 = vsel %vm1225, %v1098, %v1170
      %v1370 = vsel %vm1225, %v1100, %v1172
      %v1373 = vsel %vm1225, %v1102, %v1174
      %v1376 = vsel %vm1225, %v1104, %v1176
      %v1379 = vsel %vm1225, %v1106, %v1178
      %v1382 = vsel %vm1225, %v1108, %v1180
      %v1385 = vsel %vm1225, %v1110, %v1182
      %v1388 = vsel %vm1225, %v1112, %v1184
      %v1391 = vsel %vm1225, %v1114, %v1186
      %v1394 = vsel %vm1225, %v1116, %v1188
      %v1397 = vsel %vm1225, %v1118, %v1190
      %v1400 = vsel %vm1225, %v1120, %v1192
      %v1403 = vsel %vm1225, %v1122, %v1194
      %v1406 = vsel %vm1225, %v1124, %v1196
      %v1409 = vsel %vm1225, %v1126, %v1198
      %v1412 = vsel %vm1225, %v1128, %v1200
      %v1415 = vsel %vm1225, %v1130, %v1202
      %v1418 = vsel %vm1225, %v1132, %v1204
      %v1421 = vsel %vm1225, %v1134, %v1206
      %v1424 = vsel %vm1225, %v1136, %v1208
      %v1427 = vsel %vm1225, %v1138, %v1210
      %v1430 = vsel %vm1225, %v1140, %v1212
      %v1433 = vsel %vm1225, %v1142, %v1214
      %v1436 = vsel %vm1225, %v1144, %v1216
      %v1439 = vsel %vm1225, %v1146, %v1218
      %v1442 = vsel %vm1225, %v1148, %v1220
      %v1445 = vsel %vm1225, %v1150, %v1222
      %v1448 = vsel %vm1225, %v1152, %v1224
      %v1450 = vld [vmem:[%s3] sm:$0xf]
      %v1451 = vld [vmem:[%s3 + $0x4] sm:$0xf]
      %v1452 = vld [vmem:[%s3 + $0x8] sm:$0xf]
      %v1453 = vld [vmem:[%s3 + $0xc] sm:$0xf]
      %v1454 = vld [vmem:[%s3 + $0x10] sm:$0xf]
      %v1455 = vld [vmem:[%s3 + $0x14] sm:$0xf]
      %v1456 = vld [vmem:[%s3 + $0x18] sm:$0xf]
      %v1457 = vld [vmem:[%s3 + $0x1c] sm:$0xf]
      %v1458 = vld [vmem:[%s3 + $0x20] sm:$0xf]
      %v1459 = vld [vmem:[%s3 + $0x24] sm:$0xf]
      %v1460 = vld [vmem:[%s3 + $0x28] sm:$0xf]
      %v1461 = vld [vmem:[%s3 + $0x2c] sm:$0xf]
      %v1462 = vld [vmem:[%s3 + $0x30] sm:$0xf]
      %v1463 = vld [vmem:[%s3 + $0x34] sm:$0xf]
      %v1464 = vld [vmem:[%s3 + $0x38] sm:$0xf]
      %v1465 = vld [vmem:[%s3 + $0x3c] sm:$0xf]
      %v1466 = vld [vmem:[%s3 + $0x40] sm:$0xf]
      %v1467 = vld [vmem:[%s3 + $0x44] sm:$0xf]
      %v1468 = vld [vmem:[%s3 + $0x48] sm:$0xf]
      %v1469 = vld [vmem:[%s3 + $0x4c] sm:$0xf]
      %v1470 = vld [vmem:[%s3 + $0x50] sm:$0xf]
      %v1471 = vld [vmem:[%s3 + $0x54] sm:$0xf]
      %v1472 = vld [vmem:[%s3 + $0x58] sm:$0xf]
      %v1473 = vld [vmem:[%s3 + $0x5c] sm:$0xf]
      %v1474 = vld [vmem:[%s3 + $0x60] sm:$0xf]
      %v1475 = vld [vmem:[%s3 + $0x64] sm:$0xf]
      %v1476 = vld [vmem:[%s3 + $0x68] sm:$0xf]
      %v1477 = vld [vmem:[%s3 + $0x6c] sm:$0xf]
      %v1478 = vld [vmem:[%s3 + $0x70] sm:$0xf]
      %v1479 = vld [vmem:[%s3 + $0x74] sm:$0xf]
      %v1480 = vld [vmem:[%s3 + $0x78] sm:$0xf]
      %v1481 = vld [vmem:[%s3 + $0x7c] sm:$0xf]
      %v1514 = vunpack.c.l.b16 %v1450
      %v1515 = vunpack.c.l.b16 %v1451
      %v1516 = vunpack.c.l.b16 %v1452
      %v1517 = vunpack.c.l.b16 %v1453
      %v1518 = vunpack.c.l.b16 %v1454
      %v1519 = vunpack.c.l.b16 %v1455
      %v1520 = vunpack.c.l.b16 %v1456
      %v1521 = vunpack.c.l.b16 %v1457
      %v1522 = vunpack.c.l.b16 %v1458
      %v1523 = vunpack.c.l.b16 %v1459
      %v1524 = vunpack.c.l.b16 %v1460
      %v1525 = vunpack.c.l.b16 %v1461
      %v1526 = vunpack.c.l.b16 %v1462
      %v1527 = vunpack.c.l.b16 %v1463
      %v1528 = vunpack.c.l.b16 %v1464
      %v1529 = vunpack.c.l.b16 %v1465
      %v1530 = vunpack.c.l.b16 %v1466
      %v1531 = vunpack.c.l.b16 %v1467
      %v1532 = vunpack.c.l.b16 %v1468
      %v1533 = vunpack.c.l.b16 %v1469
      %v1534 = vunpack.c.l.b16 %v1470
      %v1535 = vunpack.c.l.b16 %v1471
      %v1536 = vunpack.c.l.b16 %v1472
      %v1537 = vunpack.c.l.b16 %v1473
      %v1538 = vunpack.c.l.b16 %v1474
      %v1539 = vunpack.c.l.b16 %v1475
      %v1540 = vunpack.c.l.b16 %v1476
      %v1541 = vunpack.c.l.b16 %v1477
      %v1542 = vunpack.c.l.b16 %v1478
      %v1543 = vunpack.c.l.b16 %v1479
      %v1544 = vunpack.c.l.b16 %v1480
      %v1545 = vunpack.c.l.b16 %v1481
      %v1546 = vpack.c.b16 %v1515, %v1514
      %v1547 = vpack.c.b16 %v1517, %v1516
      %v1548 = vpack.c.b16 %v1519, %v1518
      %v1549 = vpack.c.b16 %v1521, %v1520
      %v1550 = vpack.c.b16 %v1523, %v1522
      %v1551 = vpack.c.b16 %v1525, %v1524
      %v1552 = vpack.c.b16 %v1527, %v1526
      %v1553 = vpack.c.b16 %v1529, %v1528
      %v1554 = vpack.c.b16 %v1531, %v1530
      %v1555 = vpack.c.b16 %v1533, %v1532
      %v1556 = vpack.c.b16 %v1535, %v1534
      %v1557 = vpack.c.b16 %v1537, %v1536
      %v1558 = vpack.c.b16 %v1539, %v1538
      %v1559 = vpack.c.b16 %v1541, %v1540
      %v1560 = vpack.c.b16 %v1543, %v1542
      %v1561 = vpack.c.b16 %v1545, %v1544
      %1578 = vmatprep.subr.bf16.mxu0 0
      %1579 = vmatpush1.bf16.msra.mxu0 %v1546
      %1580 = vmatprep.subr.bf16.mxu0 0
      %1581 = vmatpush1.bf16.msra.mxu0 %v1547
      %1582 = vmatprep.subr.bf16.mxu0 0
      %1583 = vmatpush1.bf16.msra.mxu0 %v1548
      %1584 = vmatprep.subr.bf16.mxu0 0
      %1585 = vmatpush1.bf16.msra.mxu0 %v1549
      %1586 = vmatprep.subr.bf16.mxu0 0
      %1587 = vmatpush1.bf16.msra.mxu0 %v1550
      %1588 = vmatprep.subr.bf16.mxu0 0
      %1589 = vmatpush1.bf16.msra.mxu0 %v1551
      %1590 = vmatprep.subr.bf16.mxu0 0
      %1591 = vmatpush1.bf16.msra.mxu0 %v1552
      %1592 = vmatprep.subr.bf16.mxu0 0
      %1593 = vmatpush1.bf16.msra.mxu0 %v1553
      %1594 = vmatprep.subr.bf16.mxu0 0
      %1595 = vmatpush1.bf16.msra.mxu0 %v1554
      %1596 = vmatprep.subr.bf16.mxu0 0
      %1597 = vmatpush1.bf16.msra.mxu0 %v1555
      %1598 = vmatprep.subr.bf16.mxu0 0
      %1599 = vmatpush1.bf16.msra.mxu0 %v1556
      %1600 = vmatprep.subr.bf16.mxu0 0
      %1601 = vmatpush1.bf16.msra.mxu0 %v1557
      %1602 = vmatprep.subr.bf16.mxu0 0
      %1603 = vmatpush1.bf16.msra.mxu0 %v1558
      %1604 = vmatprep.subr.bf16.mxu0 0
      %1605 = vmatpush1.bf16.msra.mxu0 %v1559
      %1606 = vmatprep.subr.bf16.mxu0 0
      %1607 = vmatpush1.bf16.msra.mxu0 %v1560
      %1608 = vmatprep.subr.bf16.mxu0 0
      %1609 = vmatpush1.bf16.msra.mxu0 %v1561
      %1610 = vmatprep.mubr.bf16.mxu0 %v1355
      %1611 = vmatmul.mubr.bf16.gmra.mrb[0].mxu0 %v1228
      %v1612 = vpop.f32.mrb[0].mxu0
      %v1613 = vadd.f32 0.0, %v1612
      %v1614 = vpop.f32.mrb[0].mxu0
      %v1615 = vpop.f32.mrb[0].mxu0
      %v1616 = vadd.f32 0.0, %v1615
      %v1617 = vpop.f32.mrb[0].mxu0
      %1618 = vmatprep.mubr.bf16.mxu0 %v1358
      %1619 = vmatmul.mubr.bf16.gmra.mrb[0].mxu0 %v1232
      %v1620 = vpop.f32.mrb[0].mxu0
      %v1621 = vadd.f32 0.0, %v1620
      %v1622 = vpop.f32.mrb[0].mxu0
      %v1623 = vpop.f32.mrb[0].mxu0
      %v1624 = vadd.f32 0.0, %v1623
      %v1625 = vpop.f32.mrb[0].mxu0
      %1626 = vmatprep.mubr.bf16.mxu0 %v1361
      %1627 = vmatmul.mubr.bf16.gmra.mrb[0].mxu0 %v1236
      %v1628 = vpop.f32.mrb[0].mxu0
      %v1629 = vadd.f32 0.0, %v1628
      %v1630 = vpop.f32.mrb[0].mxu0
      %v1631 = vpop.f32.mrb[0].mxu0
      %v1632 = vadd.f32 0.0, %v1631
      %v1633 = vpop.f32.mrb[0].mxu0
      %1634 = vmatprep.mubr.bf16.mxu0 %v1364
      %1635 = vmatmul.mubr.bf16.gmra.mrb[0].mxu0 %v1240
      %v1636 = vpop.f32.mrb[0].mxu0
      %v1637 = vadd.f32 0.0, %v1636
      %v1638 = vpop.f32.mrb[0].mxu0
      %v1639 = vpop.f32.mrb[0].mxu0
      %v1640 = vadd.f32 0.0, %v1639
      %v1641 = vpop.f32.mrb[0].mxu0
      %1642 = vmatprep.mubr.bf16.mxu0 %v1367
      %1643 = vmatmul.mubr.bf16.gmra.mrb[0].mxu0 %v1244
      %v1644 = vpop.f32.mrb[0].mxu0
      %v1645 = vadd.f32 0.0, %v1644
      %v1646 = vpop.f32.mrb[0].mxu0
      %v1647 = vpop.f32.mrb[0].mxu0
      %v1648 = vadd.f32 0.0, %v1647
      %v1649 = vpop.f32.mrb[0].mxu0
      %1650 = vmatprep.mubr.bf16.mxu0 %v1370
      %1651 = vmatmul.mubr.bf16.gmra.mrb[0].mxu0 %v1248
      %v1652 = vpop.f32.mrb[0].mxu0
      %v1653 = vadd.f32 0.0, %v1652
      %v1654 = vpop.f32.mrb[0].mxu0
      %v1655 = vpop.f32.mrb[0].mxu0
      %v1656 = vadd.f32 0.0, %v1655
      %v1657 = vpop.f32.mrb[0].mxu0
      %1658 = vmatprep.mubr.bf16.mxu0 %v1373
      %1659 = vmatmul.mubr.bf16.gmra.mrb[0].mxu0 %v1252
      %v1660 = vpop.f32.mrb[0].mxu0
      %v1661 = vadd.f32 0.0, %v1660
      %v1662 = vpop.f32.mrb[0].mxu0
      %v1663 = vpop.f32.mrb[0].mxu0
      %v1664 = vadd.f32 0.0, %v1663
      %v1665 = vpop.f32.mrb[0].mxu0
      %1666 = vmatprep.mubr.bf16.mxu0 %v1376
      %1667 = vmatmul.mubr.bf16.gmra.mrb[0].mxu0 %v1256
      %v1668 = vpop.f32.mrb[0].mxu0
      %v1669 = vadd.f32 0.0, %v1668
      %v1670 = vpop.f32.mrb[0].mxu0
      %v1671 = vpop.f32.mrb[0].mxu0
      %v1672 = vadd.f32 0.0, %v1671
      %v1673 = vpop.f32.mrb[0].mxu0
      %1674 = vmatprep.mubr.bf16.mxu0 %v1379
      %1675 = vmatmul.mubr.bf16.gmra.mrb[0].mxu0 %v1260
      %v1676 = vpop.f32.mrb[0].mxu0
      %v1677 = vadd.f32 0.0, %v1676
      %v1678 = vpop.f32.mrb[0].mxu0
      %v1679 = vpop.f32.mrb[0].mxu0
      %v1680 = vadd.f32 0.0, %v1679
      %v1681 = vpop.f32.mrb[0].mxu0
      %1682 = vmatprep.mubr.bf16.mxu0 %v1382
      %1683 = vmatmul.mubr.bf16.gmra.mrb[0].mxu0 %v1264
      %v1684 = vpop.f32.mrb[0].mxu0
      %v1685 = vadd.f32 0.0, %v1684
      %v1686 = vpop.f32.mrb[0].mxu0
      %v1687 = vpop.f32.mrb[0].mxu0
      %v1688 = vadd.f32 0.0, %v1687
      %v1689 = vpop.f32.mrb[0].mxu0
      %1690 = vmatprep.mubr.bf16.mxu0 %v1385
      %1691 = vmatmul.mubr.bf16.gmra.mrb[0].mxu0 %v1268
      %v1692 = vpop.f32.mrb[0].mxu0
      %v1693 = vadd.f32 0.0, %v1692
      %v1694 = vpop.f32.mrb[0].mxu0
      %v1695 = vpop.f32.mrb[0].mxu0
      %v1696 = vadd.f32 0.0, %v1695
      %v1697 = vpop.f32.mrb[0].mxu0
      %1698 = vmatprep.mubr.bf16.mxu0 %v1388
      %1699 = vmatmul.mubr.bf16.gmra.mrb[0].mxu0 %v1272
      %v1700 = vpop.f32.mrb[0].mxu0
      %v1701 = vadd.f32 0.0, %v1700
      %v1702 = vpop.f32.mrb[0].mxu0
      %v1703 = vpop.f32.mrb[0].mxu0
      %v1704 = vadd.f32 0.0, %v1703
      %v1705 = vpop.f32.mrb[0].mxu0
      %1706 = vmatprep.mubr.bf16.mxu0 %v1391
      %1707 = vmatmul.mubr.bf16.gmra.mrb[0].mxu0 %v1276
      %v1708 = vpop.f32.mrb[0].mxu0
      %v1709 = vadd.f32 0.0, %v1708
      %v1710 = vpop.f32.mrb[0].mxu0
      %v1711 = vpop.f32.mrb[0].mxu0
      %v1712 = vadd.f32 0.0, %v1711
      %v1713 = vpop.f32.mrb[0].mxu0
      %1714 = vmatprep.mubr.bf16.mxu0 %v1394
      %1715 = vmatmul.mubr.bf16.gmra.mrb[0].mxu0 %v1280
      %v1716 = vpop.f32.mrb[0].mxu0
      %v1717 = vadd.f32 0.0, %v1716
      %v1718 = vpop.f32.mrb[0].mxu0
      %v1719 = vpop.f32.mrb[0].mxu0
      %v1720 = vadd.f32 0.0, %v1719
      %v1721 = vpop.f32.mrb[0].mxu0
      %1722 = vmatprep.mubr.bf16.mxu0 %v1397
      %1723 = vmatmul.mubr.bf16.gmra.mrb[0].mxu0 %v1284
      %v1724 = vpop.f32.mrb[0].mxu0
      %v1725 = vadd.f32 0.0, %v1724
      %v1726 = vpop.f32.mrb[0].mxu0
      %v1727 = vpop.f32.mrb[0].mxu0
      %v1728 = vadd.f32 0.0, %v1727
      %v1729 = vpop.f32.mrb[0].mxu0
      %1730 = vmatprep.mubr.bf16.mxu0 %v1400
      %1731 = vmatmul.mubr.bf16.gmra.mrb[0].mxu0 %v1288
      %v1732 = vpop.f32.mrb[0].mxu0
      %v1733 = vadd.f32 0.0, %v1732
      %v1734 = vpop.f32.mrb[0].mxu0
      %v1735 = vpop.f32.mrb[0].mxu0
      %v1736 = vadd.f32 0.0, %v1735
      %v1737 = vpop.f32.mrb[0].mxu0
      %1738 = vmatprep.mubr.bf16.mxu0 %v1403
      %1739 = vmatmul.mubr.bf16.gmra.mrb[0].mxu0 %v1292
      %v1740 = vpop.f32.mrb[0].mxu0
      %v1741 = vadd.f32 0.0, %v1740
      %v1742 = vpop.f32.mrb[0].mxu0
      %v1743 = vpop.f32.mrb[0].mxu0
      %v1744 = vadd.f32 0.0, %v1743
      %v1745 = vpop.f32.mrb[0].mxu0
      %1746 = vmatprep.mubr.bf16.mxu0 %v1406
      %1747 = vmatmul.mubr.bf16.gmra.mrb[0].mxu0 %v1296
      %v1748 = vpop.f32.mrb[0].mxu0
      %v1749 = vadd.f32 0.0, %v1748
      %v1750 = vpop.f32.mrb[0].mxu0
      %v1751 = vpop.f32.mrb[0].mxu0
      %v1752 = vadd.f32 0.0, %v1751
      %v1753 = vpop.f32.mrb[0].mxu0
      %1754 = vmatprep.mubr.bf16.mxu0 %v1409
      %1755 = vmatmul.mubr.bf16.gmra.mrb[0].mxu0 %v1300
      %v1756 = vpop.f32.mrb[0].mxu0
      %v1757 = vadd.f32 0.0, %v1756
      %v1758 = vpop.f32.mrb[0].mxu0
      %v1759 = vpop.f32.mrb[0].mxu0
      %v1760 = vadd.f32 0.0, %v1759
      %v1761 = vpop.f32.mrb[0].mxu0
      %1762 = vmatprep.mubr.bf16.mxu0 %v1412
      %1763 = vmatmul.mubr.bf16.gmra.mrb[0].mxu0 %v1304
      %v1764 = vpop.f32.mrb[0].mxu0
      %v1765 = vadd.f32 0.0, %v1764
      %v1766 = vpop.f32.mrb[0].mxu0
      %v1767 = vpop.f32.mrb[0].mxu0
      %v1768 = vadd.f32 0.0, %v1767
      %v1769 = vpop.f32.mrb[0].mxu0
      %1770 = vmatprep.mubr.bf16.mxu0 %v1415
      %1771 = vmatmul.mubr.bf16.gmra.mrb[0].mxu0 %v1308
      %v1772 = vpop.f32.mrb[0].mxu0
      %v1773 = vadd.f32 0.0, %v1772
      %v1774 = vpop.f32.mrb[0].mxu0
      %v1775 = vpop.f32.mrb[0].mxu0
      %v1776 = vadd.f32 0.0, %v1775
      %v1777 = vpop.f32.mrb[0].mxu0
      %1778 = vmatprep.mubr.bf16.mxu0 %v1418
      %1779 = vmatmul.mubr.bf16.gmra.mrb[0].mxu0 %v1312
      %v1780 = vpop.f32.mrb[0].mxu0
      %v1781 = vadd.f32 0.0, %v1780
      %v1782 = vpop.f32.mrb[0].mxu0
      %v1783 = vpop.f32.mrb[0].mxu0
      %v1784 = vadd.f32 0.0, %v1783
      %v1785 = vpop.f32.mrb[0].mxu0
      %1786 = vmatprep.mubr.bf16.mxu0 %v1421
      %1787 = vmatmul.mubr.bf16.gmra.mrb[0].mxu0 %v1316
      %v1788 = vpop.f32.mrb[0].mxu0
      %v1789 = vadd.f32 0.0, %v1788
      %v1790 = vpop.f32.mrb[0].mxu0
      %v1791 = vpop.f32.mrb[0].mxu0
      %v1792 = vadd.f32 0.0, %v1791
      %v1793 = vpop.f32.mrb[0].mxu0
      %1794 = vmatprep.mubr.bf16.mxu0 %v1424
      %1795 = vmatmul.mubr.bf16.gmra.mrb[0].mxu0 %v1320
      %v1796 = vpop.f32.mrb[0].mxu0
      %v1797 = vadd.f32 0.0, %v1796
      %v1798 = vpop.f32.mrb[0].mxu0
      %v1799 = vpop.f32.mrb[0].mxu0
      %v1800 = vadd.f32 0.0, %v1799
      %v1801 = vpop.f32.mrb[0].mxu0
      %1802 = vmatprep.mubr.bf16.mxu0 %v1427
      %1803 = vmatmul.mubr.bf16.gmra.mrb[0].mxu0 %v1324
      %v1804 = vpop.f32.mrb[0].mxu0
      %v1805 = vadd.f32 0.0, %v1804
      %v1806 = vpop.f32.mrb[0].mxu0
      %v1807 = vpop.f32.mrb[0].mxu0
      %v1808 = vadd.f32 0.0, %v1807
      %v1809 = vpop.f32.mrb[0].mxu0
      %1810 = vmatprep.mubr.bf16.mxu0 %v1430
      %1811 = vmatmul.mubr.bf16.gmra.mrb[0].mxu0 %v1328
      %v1812 = vpop.f32.mrb[0].mxu0
      %v1813 = vadd.f32 0.0, %v1812
      %v1814 = vpop.f32.mrb[0].mxu0
      %v1815 = vpop.f32.mrb[0].mxu0
      %v1816 = vadd.f32 0.0, %v1815
      %v1817 = vpop.f32.mrb[0].mxu0
      %1818 = vmatprep.mubr.bf16.mxu0 %v1433
      %1819 = vmatmul.mubr.bf16.gmra.mrb[0].mxu0 %v1332
      %v1820 = vpop.f32.mrb[0].mxu0
      %v1821 = vadd.f32 0.0, %v1820
      %v1822 = vpop.f32.mrb[0].mxu0
      %v1823 = vpop.f32.mrb[0].mxu0
      %v1824 = vadd.f32 0.0, %v1823
      %v1825 = vpop.f32.mrb[0].mxu0
      %1826 = vmatprep.mubr.bf16.mxu0 %v1436
      %1827 = vmatmul.mubr.bf16.gmra.mrb[0].mxu0 %v1336
      %v1828 = vpop.f32.mrb[0].mxu0
      %v1829 = vadd.f32 0.0, %v1828
      %v1830 = vpop.f32.mrb[0].mxu0
      %v1831 = vpop.f32.mrb[0].mxu0
      %v1832 = vadd.f32 0.0, %v1831
      %v1833 = vpop.f32.mrb[0].mxu0
      %1834 = vmatprep.mubr.bf16.mxu0 %v1439
      %1835 = vmatmul.mubr.bf16.gmra.mrb[0].mxu0 %v1340
      %v1836 = vpop.f32.mrb[0].mxu0
      %v1837 = vadd.f32 0.0, %v1836
      %v1838 = vpop.f32.mrb[0].mxu0
      %v1839 = vpop.f32.mrb[0].mxu0
      %v1840 = vadd.f32 0.0, %v1839
      %v1841 = vpop.f32.mrb[0].mxu0
      %1842 = vmatprep.mubr.bf16.mxu0 %v1442
      %1843 = vmatmul.mubr.bf16.gmra.mrb[0].mxu0 %v1344
      %v1844 = vpop.f32.mrb[0].mxu0
      %v1845 = vadd.f32 0.0, %v1844
      %v1846 = vpop.f32.mrb[0].mxu0
      %v1847 = vpop.f32.mrb[0].mxu0
      %v1848 = vadd.f32 0.0, %v1847
      %v1849 = vpop.f32.mrb[0].mxu0
      %1850 = vmatprep.mubr.bf16.mxu0 %v1445
      %1851 = vmatmul.mubr.bf16.gmra.mrb[0].mxu0 %v1348
      %v1852 = vpop.f32.mrb[0].mxu0
      %v1853 = vadd.f32 0.0, %v1852
      %v1854 = vpop.f32.mrb[0].mxu0
      %v1855 = vpop.f32.mrb[0].mxu0
      %v1856 = vadd.f32 0.0, %v1855
      %v1857 = vpop.f32.mrb[0].mxu0
      %1858 = vmatprep.mubr.bf16.mxu0 %v1448
      %1859 = vmatmul.mubr.bf16.gmra.mrb[0].mxu0 %v1352
      %v1860 = vpop.f32.mrb[0].mxu0
      %v1861 = vadd.f32 0.0, %v1860
      %v1862 = vpop.f32.mrb[0].mxu0
      %v1863 = vpop.f32.mrb[0].mxu0
      %v1864 = vadd.f32 0.0, %v1863
      %v1865 = vpop.f32.mrb[0].mxu0
      %1866 = vdwg.mxu0
      %v1867 = vpack.c.bf16 %v1616, %v1613
      %v1868 = vpack.c.bf16 %v1624, %v1621
      %v1869 = vpack.c.bf16 %v1632, %v1629
      %v1870 = vpack.c.bf16 %v1640, %v1637
      %v1871 = vpack.c.bf16 %v1648, %v1645
      %v1872 = vpack.c.bf16 %v1656, %v1653
      %v1873 = vpack.c.bf16 %v1664, %v1661
      %v1874 = vpack.c.bf16 %v1672, %v1669
      %v1875 = vpack.c.bf16 %v1680, %v1677
      %v1876 = vpack.c.bf16 %v1688, %v1685
      %v1877 = vpack.c.bf16 %v1696, %v1693
      %v1878 = vpack.c.bf16 %v1704, %v1701
      %v1879 = vpack.c.bf16 %v1712, %v1709
      %v1880 = vpack.c.bf16 %v1720, %v1717
      %v1881 = vpack.c.bf16 %v1728, %v1725
      %v1882 = vpack.c.bf16 %v1736, %v1733
      %v1883 = vpack.c.bf16 %v1744, %v1741
      %v1884 = vpack.c.bf16 %v1752, %v1749
      %v1885 = vpack.c.bf16 %v1760, %v1757
      %v1886 = vpack.c.bf16 %v1768, %v1765
      %v1887 = vpack.c.bf16 %v1776, %v1773
      %v1888 = vpack.c.bf16 %v1784, %v1781
      %v1889 = vpack.c.bf16 %v1792, %v1789
      %v1890 = vpack.c.bf16 %v1800, %v1797
      %v1891 = vpack.c.bf16 %v1808, %v1805
      %v1892 = vpack.c.bf16 %v1816, %v1813
      %v1893 = vpack.c.bf16 %v1824, %v1821
      %v1894 = vpack.c.bf16 %v1832, %v1829
      %v1895 = vpack.c.bf16 %v1840, %v1837
      %v1896 = vpack.c.bf16 %v1848, %v1845
      %v1897 = vpack.c.bf16 %v1856, %v1853
      %v1898 = vpack.c.bf16 %v1864, %v1861
      %v1931 = vunpack.c.l.b16 %v1867
      %v1932 = vunpack.c.h.b16 %v1867
      %v1933 = vunpack.c.l.b16 %v1868
      %v1934 = vunpack.c.h.b16 %v1868
      %v1935 = vunpack.c.l.b16 %v1869
      %v1936 = vunpack.c.h.b16 %v1869
      %v1937 = vunpack.c.l.b16 %v1870
      %v1938 = vunpack.c.h.b16 %v1870
      %v1939 = vunpack.c.l.b16 %v1871
      %v1940 = vunpack.c.h.b16 %v1871
      %v1941 = vunpack.c.l.b16 %v1872
      %v1942 = vunpack.c.h.b16 %v1872
      %v1943 = vunpack.c.l.b16 %v1873
      %v1944 = vunpack.c.h.b16 %v1873
      %v1945 = vunpack.c.l.b16 %v1874
      %v1946 = vunpack.c.h.b16 %v1874
      %v1947 = vunpack.c.l.b16 %v1875
      %v1948 = vunpack.c.h.b16 %v1875
      %v1949 = vunpack.c.l.b16 %v1876
      %v1950 = vunpack.c.h.b16 %v1876
      %v1951 = vunpack.c.l.b16 %v1877
      %v1952 = vunpack.c.h.b16 %v1877
      %v1953 = vunpack.c.l.b16 %v1878
      %v1954 = vunpack.c.h.b16 %v1878
      %v1955 = vunpack.c.l.b16 %v1879
      %v1956 = vunpack.c.h.b16 %v1879
      %v1957 = vunpack.c.l.b16 %v1880
      %v1958 = vunpack.c.h.b16 %v1880
      %v1959 = vunpack.c.l.b16 %v1881
      %v1960 = vunpack.c.h.b16 %v1881
      %v1961 = vunpack.c.l.b16 %v1882
      %v1962 = vunpack.c.h.b16 %v1882
      %v1963 = vunpack.c.l.b16 %v1883
      %v1964 = vunpack.c.h.b16 %v1883
      %v1965 = vunpack.c.l.b16 %v1884
      %v1966 = vunpack.c.h.b16 %v1884
      %v1967 = vunpack.c.l.b16 %v1885
      %v1968 = vunpack.c.h.b16 %v1885
      %v1969 = vunpack.c.l.b16 %v1886
      %v1970 = vunpack.c.h.b16 %v1886
      %v1971 = vunpack.c.l.b16 %v1887
      %v1972 = vunpack.c.h.b16 %v1887
      %v1973 = vunpack.c.l.b16 %v1888
      %v1974 = vunpack.c.h.b16 %v1888
      %v1975 = vunpack.c.l.b16 %v1889
      %v1976 = vunpack.c.h.b16 %v1889
      %v1977 = vunpack.c.l.b16 %v1890
      %v1978 = vunpack.c.h.b16 %v1890
      %v1979 = vunpack.c.l.b16 %v1891
      %v1980 = vunpack.c.h.b16 %v1891
      %v1981 = vunpack.c.l.b16 %v1892
      %v1982 = vunpack.c.h.b16 %v1892
      %v1983 = vunpack.c.l.b16 %v1893
      %v1984 = vunpack.c.h.b16 %v1893
      %v1985 = vunpack.c.l.b16 %v1894
      %v1986 = vunpack.c.h.b16 %v1894
      %v1987 = vunpack.c.l.b16 %v1895
      %v1988 = vunpack.c.h.b16 %v1895
      %v1989 = vunpack.c.l.b16 %v1896
      %v1990 = vunpack.c.h.b16 %v1896
      %v1991 = vunpack.c.l.b16 %v1897
      %v1992 = vunpack.c.h.b16 %v1897
      %v1993 = vunpack.c.l.b16 %v1898
      %v1994 = vunpack.c.h.b16 %v1898
      %v1995 = vpack.c.b16 %v1931, %v1931
      %v1996 = vpack.c.b16 %v1932, %v1932
      %v1997 = vpack.c.b16 %v1933, %v1933
      %v1998 = vpack.c.b16 %v1934, %v1934
      %v1999 = vpack.c.b16 %v1935, %v1935
      %v2000 = vpack.c.b16 %v1936, %v1936
      %v2001 = vpack.c.b16 %v1937, %v1937
      %v2002 = vpack.c.b16 %v1938, %v1938
      %v2003 = vpack.c.b16 %v1939, %v1939
      %v2004 = vpack.c.b16 %v1940, %v1940
      %v2005 = vpack.c.b16 %v1941, %v1941
      %v2006 = vpack.c.b16 %v1942, %v1942
      %v2007 = vpack.c.b16 %v1943, %v1943
      %v2008 = vpack.c.b16 %v1944, %v1944
      %v2009 = vpack.c.b16 %v1945, %v1945
      %v2010 = vpack.c.b16 %v1946, %v1946
      %v2011 = vpack.c.b16 %v1947, %v1947
      %v2012 = vpack.c.b16 %v1948, %v1948
      %v2013 = vpack.c.b16 %v1949, %v1949
      %v2014 = vpack.c.b16 %v1950, %v1950
      %v2015 = vpack.c.b16 %v1951, %v1951
      %v2016 = vpack.c.b16 %v1952, %v1952
      %v2017 = vpack.c.b16 %v1953, %v1953
      %v2018 = vpack.c.b16 %v1954, %v1954
      %v2019 = vpack.c.b16 %v1955, %v1955
      %v2020 = vpack.c.b16 %v1956, %v1956
      %v2021 = vpack.c.b16 %v1957, %v1957
      %v2022 = vpack.c.b16 %v1958, %v1958
      %v2023 = vpack.c.b16 %v1959, %v1959
      %v2024 = vpack.c.b16 %v1960, %v1960
      %v2025 = vpack.c.b16 %v1961, %v1961
      %v2026 = vpack.c.b16 %v1962, %v1962
      %v2027 = vpack.c.b16 %v1963, %v1963
      %v2028 = vpack.c.b16 %v1964, %v1964
      %v2029 = vpack.c.b16 %v1965, %v1965
      %v2030 = vpack.c.b16 %v1966, %v1966
      %v2031 = vpack.c.b16 %v1967, %v1967
      %v2032 = vpack.c.b16 %v1968, %v1968
      %v2033 = vpack.c.b16 %v1969, %v1969
      %v2034 = vpack.c.b16 %v1970, %v1970
      %v2035 = vpack.c.b16 %v1971, %v1971
      %v2036 = vpack.c.b16 %v1972, %v1972
      %v2037 = vpack.c.b16 %v1973, %v1973
      %v2038 = vpack.c.b16 %v1974, %v1974
      %v2039 = vpack.c.b16 %v1975, %v1975
      %v2040 = vpack.c.b16 %v1976, %v1976
      %v2041 = vpack.c.b16 %v1977, %v1977
      %v2042 = vpack.c.b16 %v1978, %v1978
      %v2043 = vpack.c.b16 %v1979, %v1979
      %v2044 = vpack.c.b16 %v1980, %v1980
      %v2045 = vpack.c.b16 %v1981, %v1981
      %v2046 = vpack.c.b16 %v1982, %v1982
      %v2047 = vpack.c.b16 %v1983, %v1983
      %v2048 = vpack.c.b16 %v1984, %v1984
      %v2049 = vpack.c.b16 %v1985, %v1985
      %v2050 = vpack.c.b16 %v1986, %v1986
      %v2051 = vpack.c.b16 %v1987, %v1987
      %v2052 = vpack.c.b16 %v1988, %v1988
      %v2053 = vpack.c.b16 %v1989, %v1989
      %v2054 = vpack.c.b16 %v1990, %v1990
      %v2055 = vpack.c.b16 %v1991, %v1991
      %v2056 = vpack.c.b16 %v1992, %v1992
      %v2057 = vpack.c.b16 %v1993, %v1993
      %v2058 = vpack.c.b16 %v1994, %v1994
      %2123 = vst [vmem:[%s238] sm:$0xf] %v1995
      %2124 = vst [vmem:[%s238 + $0x4] sm:$0xf] %v1996
      %2125 = vst [vmem:[%s238 + $0x8] sm:$0xf] %v1997
      %2126 = vst [vmem:[%s238 + $0xc] sm:$0xf] %v1998
      %2127 = vst [vmem:[%s238 + $0x10] sm:$0xf] %v1999
      %2128 = vst [vmem:[%s238 + $0x14] sm:$0xf] %v2000
      %2129 = vst [vmem:[%s238 + $0x18] sm:$0xf] %v2001
      %2130 = vst [vmem:[%s238 + $0x1c] sm:$0xf] %v2002
      %2131 = vst [vmem:[%s238 + $0x20] sm:$0xf] %v2003
      %2132 = vst [vmem:[%s238 + $0x24] sm:$0xf] %v2004
      %2133 = vst [vmem:[%s238 + $0x28] sm:$0xf] %v2005
      %2134 = vst [vmem:[%s238 + $0x2c] sm:$0xf] %v2006
      %2135 = vst [vmem:[%s238 + $0x30] sm:$0xf] %v2007
      %2136 = vst [vmem:[%s238 + $0x34] sm:$0xf] %v2008
      %2137 = vst [vmem:[%s238 + $0x38] sm:$0xf] %v2009
      %2138 = vst [vmem:[%s238 + $0x3c] sm:$0xf] %v2010
      %2139 = vst [vmem:[%s238 + $0x40] sm:$0xf] %v2011
      %2140 = vst [vmem:[%s238 + $0x44] sm:$0xf] %v2012
      %2141 = vst [vmem:[%s238 + $0x48] sm:$0xf] %v2013
      %2142 = vst [vmem:[%s238 + $0x4c] sm:$0xf] %v2014
      %2143 = vst [vmem:[%s238 + $0x50] sm:$0xf] %v2015
      %2144 = vst [vmem:[%s238 + $0x54] sm:$0xf] %v2016
      %2145 = vst [vmem:[%s238 + $0x58] sm:$0xf] %v2017
      %2146 = vst [vmem:[%s238 + $0x5c] sm:$0xf] %v2018
      %2147 = vst [vmem:[%s238 + $0x60] sm:$0xf] %v2019
      %2148 = vst [vmem:[%s238 + $0x64] sm:$0xf] %v2020
      %2149 = vst [vmem:[%s238 + $0x68] sm:$0xf] %v2021
      %2150 = vst [vmem:[%s238 + $0x6c] sm:$0xf] %v2022
      %2151 = vst [vmem:[%s238 + $0x70] sm:$0xf] %v2023
      %2152 = vst [vmem:[%s238 + $0x74] sm:$0xf] %v2024
      %2153 = vst [vmem:[%s238 + $0x78] sm:$0xf] %v2025
      %2154 = vst [vmem:[%s238 + $0x7c] sm:$0xf] %v2026
      %2155 = vst [vmem:[%s238 + $0x80] sm:$0xf] %v2027
      %2156 = vst [vmem:[%s238 + $0x84] sm:$0xf] %v2028
      %2157 = vst [vmem:[%s238 + $0x88] sm:$0xf] %v2029
      %2158 = vst [vmem:[%s238 + $0x8c] sm:$0xf] %v2030
      %2159 = vst [vmem:[%s238 + $0x90] sm:$0xf] %v2031
      %2160 = vst [vmem:[%s238 + $0x94] sm:$0xf] %v2032
      %2161 = vst [vmem:[%s238 + $0x98] sm:$0xf] %v2033
      %2162 = vst [vmem:[%s238 + $0x9c] sm:$0xf] %v2034
      %2163 = vst [vmem:[%s238 + $0xa0] sm:$0xf] %v2035
      %2164 = vst [vmem:[%s238 + $0xa4] sm:$0xf] %v2036
      %2165 = vst [vmem:[%s238 + $0xa8] sm:$0xf] %v2037
      %2166 = vst [vmem:[%s238 + $0xac] sm:$0xf] %v2038
      %2167 = vst [vmem:[%s238 + $0xb0] sm:$0xf] %v2039
      %2168 = vst [vmem:[%s238 + $0xb4] sm:$0xf] %v2040
      %2169 = vst [vmem:[%s238 + $0xb8] sm:$0xf] %v2041
      %2170 = vst [vmem:[%s238 + $0xbc] sm:$0xf] %v2042
      %2171 = vst [vmem:[%s238 + $0xc0] sm:$0xf] %v2043
      %2172 = vst [vmem:[%s238 + $0xc4] sm:$0xf] %v2044
      %2173 = vst [vmem:[%s238 + $0xc8] sm:$0xf] %v2045
      %2174 = vst [vmem:[%s238 + $0xcc] sm:$0xf] %v2046
      %2175 = vst [vmem:[%s238 + $0xd0] sm:$0xf] %v2047
      %2176 = vst [vmem:[%s238 + $0xd4] sm:$0xf] %v2048
      %2177 = vst [vmem:[%s238 + $0xd8] sm:$0xf] %v2049
      %2178 = vst [vmem:[%s238 + $0xdc] sm:$0xf] %v2050
      %2179 = vst [vmem:[%s238 + $0xe0] sm:$0xf] %v2051
      %2180 = vst [vmem:[%s238 + $0xe4] sm:$0xf] %v2052
      %2181 = vst [vmem:[%s238 + $0xe8] sm:$0xf] %v2053
      %2182 = vst [vmem:[%s238 + $0xec] sm:$0xf] %v2054
      %2183 = vst [vmem:[%s238 + $0xf0] sm:$0xf] %v2055
      %2184 = vst [vmem:[%s238 + $0xf4] sm:$0xf] %v2056
      %2185 = vst [vmem:[%s238 + $0xf8] sm:$0xf] %v2057
      %2186 = vst [vmem:[%s238 + $0xfc] sm:$0xf] %v2058
      %v2187 = vadd.f32 %v1613, %v1616
      %v2188 = vadd.f32 %v2187, %v1621
      %v2189 = vadd.f32 %v2188, %v1624
      %v2190 = vadd.f32 %v2189, %v1629
      %v2191 = vadd.f32 %v2190, %v1632
      %v2192 = vadd.f32 %v2191, %v1637
      %v2193 = vadd.f32 %v2192, %v1640
      %v2194 = vadd.f32 %v2193, %v1645
      %v2195 = vadd.f32 %v2194, %v1648
      %v2196 = vadd.f32 %v2195, %v1653
      %v2197 = vadd.f32 %v2196, %v1656
      %v2198 = vadd.f32 %v2197, %v1661
      %v2199 = vadd.f32 %v2198, %v1664
      %v2200 = vadd.f32 %v2199, %v1669
      %v2201 = vadd.f32 %v2200, %v1672
      %v2202 = vadd.f32 %v2201, %v1677
      %v2203 = vadd.f32 %v2202, %v1680
      %v2204 = vadd.f32 %v2203, %v1685
      %v2205 = vadd.f32 %v2204, %v1688
      %v2206 = vadd.f32 %v2205, %v1693
      %v2207 = vadd.f32 %v2206, %v1696
      %v2208 = vadd.f32 %v2207, %v1701
      %v2209 = vadd.f32 %v2208, %v1704
      %v2210 = vadd.f32 %v2209, %v1709
      %v2211 = vadd.f32 %v2210, %v1712
      %v2212 = vadd.f32 %v2211, %v1717
      %v2213 = vadd.f32 %v2212, %v1720
      %v2214 = vadd.f32 %v2213, %v1725
      %v2215 = vadd.f32 %v2214, %v1728
      %v2216 = vadd.f32 %v2215, %v1733
      %v2217 = vadd.f32 %v2216, %v1736
      %v2218 = vadd.f32 %v2217, %v1741
      %v2219 = vadd.f32 %v2218, %v1744
      %v2220 = vadd.f32 %v2219, %v1749
      %v2221 = vadd.f32 %v2220, %v1752
      %v2222 = vadd.f32 %v2221, %v1757
      %v2223 = vadd.f32 %v2222, %v1760
      %v2224 = vadd.f32 %v2223, %v1765
      %v2225 = vadd.f32 %v2224, %v1768
      %v2226 = vadd.f32 %v2225, %v1773
      %v2227 = vadd.f32 %v2226, %v1776
      %v2228 = vadd.f32 %v2227, %v1781
      %v2229 = vadd.f32 %v2228, %v1784
      %v2230 = vadd.f32 %v2229, %v1789
      %v2231 = vadd.f32 %v2230, %v1792
      %v2232 = vadd.f32 %v2231, %v1797
      %v2233 = vadd.f32 %v2232, %v1800
      %v2234 = vadd.f32 %v2233, %v1805
      %v2235 = vadd.f32 %v2234, %v1808
      %v2236 = vadd.f32 %v2235, %v1813
      %v2237 = vadd.f32 %v2236, %v1816
      %v2238 = vadd.f32 %v2237, %v1821
      %v2239 = vadd.f32 %v2238, %v1824
      %v2240 = vadd.f32 %v2239, %v1829
      %v2241 = vadd.f32 %v2240, %v1832
      %v2242 = vadd.f32 %v2241, %v1837
      %v2243 = vadd.f32 %v2242, %v1840
      %v2244 = vadd.f32 %v2243, %v1845
      %v2245 = vadd.f32 %v2244, %v1848
      %v2246 = vadd.f32 %v2245, %v1853
      %v2247 = vadd.f32 %v2246, %v1856
      %v2248 = vadd.f32 %v2247, %v1861
      %v2249 = vadd.f32 %v2248, %v1864
      %v2250 = vrot.slane %v2249, 4
      %v2251 = vadd.f32 %v2249, %v2250
      %v2252 = vrot.slane %v2251, 2
      %v2253 = vadd.f32 %v2251, %v2252
      %v2254 = vrot.slane %v2253, 1
      %v2255 = vadd.f32 %v2253, %v2254
      %v2256 = vmul.f32 %v1613, %v1613
      %v2257 = vmul.f32 %v1616, %v1616
      %v2258 = vmul.f32 %v1621, %v1621
      %v2259 = vmul.f32 %v1624, %v1624
      %v2260 = vmul.f32 %v1629, %v1629
      %v2261 = vmul.f32 %v1632, %v1632
      %v2262 = vmul.f32 %v1637, %v1637
      %v2263 = vmul.f32 %v1640, %v1640
      %v2264 = vmul.f32 %v1645, %v1645
      %v2265 = vmul.f32 %v1648, %v1648
      %v2266 = vmul.f32 %v1653, %v1653
      %v2267 = vmul.f32 %v1656, %v1656
      %v2268 = vmul.f32 %v1661, %v1661
      %v2269 = vmul.f32 %v1664, %v1664
      %v2270 = vmul.f32 %v1669, %v1669
      %v2271 = vmul.f32 %v1672, %v1672
      %v2272 = vmul.f32 %v1677, %v1677
      %v2273 = vmul.f32 %v1680, %v1680
      %v2274 = vmul.f32 %v1685, %v1685
      %v2275 = vmul.f32 %v1688, %v1688
      %v2276 = vmul.f32 %v1693, %v1693
      %v2277 = vmul.f32 %v1696, %v1696
      %v2278 = vmul.f32 %v1701, %v1701
      %v2279 = vmul.f32 %v1704, %v1704
      %v2280 = vmul.f32 %v1709, %v1709
      %v2281 = vmul.f32 %v1712, %v1712
      %v2282 = vmul.f32 %v1717, %v1717
      %v2283 = vmul.f32 %v1720, %v1720
      %v2284 = vmul.f32 %v1725, %v1725
      %v2285 = vmul.f32 %v1728, %v1728
      %v2286 = vmul.f32 %v1733, %v1733
      %v2287 = vmul.f32 %v1736, %v1736
      %v2288 = vmul.f32 %v1741, %v1741
      %v2289 = vmul.f32 %v1744, %v1744
      %v2290 = vmul.f32 %v1749, %v1749
      %v2291 = vmul.f32 %v1752, %v1752
      %v2292 = vmul.f32 %v1757, %v1757
      %v2293 = vmul.f32 %v1760, %v1760
      %v2294 = vmul.f32 %v1765, %v1765
      %v2295 = vmul.f32 %v1768, %v1768
      %v2296 = vmul.f32 %v1773, %v1773
      %v2297 = vmul.f32 %v1776, %v1776
      %v2298 = vmul.f32 %v1781, %v1781
      %v2299 = vmul.f32 %v1784, %v1784
      %v2300 = vmul.f32 %v1789, %v1789
      %v2301 = vmul.f32 %v1792, %v1792
      %v2302 = vmul.f32 %v1797, %v1797
      %v2303 = vmul.f32 %v1800, %v1800
      %v2304 = vmul.f32 %v1805, %v1805
      %v2305 = vmul.f32 %v1808, %v1808
      %v2306 = vmul.f32 %v1813, %v1813
      %v2307 = vmul.f32 %v1816, %v1816
      %v2308 = vmul.f32 %v1821, %v1821
      %v2309 = vmul.f32 %v1824, %v1824
      %v2310 = vmul.f32 %v1829, %v1829
      %v2311 = vmul.f32 %v1832, %v1832
      %v2312 = vmul.f32 %v1837, %v1837
      %v2313 = vmul.f32 %v1840, %v1840
      %v2314 = vmul.f32 %v1845, %v1845
      %v2315 = vmul.f32 %v1848, %v1848
      %v2316 = vmul.f32 %v1853, %v1853
      %v2317 = vmul.f32 %v1856, %v1856
      %v2318 = vmul.f32 %v1861, %v1861
      %v2319 = vmul.f32 %v1864, %v1864
      %v2320 = vadd.f32 %v2256, %v2257
      %v2321 = vadd.f32 %v2320, %v2258
      %v2322 = vadd.f32 %v2321, %v2259
      %v2323 = vadd.f32 %v2322, %v2260
      %v2324 = vadd.f32 %v2323, %v2261
      %v2325 = vadd.f32 %v2324, %v2262
      %v2326 = vadd.f32 %v2325, %v2263
      %v2327 = vadd.f32 %v2326, %v2264
      %v2328 = vadd.f32 %v2327, %v2265
      %v2329 = vadd.f32 %v2328, %v2266
      %v2330 = vadd.f32 %v2329, %v2267
      %v2331 = vadd.f32 %v2330, %v2268
      %v2332 = vadd.f32 %v2331, %v2269
      %v2333 = vadd.f32 %v2332, %v2270
      %v2334 = vadd.f32 %v2333, %v2271
      %v2335 = vadd.f32 %v2334, %v2272
      %v2336 = vadd.f32 %v2335, %v2273
      %v2337 = vadd.f32 %v2336, %v2274
      %v2338 = vadd.f32 %v2337, %v2275
      %v2339 = vadd.f32 %v2338, %v2276
      %v2340 = vadd.f32 %v2339, %v2277
      %v2341 = vadd.f32 %v2340, %v2278
      %v2342 = vadd.f32 %v2341, %v2279
      %v2343 = vadd.f32 %v2342, %v2280
      %v2344 = vadd.f32 %v2343, %v2281
      %v2345 = vadd.f32 %v2344, %v2282
      %v2346 = vadd.f32 %v2345, %v2283
      %v2347 = vadd.f32 %v2346, %v2284
      %v2348 = vadd.f32 %v2347, %v2285
      %v2349 = vadd.f32 %v2348, %v2286
      %v2350 = vadd.f32 %v2349, %v2287
      %v2351 = vadd.f32 %v2350, %v2288
      %v2352 = vadd.f32 %v2351, %v2289
      %v2353 = vadd.f32 %v2352, %v2290
      %v2354 = vadd.f32 %v2353, %v2291
      %v2355 = vadd.f32 %v2354, %v2292
      %v2356 = vadd.f32 %v2355, %v2293
      %v2357 = vadd.f32 %v2356, %v2294
      %v2358 = vadd.f32 %v2357, %v2295
      %v2359 = vadd.f32 %v2358, %v2296
      %v2360 = vadd.f32 %v2359, %v2297
      %v2361 = vadd.f32 %v2360, %v2298
      %v2362 = vadd.f32 %v2361, %v2299
      %v2363 = vadd.f32 %v2362, %v2300
      %v2364 = vadd.f32 %v2363, %v2301
      %v2365 = vadd.f32 %v2364, %v2302
      %v2366 = vadd.f32 %v2365, %v2303
      %v2367 = vadd.f32 %v2366, %v2304
      %v2368 = vadd.f32 %v2367, %v2305
      %v2369 = vadd.f32 %v2368, %v2306
      %v2370 = vadd.f32 %v2369, %v2307
      %v2371 = vadd.f32 %v2370, %v2308
      %v2372 = vadd.f32 %v2371, %v2309
      %v2373 = vadd.f32 %v2372, %v2310
      %v2374 = vadd.f32 %v2373, %v2311
      %v2375 = vadd.f32 %v2374, %v2312
      %v2376 = vadd.f32 %v2375, %v2313
      %v2377 = vadd.f32 %v2376, %v2314
      %v2378 = vadd.f32 %v2377, %v2315
      %v2379 = vadd.f32 %v2378, %v2316
      %v2380 = vadd.f32 %v2379, %v2317
      %v2381 = vadd.f32 %v2380, %v2318
      %v2382 = vadd.f32 %v2381, %v2319
      %v2383 = vrot.slane %v2382, 4
      %v2384 = vadd.f32 %v2382, %v2383
      %v2385 = vrot.slane %v2384, 2
      %v2386 = vadd.f32 %v2384, %v2385
      %v2387 = vrot.slane %v2386, 1
      %v2388 = vadd.f32 %v2386, %v2387
      %vm2389 = vcmask 1040384
      %v2390 = vsel %vm2389, %v2255, %v2388
      %2391 = vst [vmem:[%s243] sm:$0x3] %v2390
      %s2392 = smul.u32 8, %s17
      %p2393 = scmp.lt.s32.totalorder %s2392, 15
      %s2394 = scalar_select %p2393, %s2392, 15
      %s2395 = smul.addr %s2394, 8
      %s2396 = smul.addr %s2395, 4
      %s2397 = scalar_lea.vmem %s4, %s2396
      %p2398 = scmp.lt.s32.totalorder %s17, 1
      %s2399 = scalar_select %p2398, %s17, 1
      %s2400 = smul.addr %s2399, 2
      %s2401 = scalar_lea.vmem %s5, %s2400
      // Predicated region
      $region37: #{basic_block.4} parent=35 // pred_check
        %p2402 = pneg %p124
      $region38: #{basic_block.4} parent=35 // pred_check_branch
        %2404 = sbr.rel (%p2402) target = $region40
      $region39: #{basic_block.4} parent=35 // pred_region
        %s2405 = smul.u32 8, %s17
      $region40: #{basic_block.4} parent=35 // pred_fallthru
        _
      // Predicated region
      $region41: #{basic_block.4} parent=35 // pred_check
        %p2406 = pneg %p150
      $region42: #{basic_block.4} parent=35 // pred_check_branch
        %2408 = sbr.rel (%p2406) target = $region44
      $region43: #{basic_block.4} parent=35 // pred_region
        _
      $region44: #{basic_block.4} parent=35 // pred_fallthru
        _
    $region36: #{basic_block.4} parent=5 // pred_fallthru
      _
    %p2409 = scmp.le.s32.totalorder 2, %s12
    // Predicated region
    $region45: #{basic_block.4} parent=5 // pred_check
      %p2410 = pneg %p2409
    $region46: #{basic_block.4} parent=5 // pred_check_branch
      %2412 = sbr.rel (%p2410) target = $region48
    $region47: #{basic_block.4} parent=5 // pred_region
      %s2413 = ssub.s32 %s12, 2
      // Predicated region
      $region49: #{basic_block.4} parent=47 // pred_check
        %p2414 = pneg %p130
      $region50: #{basic_block.4} parent=47 // pred_check_branch
        %2416 = sbr.rel (%p2414) target = $region52
      $region51: #{basic_block.4} parent=47 // pred_region
        %s2417 = smul.u32 8, %s18
        %p2418 = scmp.lt.s32.totalorder %s2417, 15
        %s2419 = scalar_select %p2418, %s2417, 15
        %s2420 = smul.addr %s2419, 8
        %s2421 = smul.addr %s2420, 4
        %s2422 = scalar_lea.vmem %s4, %s2421
      $region52: #{basic_block.4} parent=47 // pred_fallthru
        _
      // Predicated region
      $region53: #{basic_block.4} parent=47 // pred_check
        %p2423 = pneg %p156
      $region54: #{basic_block.4} parent=47 // pred_check_branch
        %2425 = sbr.rel (%p2423) target = $region56
      $region55: #{basic_block.4} parent=47 // pred_region
        %p2426 = scmp.lt.s32.totalorder %s18, 1
        %s2427 = scalar_select %p2426, %s18, 1
        %s2428 = smul.addr %s2427, 2
        %s2429 = scalar_lea.vmem %s5, %s2428
      $region56: #{basic_block.4} parent=47 // pred_fallthru
        _
    $region48: #{basic_block.4} parent=5 // pred_fallthru
      _
  $region6: #{basic_block.4} parent=0 // loop_footer
    %s16 = sadd.s32 1, %s12
  $region7: #{basic_block.4} parent=0 // loop_footer_branch
    %11 = sbr.rel target = $region3
  $region8: #{basic_block.4} parent=0 // loop_exit
    _

</llo_original>
